<compile_context>
chip_gen: v6e
topology: v6e:2x2x1
jax: 0.10.0
libtpu: 0.0.40
codegen_flags: <defaults>
</compile_context>

<pallas_src>
import jax
import jax.numpy as jnp
from jax import lax
from jax.experimental import pallas as pl
from jax.experimental.pallas import tpu as pltpu


TILE = 128                    # row tile (MXU-native on v5e; >=2 tiles for v7x)
VMEM_CAP = 48 << 20           # generation-safe VMEM request cap (v7x: 64 MiB phys)


# ----------------------------------------------------------------------------
# small helpers
# ----------------------------------------------------------------------------
def _round_up(x, m):
    return ((x + m - 1) // m) * m


def _pad2(a, rows, cols):
    r, c = a.shape
    return jnp.pad(a, ((0, rows - r), (0, cols - c)))


def _vmem_limit(working_set_bytes):
    need = int(working_set_bytes * 1.5) + (2 << 20)
    return int(min(max(need, 4 << 20), VMEM_CAP))


# ----------------------------------------------------------------------------
# Kernel 1: SAGEConv1 + ReLU   (1-D row grid, X resident in VMEM)
# ----------------------------------------------------------------------------
def _sage1_kernel(a_ref, xall_ref, xi_ref, wl_ref, wr_ref, b_ref, h_ref):
    # mean aggregation over all nodes: bf16 operands, f32 accumulation
    agg = jnp.dot(a_ref[...], xall_ref[...], preferred_element_type=jnp.float32)
    # lin_l(agg) + lin_r(x_i) + b  (two dots, no lane-axis concat)
    h = (jnp.dot(agg.astype(jnp.bfloat16), wl_ref[...],
                 preferred_element_type=jnp.float32)
         + jnp.dot(xi_ref[...], wr_ref[...],
                   preferred_element_type=jnp.float32)
         + b_ref[...])
    h_ref[...] = jnp.maximum(h, 0.0).astype(h_ref.dtype)


# ----------------------------------------------------------------------------
# Kernel 2: SAGEConv2 (mu) + SAGEConv3 (logvar) fused + reparameterize + normalize
# ----------------------------------------------------------------------------
def _sage_heads_kernel(a_ref, hall_ref, hi_ref, wagg_ref, wself_ref, b_ref,
                       eps_ref, mu_ref, lv_ref, z_ref, nz_ref):
    lp = mu_ref.shape[-1]
    agg = jnp.dot(a_ref[...], hall_ref[...], preferred_element_type=jnp.float32)
    # [mu | logvar] heads share one matmul per branch: (T,H)@(H,2L)
    ml = (jnp.dot(agg.astype(jnp.bfloat16), wagg_ref[...],
                  preferred_element_type=jnp.float32)
          + jnp.dot(hi_ref[...], wself_ref[...],
                    preferred_element_type=jnp.float32)
          + b_ref[...])
    mu = ml[:, :lp]
    logvar = ml[:, lp:]
    z = mu + eps_ref[...] * jnp.exp(0.5 * logvar)
    mu_ref[...] = mu
    lv_ref[...] = logvar
    z_ref[...] = z
    # fused z-normalization (hoisted out of decode); EUP reciprocal frees VALU
    norm = jnp.sqrt(jnp.sum(z * z, axis=1, keepdims=True))
    inv = pl.reciprocal(norm + 1e-8, approx=True)
    nz_ref[...] = (z * inv).astype(nz_ref.dtype)


# ----------------------------------------------------------------------------
# Kernel 3: decode — recon tile = nz_i @ nz_j^T  (pure bf16 MXU, bf16 writeback)
# ----------------------------------------------------------------------------
def _decode_kernel(nzi_ref, nzj_ref, out_ref):
    out = lax.dot_general(nzi_ref[...], nzj_ref[...], (((1,), (1,)), ((), ())),
                          preferred_element_type=jnp.float32)
    out_ref[...] = out.astype(out_ref.dtype)


# ----------------------------------------------------------------------------
# wrapper
# ----------------------------------------------------------------------------
def sgvae_forward(A, x, eps, params, *, tile=TILE):
    """SGVAE forward.  A: (N,N) row-normalized mean aggregation, x: (N,Din),
    eps: (N,latent) standard-normal noise.  Returns (recon, mu, logvar, z)."""
    n, din = x.shape
    hdim = params["wl1"].shape[1]
    ldim = params["wl2"].shape[1]

    # >= 2 row tiles so both v7x TensorCores get work
    np_ = max(_round_up(n, tile), 2 * tile)
    dp = _round_up(din, 128)
    hp = _round_up(hdim, 128)
    lp = _round_up(ldim, 128)
    f32 = jnp.float32
    bf16 = jnp.bfloat16

    # zero padding keeps the math exact: padded feature cols / nodes contribute 0
    a_p = _pad2(A.astype(f32), np_, np_).astype(bf16)
    x_p = _pad2(x.astype(f32), np_, dp).astype(bf16)        # streamed in bf16
    eps_p = _pad2(eps.astype(f32), np_, lp)

    # bf16 weight slabs (MXU operands); biases stay f32 (added post-accumulate)
    wl1 = _pad2(params["wl1"], dp, hp).astype(bf16)
    wr1 = _pad2(params["wr1"], dp, hp).astype(bf16)
    b1 = _pad2(params["b1"], 1, hp)
    wagg23 = jnp.concatenate([_pad2(params["wl2"], hp, lp),
                              _pad2(params["wl3"], hp, lp)], axis=1).astype(bf16)
    wself23 = jnp.concatenate([_pad2(params["wr2"], hp, lp),
                               _pad2(params["wr3"], hp, lp)], axis=1).astype(bf16)
    b23 = jnp.concatenate([_pad2(params["b2"], 1, lp),
                           _pad2(params["b3"], 1, lp)], axis=1)

    gr = np_ // tile   # row tiles

    # ------------------------------ layer 1 ---------------------------------
    ws1 = (2 * tile * np_ * 2        # A slab (double-buffered, bf16)
           + 2 * np_ * dp * 2        # resident X
           + 2 * tile * dp * 2       # x self rows
           + 2 * 2 * dp * hp * 2     # wl1, wr1
           + 2 * hp * 4              # b1
           + 2 * tile * hp * 2)      # h out
    # TODO(synk): for graphs too large to hold an (tile, N) A slab + X in VMEM,
    # fall back to a 2-D reduction grid over A's columns.
    if ws1 > VMEM_CAP:
        raise NotImplementedError("graph too large for the resident-X layout")

    h_p = pl.pallas_call(
        _sage1_kernel,
        out_shape=jax.ShapeDtypeStruct((np_, hp), bf16),
        grid=(gr,),
        in_specs=[
            pl.BlockSpec((tile, np_), lambda i: (i, 0)),     # A row slab (bf16)
            pl.BlockSpec((np_, dp), lambda i: (0, 0)),       # X resident (bf16)
            pl.BlockSpec((tile, dp), lambda i: (i, 0)),      # X self rows (bf16)
            pl.BlockSpec((dp, hp), lambda i: (0, 0)),        # wl1 (bf16)
            pl.BlockSpec((dp, hp), lambda i: (0, 0)),        # wr1 (bf16)
            pl.BlockSpec((1, hp), lambda i: (0, 0)),         # b1 (f32)
        ],
        out_specs=pl.BlockSpec((tile, hp), lambda i: (i, 0)),
        compiler_params=pltpu.CompilerParams(
            dimension_semantics=("parallel",),
            vmem_limit_bytes=_vmem_limit(ws1)),
        cost_estimate=pl.CostEstimate(
            flops=2 * np_ * np_ * dp + 2 * np_ * dp * hp * 2,
            transcendentals=0,
            bytes_accessed=np_ * np_ * 2 + 2 * np_ * dp * 2
            + 2 * dp * hp * 2 + hp * 4 + np_ * hp * 2),
    )(a_p, x_p, x_p, wl1, wr1, b1)

    # ----------------- layers 2 + 3 + reparameterize + normalize -------------
    ws2 = (2 * tile * np_ * 2        # A slab
           + 2 * np_ * hp * 2        # resident h
           + 2 * tile * hp * 2       # h self rows
           + 2 * 2 * hp * 2 * lp * 2 # fused head weights
           + 2 * 2 * lp * 4          # fused bias
           + 2 * tile * lp * 4       # eps
           + 2 * tile * lp * (3 * 4 + 2))   # mu, logvar, z (f32) + nz (bf16)
    if ws2 > VMEM_CAP:
        raise NotImplementedError("graph too large for the resident-h layout")

    mu_p, lv_p, z_p, nz_p = pl.pallas_call(
        _sage_heads_kernel,
        out_shape=(jax.ShapeDtypeStruct((np_, lp), f32),
                   jax.ShapeDtypeStruct((np_, lp), f32),
                   jax.ShapeDtypeStruct((np_, lp), f32),
                   jax.ShapeDtypeStruct((np_, lp), bf16)),
        grid=(gr,),
        in_specs=[
            pl.BlockSpec((tile, np_), lambda i: (i, 0)),        # A row slab
            pl.BlockSpec((np_, hp), lambda i: (0, 0)),          # h resident (bf16)
            pl.BlockSpec((tile, hp), lambda i: (i, 0)),         # h self rows
            pl.BlockSpec((hp, 2 * lp), lambda i: (0, 0)),       # [wl2 | wl3]
            pl.BlockSpec((hp, 2 * lp), lambda i: (0, 0)),       # [wr2 | wr3]
            pl.BlockSpec((1, 2 * lp), lambda i: (0, 0)),        # [b2 | b3]
            pl.BlockSpec((tile, lp), lambda i: (i, 0)),         # eps
        ],
        out_specs=(pl.BlockSpec((tile, lp), lambda i: (i, 0)),
                   pl.BlockSpec((tile, lp), lambda i: (i, 0)),
                   pl.BlockSpec((tile, lp), lambda i: (i, 0)),
                   pl.BlockSpec((tile, lp), lambda i: (i, 0))),
        compiler_params=pltpu.CompilerParams(
            dimension_semantics=("parallel",),
            vmem_limit_bytes=_vmem_limit(ws2)),
        cost_estimate=pl.CostEstimate(
            flops=2 * np_ * np_ * hp + 2 * np_ * hp * 2 * lp * 2,
            transcendentals=np_ * lp + 2 * np_,
            bytes_accessed=np_ * np_ * 2 + 2 * np_ * hp * 2
            + 2 * hp * 2 * lp * 2 + 2 * lp * 4 + np_ * lp * 4
            + np_ * lp * (3 * 4 + 2)),
    )(a_p, h_p, h_p, wagg23, wself23, b23, eps_p)

    # ------------------------------ decode -----------------------------------
    ws3 = 2 * 2 * tile * lp * 2 + 2 * tile * tile * 2
    recon_p = pl.pallas_call(
        _decode_kernel,
        out_shape=jax.ShapeDtypeStruct((np_, np_), bf16),
        grid=(gr, gr),
        in_specs=[
            pl.BlockSpec((tile, lp), lambda i, j: (i, 0)),   # nz rows for tile i
            pl.BlockSpec((tile, lp), lambda i, j: (j, 0)),   # nz rows for tile j
        ],
        out_specs=pl.BlockSpec((tile, tile), lambda i, j: (i, j)),
        compiler_params=pltpu.CompilerParams(
            dimension_semantics=("parallel", "parallel"),
            vmem_limit_bytes=_vmem_limit(ws3)),
        cost_estimate=pl.CostEstimate(
            flops=2 * np_ * np_ * lp,
            transcendentals=0,
            bytes_accessed=2 * gr * np_ * lp * 2 + np_ * np_ * 2),
    )(nz_p, nz_p)

    recon = recon_p[:n, :n].astype(f32)   # module returns f32; convert outside
    return (recon, mu_p[:n, :ldim], lv_p[:n, :ldim], z_p[:n, :ldim])


# ----------------------------------------------------------------------------
# glue: dense mean-aggregation matrix from an edge_index (2, E)
# ----------------------------------------------------------------------------
def build_mean_adj(edge_index, num_nodes):
    src = edge_index[0]
    dst = edge_index[1]
    A = jnp.zeros((num_nodes, num_nodes), jnp.float32)
    A = A.at[dst, src].add(1.0)                       # message j -> i
    deg = jnp.sum(A, axis=1, keepdims=True)
    return A / jnp.where(deg > 0, deg, 1.0)           # mean over incoming msgs


def init_params(key, input_dim, hidden_dim, latent_dim):
    ks = jax.random.split(key, 9)
    scale = 0.1

    def lin(k, din, dout):
        return scale * jax.random.normal(k, (din, dout), jnp.float32)

    return {
        "wl1": lin(ks[0], input_dim, hidden_dim),
        "wr1": lin(ks[1], input_dim, hidden_dim),
        "b1": scale * jax.random.normal(ks[2], (1, hidden_dim), jnp.float32),
        "wl2": lin(ks[3], hidden_dim, latent_dim),
        "wr2": lin(ks[4], hidden_dim, latent_dim),
        "b2": scale * jax.random.normal(ks[5], (1, latent_dim), jnp.float32),
        "wl3": lin(ks[6], hidden_dim, latent_dim),
        "wr3": lin(ks[7], hidden_dim, latent_dim),
        "b3": scale * jax.random.normal(ks[8], (1, latent_dim), jnp.float32),
    }


# plain-JAX reference mirroring the kernel's bf16-on-MXU / f32-accumulate casts
def sgvae_reference(A, x, eps, params):
    f32 = jnp.float32
    bf = jnp.bfloat16

    def mm(lhs, rhs):
        return jnp.dot(lhs.astype(bf), rhs.astype(bf), preferred_element_type=f32)

    agg = mm(A, x)
    h = jax.nn.relu(mm(agg, params["wl1"]) + mm(x, params["wr1"]) + params["b1"])
    aggh = mm(A, h)
    mu = mm(aggh, params["wl2"]) + mm(h, params["wr2"]) + params["b2"]
    logvar = mm(aggh, params["wl3"]) + mm(h, params["wr3"]) + params["b3"]
    z = mu + eps * jnp.exp(0.5 * logvar)
    nz = z / (jnp.sqrt(jnp.sum(z * z, axis=1, keepdims=True)) + 1e-8)
    recon = mm(nz, nz.T)
    return recon, mu, logvar, z


if __name__ == "__main__":
    N = 16            # number of graph nodes (padded to 256 internally)
    input_dim = 8
    hidden_dim = 32
    latent_dim = 16

    key = jax.random.PRNGKey(0)
    k_x, k_eps, k_p = jax.random.split(key, 3)

    x = jax.random.normal(k_x, (N, input_dim), jnp.float32)
    # TODO(synk): the PyTorch module draws eps internally via torch.randn_like;
    # here it is passed in deterministically so the forward is reproducible.
    eps = jax.random.normal(k_eps, (N, latent_dim), jnp.float32)

    # deterministic bidirectional ring graph
    fwd_src = jnp.arange(N, dtype=jnp.int32)
    fwd_dst = (fwd_src + 1) % N
    src = jnp.concatenate([fwd_src, fwd_dst])
    dst = jnp.concatenate([fwd_dst, fwd_src])
    edge_index = jnp.stack([src, dst], axis=0)        # (2, 2N)

    A = build_mean_adj(edge_index, N)
    params = init_params(k_p, input_dim, hidden_dim, latent_dim)

    recon_x, mu, logvar, z = jax.jit(sgvae_forward)(A, x, eps, params)
    jax.block_until_ready((recon_x, mu, logvar, z))

    assert recon_x.shape == (N, N)
    assert mu.shape == (N, latent_dim)
    assert logvar.shape == (N, latent_dim)
    assert z.shape == (N, latent_dim)

    recon_r, mu_r, lv_r, z_r = sgvae_reference(A, x, eps, params)
    assert jnp.allclose(mu, mu_r, atol=2e-2, rtol=2e-2)
    assert jnp.allclose(logvar, lv_r, atol=2e-2, rtol=2e-2)
    assert jnp.allclose(z, z_r, atol=2e-2, rtol=2e-2)
    assert jnp.allclose(recon_x, recon_r, atol=3e-2, rtol=3e-2)

    print("KERNEL_OK")
</pallas_src>

<mosaic_0001>
module attributes {stable_mosaic.version = 11 : i64} {
  func.func @_sage1_kernel(%arg0: i32, %arg1: memref<128x256xbf16, #tpu.memory_space<vmem>>, %arg2: memref<256x128xbf16, #tpu.memory_space<vmem>>, %arg3: memref<128x128xbf16, #tpu.memory_space<vmem>>, %arg4: memref<128x128xbf16, #tpu.memory_space<vmem>>, %arg5: memref<128x128xbf16, #tpu.memory_space<vmem>>, %arg6: memref<1x128xf32, #tpu.memory_space<vmem>>, %arg7: memref<128x128xbf16, #tpu.memory_space<vmem>>) attributes {dimension_semantics = [#tpu.dimension_semantics<parallel>], iteration_bounds = array<i64: 2>, scalar_prefetch = 0 : i64, scratch_operands = 0 : i64, tpu.core_type = #tpu.core_type<tc>, window_params = [{transform_indices = @transform_0, window_bounds = array<i64: 128, 256>}, {pipeline_mode = #tpu.pipeline_mode<synchronous>, transform_indices = @transform_1, window_bounds = array<i64: 256, 128>}, {transform_indices = @transform_2, window_bounds = array<i64: 128, 128>}, {pipeline_mode = #tpu.pipeline_mode<synchronous>, transform_indices = @transform_3, window_bounds = array<i64: 128, 128>}, {pipeline_mode = #tpu.pipeline_mode<synchronous>, transform_indices = @transform_4, window_bounds = array<i64: 128, 128>}, {pipeline_mode = #tpu.pipeline_mode<synchronous>, transform_indices = @transform_5, window_bounds = array<i64: 1, 128>}, {transform_indices = @transform_6, window_bounds = array<i64: 128, 128>}]} {
    %c0 = arith.constant 0 : index
    %c0_0 = arith.constant 0 : index
    %0 = vector.load %arg1[%c0, %c0_0] : memref<128x256xbf16, #tpu.memory_space<vmem>>, vector<128x256xbf16>
    %c0_1 = arith.constant 0 : index
    %c0_2 = arith.constant 0 : index
    %1 = vector.load %arg2[%c0_1, %c0_2] : memref<256x128xbf16, #tpu.memory_space<vmem>>, vector<256x128xbf16>
    %cst = arith.constant dense<0.000000e+00> : vector<128x128xf32>
    %2 = tpu.matmul %0, %1, %cst {dimension_numbers = #tpu.dot_dimension_numbers<[1], [0], [0], [1], [0, 0, 1, 1], [], []>} : vector<128x256xbf16>, vector<256x128xbf16>, vector<128x128xf32> -> vector<128x128xf32>
    %3 = arith.truncf %2 : vector<128x128xf32> to vector<128x128xbf16>
    %c0_3 = arith.constant 0 : index
    %c0_4 = arith.constant 0 : index
    %4 = vector.load %arg4[%c0_3, %c0_4] : memref<128x128xbf16, #tpu.memory_space<vmem>>, vector<128x128xbf16>
    %cst_5 = arith.constant dense<0.000000e+00> : vector<128x128xf32>
    %5 = tpu.matmul %3, %4, %cst_5 {dimension_numbers = #tpu.dot_dimension_numbers<[1], [0], [0], [1], [0, 0, 1, 1], [], []>} : vector<128x128xbf16>, vector<128x128xbf16>, vector<128x128xf32> -> vector<128x128xf32>
    %c0_6 = arith.constant 0 : index
    %c0_7 = arith.constant 0 : index
    %6 = vector.load %arg3[%c0_6, %c0_7] : memref<128x128xbf16, #tpu.memory_space<vmem>>, vector<128x128xbf16>
    %c0_8 = arith.constant 0 : index
    %c0_9 = arith.constant 0 : index
    %7 = vector.load %arg5[%c0_8, %c0_9] : memref<128x128xbf16, #tpu.memory_space<vmem>>, vector<128x128xbf16>
    %cst_10 = arith.constant dense<0.000000e+00> : vector<128x128xf32>
    %8 = tpu.matmul %6, %7, %cst_10 {dimension_numbers = #tpu.dot_dimension_numbers<[1], [0], [0], [1], [0, 0, 1, 1], [], []>} : vector<128x128xbf16>, vector<128x128xbf16>, vector<128x128xf32> -> vector<128x128xf32>
    %9 = arith.addf %5, %8 : vector<128x128xf32>
    %c0_11 = arith.constant 0 : index
    %c0_12 = arith.constant 0 : index
    %10 = vector.load %arg6[%c0_11, %c0_12] : memref<1x128xf32, #tpu.memory_space<vmem>>, vector<1x128xf32>
    %11 = vector.broadcast %10 : vector<1x128xf32> to vector<128x128xf32>
    %12 = arith.addf %9, %11 : vector<128x128xf32>
    %cst_13 = arith.constant 0.000000e+00 : f32
    %13 = vector.broadcast %cst_13 : f32 to vector<128x128xf32>
    %14 = arith.maximumf %12, %13 : vector<128x128xf32>
    %15 = arith.truncf %14 : vector<128x128xf32> to vector<128x128xbf16>
    %c0_14 = arith.constant 0 : index
    %c0_15 = arith.constant 0 : index
    %16 = vector.load %arg7[%c0_14, %c0_15] : memref<128x128xbf16, #tpu.memory_space<vmem>>, vector<128x128xbf16>
    tpu.vector_store %arg7[%c0_14, %c0_15], %15 {strides = array<i32>} : memref<128x128xbf16, #tpu.memory_space<vmem>>, vector<128x128xbf16>,
    return
  }
  func.func @transform_0(%arg0: i32) -> (i32, i32) {
    %c0_i32 = arith.constant 0 : i32
    %c0_i32_0 = arith.constant 0 : i32
    return %arg0, %c0_i32 : i32, i32
  }
  func.func @transform_1(%arg0: i32) -> (i32, i32) {
    %c0_i32 = arith.constant 0 : i32
    %c0_i32_0 = arith.constant 0 : i32
    %c0_i32_1 = arith.constant 0 : i32
    return %c0_i32, %c0_i32_0 : i32, i32
  }
  func.func @transform_2(%arg0: i32) -> (i32, i32) {
    %c0_i32 = arith.constant 0 : i32
    %c0_i32_0 = arith.constant 0 : i32
    return %arg0, %c0_i32 : i32, i32
  }
  func.func @transform_3(%arg0: i32) -> (i32, i32) {
    %c0_i32 = arith.constant 0 : i32
    %c0_i32_0 = arith.constant 0 : i32
    %c0_i32_1 = arith.constant 0 : i32
    return %c0_i32, %c0_i32_0 : i32, i32
  }
  func.func @transform_4(%arg0: i32) -> (i32, i32) {
    %c0_i32 = arith.constant 0 : i32
    %c0_i32_0 = arith.constant 0 : i32
    %c0_i32_1 = arith.constant 0 : i32
    return %c0_i32, %c0_i32_0 : i32, i32
  }
  func.func @transform_5(%arg0: i32) -> (i32, i32) {
    %c0_i32 = arith.constant 0 : i32
    %c0_i32_0 = arith.constant 0 : i32
    %c0_i32_1 = arith.constant 0 : i32
    return %c0_i32, %c0_i32_0 : i32, i32
  }
  func.func @transform_6(%arg0: i32) -> (i32, i32) {
    %c0_i32 = arith.constant 0 : i32
    %c0_i32_0 = arith.constant 0 : i32
    return %arg0, %c0_i32 : i32, i32
  }
}

module attributes {stable_mosaic.version = 11 : i64} {
  func.func @_sage_heads_kernel(%arg0: i32, %arg1: memref<128x256xbf16, #tpu.memory_space<vmem>>, %arg2: memref<256x128xbf16, #tpu.memory_space<vmem>>, %arg3: memref<128x128xbf16, #tpu.memory_space<vmem>>, %arg4: memref<128x256xbf16, #tpu.memory_space<vmem>>, %arg5: memref<128x256xbf16, #tpu.memory_space<vmem>>, %arg6: memref<1x256xf32, #tpu.memory_space<vmem>>, %arg7: memref<128x128xf32, #tpu.memory_space<vmem>>, %arg8: memref<128x128xf32, #tpu.memory_space<vmem>>, %arg9: memref<128x128xf32, #tpu.memory_space<vmem>>, %arg10: memref<128x128xf32, #tpu.memory_space<vmem>>, %arg11: memref<128x128xbf16, #tpu.memory_space<vmem>>) attributes {dimension_semantics = [#tpu.dimension_semantics<parallel>], iteration_bounds = array<i64: 2>, scalar_prefetch = 0 : i64, scratch_operands = 0 : i64, tpu.core_type = #tpu.core_type<tc>, window_params = [{transform_indices = @transform_0, window_bounds = array<i64: 128, 256>}, {pipeline_mode = #tpu.pipeline_mode<synchronous>, transform_indices = @transform_1, window_bounds = array<i64: 256, 128>}, {transform_indices = @transform_2, window_bounds = array<i64: 128, 128>}, {pipeline_mode = #tpu.pipeline_mode<synchronous>, transform_indices = @transform_3, window_bounds = array<i64: 128, 256>}, {pipeline_mode = #tpu.pipeline_mode<synchronous>, transform_indices = @transform_4, window_bounds = array<i64: 128, 256>}, {pipeline_mode = #tpu.pipeline_mode<synchronous>, transform_indices = @transform_5, window_bounds = array<i64: 1, 256>}, {transform_indices = @transform_6, window_bounds = array<i64: 128, 128>}, {transform_indices = @transform_7, window_bounds = array<i64: 128, 128>}, {transform_indices = @transform_8, window_bounds = array<i64: 128, 128>}, {transform_indices = @transform_9, window_bounds = array<i64: 128, 128>}, {transform_indices = @transform_10, window_bounds = array<i64: 128, 128>}]} {
    %c0 = arith.constant 0 : index
    %c0_0 = arith.constant 0 : index
    %0 = vector.load %arg1[%c0, %c0_0] : memref<128x256xbf16, #tpu.memory_space<vmem>>, vector<128x256xbf16>
    %c0_1 = arith.constant 0 : index
    %c0_2 = arith.constant 0 : index
    %1 = vector.load %arg2[%c0_1, %c0_2] : memref<256x128xbf16, #tpu.memory_space<vmem>>, vector<256x128xbf16>
    %cst = arith.constant dense<0.000000e+00> : vector<128x128xf32>
    %2 = tpu.matmul %0, %1, %cst {dimension_numbers = #tpu.dot_dimension_numbers<[1], [0], [0], [1], [0, 0, 1, 1], [], []>} : vector<128x256xbf16>, vector<256x128xbf16>, vector<128x128xf32> -> vector<128x128xf32>
    %3 = arith.truncf %2 : vector<128x128xf32> to vector<128x128xbf16>
    %c0_3 = arith.constant 0 : index
    %c0_4 = arith.constant 0 : index
    %4 = vector.load %arg4[%c0_3, %c0_4] : memref<128x256xbf16, #tpu.memory_space<vmem>>, vector<128x256xbf16>
    %cst_5 = arith.constant dense<0.000000e+00> : vector<128x256xf32>
    %5 = tpu.matmul %3, %4, %cst_5 {dimension_numbers = #tpu.dot_dimension_numbers<[1], [0], [0], [1], [0, 0, 1, 1], [], []>} : vector<128x128xbf16>, vector<128x256xbf16>, vector<128x256xf32> -> vector<128x256xf32>
    %c0_6 = arith.constant 0 : index
    %c0_7 = arith.constant 0 : index
    %6 = vector.load %arg3[%c0_6, %c0_7] : memref<128x128xbf16, #tpu.memory_space<vmem>>, vector<128x128xbf16>
    %c0_8 = arith.constant 0 : index
    %c0_9 = arith.constant 0 : index
    %7 = vector.load %arg5[%c0_8, %c0_9] : memref<128x256xbf16, #tpu.memory_space<vmem>>, vector<128x256xbf16>
    %cst_10 = arith.constant dense<0.000000e+00> : vector<128x256xf32>
    %8 = tpu.matmul %6, %7, %cst_10 {dimension_numbers = #tpu.dot_dimension_numbers<[1], [0], [0], [1], [0, 0, 1, 1], [], []>} : vector<128x128xbf16>, vector<128x256xbf16>, vector<128x256xf32> -> vector<128x256xf32>
    %9 = arith.addf %5, %8 : vector<128x256xf32>
    %c0_11 = arith.constant 0 : index
    %c0_12 = arith.constant 0 : index
    %10 = vector.load %arg6[%c0_11, %c0_12] : memref<1x256xf32, #tpu.memory_space<vmem>>, vector<1x256xf32>
    %11 = vector.broadcast %10 : vector<1x256xf32> to vector<128x256xf32>
    %12 = arith.addf %9, %11 : vector<128x256xf32>
    %13 = vector.extract_strided_slice %12 {offsets = [0, 0], sizes = [128, 128], strides = [1, 1]} : vector<128x256xf32> to vector<128x128xf32>
    %14 = vector.extract_strided_slice %12 {offsets = [0, 128], sizes = [128, 128], strides = [1, 1]} : vector<128x256xf32> to vector<128x128xf32>
    %c0_13 = arith.constant 0 : index
    %c0_14 = arith.constant 0 : index
    %15 = vector.load %arg7[%c0_13, %c0_14] : memref<128x128xf32, #tpu.memory_space<vmem>>, vector<128x128xf32>
    %cst_15 = arith.constant 5.000000e-01 : f32
    %16 = vector.broadcast %cst_15 : f32 to vector<128x128xf32>
    %17 = arith.mulf %16, %14 : vector<128x128xf32>
    %18 = math.exp %17 : vector<128x128xf32>
    %19 = arith.mulf %15, %18 : vector<128x128xf32>
    %20 = arith.addf %13, %19 : vector<128x128xf32>
    %c0_16 = arith.constant 0 : index
    %c0_17 = arith.constant 0 : index
    %21 = vector.load %arg8[%c0_16, %c0_17] : memref<128x128xf32, #tpu.memory_space<vmem>>, vector<128x128xf32>
    tpu.vector_store %arg8[%c0_16, %c0_17], %13 {strides = array<i32>} : memref<128x128xf32, #tpu.memory_space<vmem>>, vector<128x128xf32>,
    %c0_18 = arith.constant 0 : index
    %c0_19 = arith.constant 0 : index
    %22 = vector.load %arg9[%c0_18, %c0_19] : memref<128x128xf32, #tpu.memory_space<vmem>>, vector<128x128xf32>
    tpu.vector_store %arg9[%c0_18, %c0_19], %14 {strides = array<i32>} : memref<128x128xf32, #tpu.memory_space<vmem>>, vector<128x128xf32>,
    %c0_20 = arith.constant 0 : index
    %c0_21 = arith.constant 0 : index
    %23 = vector.load %arg10[%c0_20, %c0_21] : memref<128x128xf32, #tpu.memory_space<vmem>>, vector<128x128xf32>
    tpu.vector_store %arg10[%c0_20, %c0_21], %20 {strides = array<i32>} : memref<128x128xf32, #tpu.memory_space<vmem>>, vector<128x128xf32>,
    %24 = arith.mulf %20, %20 : vector<128x128xf32>
    %cst_22 = arith.constant dense<0.000000e+00> : vector<128xf32>
    %25 = vector.multi_reduction <add>, %24, %cst_22 [1] : vector<128x128xf32> to vector<128xf32>
    %26 = vector.shape_cast %25 : vector<128xf32> to vector<128x1xf32>
    %27 = math.sqrt %26 : vector<128x1xf32>
    %cst_23 = arith.constant 9.99999993E-9 : f32
    %28 = vector.broadcast %cst_23 : f32 to vector<128x1xf32>
    %29 = arith.addf %27, %28 : vector<128x1xf32>
    %30 = tpu.reciprocal %29 {approx = true} : vector<128x1xf32> -> vector<128x1xf32>
    %31 = vector.broadcast %30 : vector<128x1xf32> to vector<128x128xf32>
    %32 = arith.mulf %20, %31 : vector<128x128xf32>
    %33 = arith.truncf %32 : vector<128x128xf32> to vector<128x128xbf16>
    %c0_24 = arith.constant 0 : index
    %c0_25 = arith.constant 0 : index
    %34 = vector.load %arg11[%c0_24, %c0_25] : memref<128x128xbf16, #tpu.memory_space<vmem>>, vector<128x128xbf16>
    tpu.vector_store %arg11[%c0_24, %c0_25], %33 {strides = array<i32>} : memref<128x128xbf16, #tpu.memory_space<vmem>>, vector<128x128xbf16>,
    return
  }
  func.func @transform_0(%arg0: i32) -> (i32, i32) {
    %c0_i32 = arith.constant 0 : i32
    %c0_i32_0 = arith.constant 0 : i32
    return %arg0, %c0_i32 : i32, i32
  }
  func.func @transform_1(%arg0: i32) -> (i32, i32) {
    %c0_i32 = arith.constant 0 : i32
    %c0_i32_0 = arith.constant 0 : i32
    %c0_i32_1 = arith.constant 0 : i32
    return %c0_i32, %c0_i32_0 : i32, i32
  }
  func.func @transform_2(%arg0: i32) -> (i32, i32) {
    %c0_i32 = arith.constant 0 : i32
    %c0_i32_0 = arith.constant 0 : i32
    return %arg0, %c0_i32 : i32, i32
  }
  func.func @transform_3(%arg0: i32) -> (i32, i32) {
    %c0_i32 = arith.constant 0 : i32
    %c0_i32_0 = arith.constant 0 : i32
    %c0_i32_1 = arith.constant 0 : i32
    return %c0_i32, %c0_i32_0 : i32, i32
  }
  func.func @transform_4(%arg0: i32) -> (i32, i32) {
    %c0_i32 = arith.constant 0 : i32
    %c0_i32_0 = arith.constant 0 : i32
    %c0_i32_1 = arith.constant 0 : i32
    return %c0_i32, %c0_i32_0 : i32, i32
  }
  func.func @transform_5(%arg0: i32) -> (i32, i32) {
    %c0_i32 = arith.constant 0 : i32
    %c0_i32_0 = arith.constant 0 : i32
    %c0_i32_1 = arith.constant 0 : i32
    return %c0_i32, %c0_i32_0 : i32, i32
  }
  func.func @transform_6(%arg0: i32) -> (i32, i32) {
    %c0_i32 = arith.constant 0 : i32
    %c0_i32_0 = arith.constant 0 : i32
    return %arg0, %c0_i32 : i32, i32
  }
  func.func @transform_7(%arg0: i32) -> (i32, i32) {
    %c0_i32 = arith.constant 0 : i32
    %c0_i32_0 = arith.constant 0 : i32
    return %arg0, %c0_i32 : i32, i32
  }
  func.func @transform_8(%arg0: i32) -> (i32, i32) {
    %c0_i32 = arith.constant 0 : i32
    %c0_i32_0 = arith.constant 0 : i32
    return %arg0, %c0_i32 : i32, i32
  }
  func.func @transform_9(%arg0: i32) -> (i32, i32) {
    %c0_i32 = arith.constant 0 : i32
    %c0_i32_0 = arith.constant 0 : i32
    return %arg0, %c0_i32 : i32, i32
  }
  func.func @transform_10(%arg0: i32) -> (i32, i32) {
    %c0_i32 = arith.constant 0 : i32
    %c0_i32_0 = arith.constant 0 : i32
    return %arg0, %c0_i32 : i32, i32
  }
}

module attributes {stable_mosaic.version = 11 : i64} {
  func.func @_decode_kernel(%arg0: i32, %arg1: i32, %arg2: memref<128x128xbf16, #tpu.memory_space<vmem>>, %arg3: memref<128x128xbf16, #tpu.memory_space<vmem>>, %arg4: memref<128x128xbf16, #tpu.memory_space<vmem>>) attributes {dimension_semantics = [#tpu.dimension_semantics<parallel>, #tpu.dimension_semantics<parallel>], iteration_bounds = array<i64: 2, 2>, scalar_prefetch = 0 : i64, scratch_operands = 0 : i64, tpu.core_type = #tpu.core_type<tc>, window_params = [{transform_indices = @transform_0, window_bounds = array<i64: 128, 128>}, {transform_indices = @transform_1, window_bounds = array<i64: 128, 128>}, {transform_indices = @transform_2, window_bounds = array<i64: 128, 128>}]} {
    %c0 = arith.constant 0 : index
    %c0_0 = arith.constant 0 : index
    %0 = vector.load %arg2[%c0, %c0_0] : memref<128x128xbf16, #tpu.memory_space<vmem>>, vector<128x128xbf16>
    %c0_1 = arith.constant 0 : index
    %c0_2 = arith.constant 0 : index
    %1 = vector.load %arg3[%c0_1, %c0_2] : memref<128x128xbf16, #tpu.memory_space<vmem>>, vector<128x128xbf16>
    %cst = arith.constant dense<0.000000e+00> : vector<128x128xf32>
    %2 = tpu.matmul %0, %1, %cst {dimension_numbers = #tpu.dot_dimension_numbers<[1], [1], [0], [0], [0, 0, 1, 0], [], []>} : vector<128x128xbf16>, vector<128x128xbf16>, vector<128x128xf32> -> vector<128x128xf32>
    %3 = arith.truncf %2 : vector<128x128xf32> to vector<128x128xbf16>
    %c0_3 = arith.constant 0 : index
    %c0_4 = arith.constant 0 : index
    %4 = vector.load %arg4[%c0_3, %c0_4] : memref<128x128xbf16, #tpu.memory_space<vmem>>, vector<128x128xbf16>
    tpu.vector_store %arg4[%c0_3, %c0_4], %3 {strides = array<i32>} : memref<128x128xbf16, #tpu.memory_space<vmem>>, vector<128x128xbf16>,
    return
  }
  func.func @transform_0(%arg0: i32, %arg1: i32) -> (i32, i32) {
    %c0_i32 = arith.constant 0 : i32
    %c0_i32_0 = arith.constant 0 : i32
    return %arg0, %c0_i32 : i32, i32
  }
  func.func @transform_1(%arg0: i32, %arg1: i32) -> (i32, i32) {
    %c0_i32 = arith.constant 0 : i32
    %c0_i32_0 = arith.constant 0 : i32
    return %arg1, %c0_i32 : i32, i32
  }
  func.func @transform_2(%arg0: i32, %arg1: i32) -> (i32, i32) {
    %c0_i32 = arith.constant 0 : i32
    return %arg0, %arg1 : i32, i32
  }
}

</mosaic_0001>

<llo_original>
// kernel: sgvae_forward.5
$region0: #{sgvae_forward.5}
  #allocation0 [shape = 'u32[]', space=smem, size = 0x4, offset = 0x4, fixed_abs, tag = 'smem constant byte address 0x4 - core index']
  #allocation1 [shape = 'u32[144,128]{1,0:T(1,128)}', space=vmem, size = 0x12000, scoped, tag = 'internal scratch']
  %s0 = inlined_call_operand.vmem [shape: bf16[256,128], index: 0, kind: input, shape index: {}, may-alias: {0,1}]
  %s1 = inlined_call_operand.vmem [shape: bf16[256,128], index: 1, kind: input, shape index: {}, may-alias: {0,1}]
  %s2 = inlined_call_operand.vmem [shape: bf16[256,256], index: 2, kind: output, shape index: {}]
  %s3 = sld [smem:[#allocation0]]
  $region78: #{sgvae_forward.5} parent=0
    _
  %s5 = ssub.s32 1, %s3
  %s6 = scalar_select 0, %s5, %s3
  $region1: #{sgvae_forward.5} parent=0
    #allocation2 [shape = 'u8[65536]{0}', space=vmem, size = 0x10000, scoped, tag = 'output window, operand 0']
    loop: start=0, step=1, limit=6
    $region2: #{sgvae_forward.5} parent=1 // loop_pre_header
      _
    $region3: #{sgvae_forward.5} parent=1 // loop_header
      %s8 = sphi 0, %s12
      %p9 = scmp.ge.s32.totalorder %s8, 6
      %s15 = sphi 0, %s27
      %s16 = sphi 0, %s23
      %s17 = sphi 0, %s15
      %s18 = sphi 0, %s16
      %s19 = sphi 0, %s17
      %s20 = sphi 0, %s18
      %s30 = sphi 0, %s32
      %s33 = sphi 0, %s30
      %s34 = sphi 0, %s33
      %s50 = sphi 0, %s34
      %s56 = sphi 0, %s58
      %s59 = sphi 0, %s56
      %s60 = sphi 0, %s59
      %s76 = sphi 0, %s60
      %s84 = sphi 0, %s86
      %s87 = sphi 0, %s84
      %s88 = sphi 0, %s87
      %s104 = sphi 0, %s88
    $region4: #{sgvae_forward.5} parent=1 // loop_header_branch
      %11 = sbr.rel (%p9) target = $region8
    $region5: #{sgvae_forward.5} parent=1 // loop_body
      %s13 = ssub.s32 %s8, 1
      %s14 = ssub.s32 %s8, 2
      %s21 = sadd.s32 1, %s16
      %p22 = scmp.ge.s32.totalorder %s21, 2
      %s23 = scalar_select %p22, 0, %s21
      %s24 = sadd.s32 1, %s15
      %s25 = scalar_select %p22, %s24, %s15
      %p26 = scmp.ge.s32.totalorder %s25, 2
      %s27 = scalar_select %p26, 0, %s25
      %s28 = ssub.s32 %s15, %s27
      %p29 = scmp.eq.s32.totalorder %s28, 0
      %s31 = sadd.s32 %s30, 1
      %s32 = scalar_select %p29, %s30, %s31
      %p35 = pneg %p29
      %p36 = scmp.eq.s32.totalorder %s8, 3
      %p37 = por %p35, %p36
      %p38 = scmp.ne.s32.totalorder %s30, %s33
      %p39 = scmp.eq.s32.totalorder %s8, 0
      %p40 = por %p38, %p39
      %p41 = scmp.ne.s32.totalorder %s30, %s33
      %p42 = scmp.eq.s32.totalorder %s13, 3
      %p43 = por %p41, %p42
      %p44 = scmp.ne.s32.totalorder %s33, %s34
      %p45 = scmp.eq.s32.totalorder %s13, 0
      %p46 = por %p44, %p45
      %p47 = scmp.ne.s32.totalorder %s33, %s34
      %p48 = scmp.eq.s32.totalorder %s14, 3
      %p49 = por %p47, %p48
      %p51 = scmp.ne.s32.totalorder %s34, %s50
      %p52 = scmp.eq.s32.totalorder %s14, 0
      %p53 = por %p51, %p52
      %s54 = ssub.s32 %s16, %s23
      %p55 = scmp.eq.s32.totalorder %s54, 0
      %s57 = sadd.s32 %s56, 1
      %s58 = scalar_select %p55, %s56, %s57
      %p61 = pneg %p55
      %p62 = scmp.eq.s32.totalorder %s8, 3
      %p63 = por %p61, %p62
      %p64 = scmp.ne.s32.totalorder %s56, %s59
      %p65 = scmp.eq.s32.totalorder %s8, 0
      %p66 = por %p64, %p65
      %p67 = scmp.ne.s32.totalorder %s56, %s59
      %p68 = scmp.eq.s32.totalorder %s13, 3
      %p69 = por %p67, %p68
      %p70 = scmp.ne.s32.totalorder %s59, %s60
      %p71 = scmp.eq.s32.totalorder %s13, 0
      %p72 = por %p70, %p71
      %p73 = scmp.ne.s32.totalorder %s59, %s60
      %p74 = scmp.eq.s32.totalorder %s14, 3
      %p75 = por %p73, %p74
      %p77 = scmp.ne.s32.totalorder %s60, %s76
      %p78 = scmp.eq.s32.totalorder %s14, 0
      %p79 = por %p77, %p78
      %s80 = ssub.s32 %s15, %s27
      %s81 = ssub.s32 %s16, %s23
      %s82 = sor.u32 %s80, %s81
      %p83 = scmp.eq.s32.totalorder %s82, 0
      %s85 = sadd.s32 %s84, 1
      %s86 = scalar_select %p83, %s84, %s85
      %p89 = pneg %p83
      %p90 = scmp.eq.s32.totalorder %s8, 3
      %p91 = por %p89, %p90
      %p92 = scmp.ne.s32.totalorder %s84, %s87
      %p93 = scmp.eq.s32.totalorder %s8, 0
      %p94 = por %p92, %p93
      %p95 = scmp.ne.s32.totalorder %s84, %s87
      %p96 = scmp.eq.s32.totalorder %s13, 3
      %p97 = por %p95, %p96
      %p98 = scmp.ne.s32.totalorder %s87, %s88
      %p99 = scmp.eq.s32.totalorder %s13, 0
      %p100 = por %p98, %p99
      %p101 = scmp.ne.s32.totalorder %s87, %s88
      %p102 = scmp.eq.s32.totalorder %s14, 3
      %p103 = por %p101, %p102
      %p105 = scmp.ne.s32.totalorder %s88, %s104
      %p106 = scmp.eq.s32.totalorder %s14, 0
      %p107 = por %p105, %p106
      %p108 = scmp.le.s32.totalorder 1, %s8
      %p109 = scmp.lt.s32.totalorder %s8, 5
      %p110 = pnand %p108, %p109
      %p111 = pneg %p110
      // Predicated region
      $region9: #{sgvae_forward.5} parent=5 // pred_check
        _
      $region10: #{sgvae_forward.5} parent=5 // pred_check_branch
        %113 = sbr.rel (%p110) target = $region12
      $region11: #{sgvae_forward.5} parent=5 // pred_region
        %s114 = ssub.s32 %s8, 1
      $region12: #{sgvae_forward.5} parent=5 // pred_fallthru
        _
      %p115 = scmp.lt.s32.totalorder %s8, 4
      // Predicated region
      $region13: #{sgvae_forward.5} parent=5 // pred_check
        %p116 = pneg %p115
      $region14: #{sgvae_forward.5} parent=5 // pred_check_branch
        %118 = sbr.rel (%p116) target = $region16
      $region15: #{sgvae_forward.5} parent=5 // pred_region
        // Predicated region
        $region17: #{sgvae_forward.5} parent=15 // pred_check
          %p119 = pneg %p40
        $region18: #{sgvae_forward.5} parent=15 // pred_check_branch
          %121 = sbr.rel (%p119) target = $region20
        $region19: #{sgvae_forward.5} parent=15 // pred_region
          %s122 = smul.u32 16, %s15
          %p123 = scmp.lt.s32.totalorder %s122, 31
          %s124 = scalar_select %p123, %s122, 31
          %s125 = smul.addr %s124, 4
          %s126 = scalar_lea.vmem %s0, %s125
          %s127 = smul.u32 16, %s15
        $region20: #{sgvae_forward.5} parent=15 // pred_fallthru
          _
        // Predicated region
        $region21: #{sgvae_forward.5} parent=15 // pred_check
          %p128 = pneg %p66
        $region22: #{sgvae_forward.5} parent=15 // pred_check_branch
          %130 = sbr.rel (%p128) target = $region24
        $region23: #{sgvae_forward.5} parent=15 // pred_region
          %s131 = smul.u32 16, %s16
          %p132 = scmp.lt.s32.totalorder %s131, 31
          %s133 = scalar_select %p132, %s131, 31
          %s134 = smul.addr %s133, 4
          %s135 = scalar_lea.vmem %s1, %s134
          %s136 = smul.u32 16, %s16
        $region24: #{sgvae_forward.5} parent=15 // pred_fallthru
          _
      $region16: #{sgvae_forward.5} parent=5 // pred_fallthru
        _
      %p137 = scmp.le.s32.totalorder 1, %s8
      %p138 = scmp.lt.s32.totalorder %s8, 5
      %p139 = pnand %p137, %p138
      %p140 = pneg %p139
      // Predicated region
      $region25: #{sgvae_forward.5} parent=5 // pred_check
        _
      $region26: #{sgvae_forward.5} parent=5 // pred_check_branch
        %142 = sbr.rel (%p139) target = $region28
      $region27: #{sgvae_forward.5} parent=5 // pred_region
        %s143 = ssub.s32 %s8, 1
        %s144 = smul.u32 16, %s17
        %p145 = scmp.lt.s32.totalorder %s144, 31
        %s146 = scalar_select %p145, %s144, 31
        %s147 = smul.addr %s146, 4
        %s148 = scalar_lea.vmem %s0, %s147
        %p149 = pneg %p46
        %p150 = pneg %p43
        %s151 = smul.u32 16, %s18
        %p152 = scmp.lt.s32.totalorder %s151, 31
        %s153 = scalar_select %p152, %s151, 31
        %s154 = smul.addr %s153, 4
        %s155 = scalar_lea.vmem %s1, %s154
        %p156 = pneg %p72
        %p157 = pneg %p69
        %p158 = pneg %p100
        %p159 = pneg %p97
        %s160 = sand.u32 %s87, 1
        %s161 = sand.u32 %s87, 1
        %s162 = smul.addr %s161, 64
        %s163 = scalar_lea.vmem [#allocation2], %s162
        %s164 = smul.u32 16, %s17
        %p165 = scmp.lt.s32.totalorder %s164, 31
        %s166 = scalar_select %p165, %s164, 31
        %s167 = smul.addr %s166, 4
        %s168 = scalar_lea.vmem %s0, %s167
        %s169 = smul.u32 16, %s17
        %s170 = smul.u32 16, %s18
        %p171 = scmp.lt.s32.totalorder %s170, 31
        %s172 = scalar_select %p171, %s170, 31
        %s173 = smul.addr %s172, 4
        %s174 = scalar_lea.vmem %s1, %s173
        %s175 = smul.u32 16, %s18
        %s176 = smul.u32 16, %s17
        %v178 = vld [vmem:[%s168] sm:$0xf]
        %v179 = vld [vmem:[%s168 + $0x4] sm:$0xf]
        %v180 = vld [vmem:[%s168 + $0x8] sm:$0xf]
        %v181 = vld [vmem:[%s168 + $0xc] sm:$0xf]
        %v182 = vld [vmem:[%s168 + $0x10] sm:$0xf]
        %v183 = vld [vmem:[%s168 + $0x14] sm:$0xf]
        %v184 = vld [vmem:[%s168 + $0x18] sm:$0xf]
        %v185 = vld [vmem:[%s168 + $0x1c] sm:$0xf]
        %v186 = vld [vmem:[%s168 + $0x20] sm:$0xf]
        %v187 = vld [vmem:[%s168 + $0x24] sm:$0xf]
        %v188 = vld [vmem:[%s168 + $0x28] sm:$0xf]
        %v189 = vld [vmem:[%s168 + $0x2c] sm:$0xf]
        %v190 = vld [vmem:[%s168 + $0x30] sm:$0xf]
        %v191 = vld [vmem:[%s168 + $0x34] sm:$0xf]
        %v192 = vld [vmem:[%s168 + $0x38] sm:$0xf]
        %v193 = vld [vmem:[%s168 + $0x3c] sm:$0xf]
        %v194 = vld [vmem:[%s174] sm:$0xf]
        %v195 = vld [vmem:[%s174 + $0x4] sm:$0xf]
        %v196 = vld [vmem:[%s174 + $0x8] sm:$0xf]
        %v197 = vld [vmem:[%s174 + $0xc] sm:$0xf]
        %v198 = vld [vmem:[%s174 + $0x10] sm:$0xf]
        %v199 = vld [vmem:[%s174 + $0x14] sm:$0xf]
        %v200 = vld [vmem:[%s174 + $0x18] sm:$0xf]
        %v201 = vld [vmem:[%s174 + $0x1c] sm:$0xf]
        %v202 = vld [vmem:[%s174 + $0x20] sm:$0xf]
        %v203 = vld [vmem:[%s174 + $0x24] sm:$0xf]
        %v204 = vld [vmem:[%s174 + $0x28] sm:$0xf]
        %v205 = vld [vmem:[%s174 + $0x2c] sm:$0xf]
        %v206 = vld [vmem:[%s174 + $0x30] sm:$0xf]
        %v207 = vld [vmem:[%s174 + $0x34] sm:$0xf]
        %v208 = vld [vmem:[%s174 + $0x38] sm:$0xf]
        %v209 = vld [vmem:[%s174 + $0x3c] sm:$0xf]
        %v226 = vunpack.c.l.b16 %v178
        %v227 = vunpack.c.l.b16 %v179
        %v228 = vunpack.c.l.b16 %v180
        %v229 = vunpack.c.l.b16 %v181
        %v230 = vunpack.c.l.b16 %v182
        %v231 = vunpack.c.l.b16 %v183
        %v232 = vunpack.c.l.b16 %v184
        %v233 = vunpack.c.l.b16 %v185
        %v234 = vunpack.c.l.b16 %v186
        %v235 = vunpack.c.l.b16 %v187
        %v236 = vunpack.c.l.b16 %v188
        %v237 = vunpack.c.l.b16 %v189
        %v238 = vunpack.c.l.b16 %v190
        %v239 = vunpack.c.l.b16 %v191
        %v240 = vunpack.c.l.b16 %v192
        %v241 = vunpack.c.l.b16 %v193
        %v242 = vpack.c.b16 %v227, %v226
        %v243 = vpack.c.b16 %v229, %v228
        %v244 = vpack.c.b16 %v231, %v230
        %v245 = vpack.c.b16 %v233, %v232
        %v246 = vpack.c.b16 %v235, %v234
        %v247 = vpack.c.b16 %v237, %v236
        %v248 = vpack.c.b16 %v239, %v238
        %v249 = vpack.c.b16 %v241, %v240
        %v274 = vunpack.c.l.b16 %v194
        %v275 = vunpack.c.l.b16 %v195
        %v276 = vunpack.c.l.b16 %v196
        %v277 = vunpack.c.l.b16 %v197
        %v278 = vunpack.c.l.b16 %v198
        %v279 = vunpack.c.l.b16 %v199
        %v280 = vunpack.c.l.b16 %v200
        %v281 = vunpack.c.l.b16 %v201
        %v282 = vunpack.c.l.b16 %v202
        %v283 = vunpack.c.l.b16 %v203
        %v284 = vunpack.c.l.b16 %v204
        %v285 = vunpack.c.l.b16 %v205
        %v286 = vunpack.c.l.b16 %v206
        %v287 = vunpack.c.l.b16 %v207
        %v288 = vunpack.c.l.b16 %v208
        %v289 = vunpack.c.l.b16 %v209
        %v290 = vpack.c.b16 %v275, %v274
        %v291 = vpack.c.b16 %v277, %v276
        %v292 = vpack.c.b16 %v279, %v278
        %v293 = vpack.c.b16 %v281, %v280
        %v294 = vpack.c.b16 %v283, %v282
        %v295 = vpack.c.b16 %v285, %v284
        %v296 = vpack.c.b16 %v287, %v286
        %v297 = vpack.c.b16 %v289, %v288
        %306 = vmatprep.subr.bf16.mxu0 0
        %307 = vmatpush1.bf16.xpose.msra.mxu0 %v297
        %308 = vmatprep.subr.bf16.mxu0 0
        %309 = vmatpush1.bf16.xpose.msra.mxu0 %v296
        %310 = vmatprep.subr.bf16.mxu0 0
        %311 = vmatpush1.bf16.xpose.msra.mxu0 %v295
        %312 = vmatprep.subr.bf16.mxu0 0
        %313 = vmatpush1.bf16.xpose.msra.mxu0 %v294
        %314 = vmatprep.subr.bf16.mxu0 0
        %315 = vmatpush1.bf16.xpose.msra.mxu0 %v293
        %316 = vmatprep.subr.bf16.mxu0 0
        %317 = vmatpush1.bf16.xpose.msra.mxu0 %v292
        %318 = vmatprep.subr.bf16.mxu0 0
        %319 = vmatpush1.bf16.xpose.msra.mxu0 %v291
        %320 = vmatprep.subr.bf16.mxu0 0
        %321 = vmatpush1.bf16.xpose.msra.mxu0 %v290
        %322 = vmatprep.subr.bf16.mxu0 0
        %323 = vmatpush2.bf16.xpose.msra.mxu0 0
        %324 = vmatprep.subr.bf16.mxu0 0
        %325 = vmatpush2.bf16.xpose.msra.mxu0 0
        %326 = vmatprep.subr.bf16.mxu0 0
        %327 = vmatpush2.bf16.xpose.msra.mxu0 0
        %328 = vmatprep.subr.bf16.mxu0 0
        %329 = vmatpush2.bf16.xpose.msra.mxu0 0
        %330 = vmatprep.subr.bf16.mxu0 0
        %331 = vmatpush2.bf16.xpose.msra.mxu0 0
        %332 = vmatprep.subr.bf16.mxu0 0
        %333 = vmatpush2.bf16.xpose.msra.mxu0 0
        %334 = vmatprep.subr.bf16.mxu0 0
        %335 = vmatpush2.bf16.xpose.msra.mxu0 0
        %336 = vmatprep.subr.bf16.mxu0 0
        %337 = vmatpush2.bf16.xpose.msra.mxu0 0
        %338 = vmatprep.mubr.bf16.mxu0 0
        %339 = vmatmul.mubr.bf16.gmra.mxu0 %v242
        %v340 = vpop.f32.mrf.mxu0
        %v341 = vadd.f32 0.0, %v340
        %v342 = vpop.f32.mrf.mxu0
        %v343 = vpop.f32.mrf.mxu0
        %v344 = vadd.f32 0.0, %v343
        %v345 = vpop.f32.mrf.mxu0
        %346 = vmatprep.mubr.bf16.mxu0 0
        %347 = vmatmul.mubr.bf16.gmra.mxu0 %v243
        %v348 = vpop.f32.mrf.mxu0
        %v349 = vadd.f32 0.0, %v348
        %v350 = vpop.f32.mrf.mxu0
        %v351 = vpop.f32.mrf.mxu0
        %v352 = vadd.f32 0.0, %v351
        %v353 = vpop.f32.mrf.mxu0
        %354 = vmatprep.mubr.bf16.mxu0 0
        %355 = vmatmul.mubr.bf16.gmra.mxu0 %v244
        %v356 = vpop.f32.mrf.mxu0
        %v357 = vadd.f32 0.0, %v356
        %v358 = vpop.f32.mrf.mxu0
        %v359 = vpop.f32.mrf.mxu0
        %v360 = vadd.f32 0.0, %v359
        %v361 = vpop.f32.mrf.mxu0
        %362 = vmatprep.mubr.bf16.mxu0 0
        %363 = vmatmul.mubr.bf16.gmra.mxu0 %v245
        %v364 = vpop.f32.mrf.mxu0
        %v365 = vadd.f32 0.0, %v364
        %v366 = vpop.f32.mrf.mxu0
        %v367 = vpop.f32.mrf.mxu0
        %v368 = vadd.f32 0.0, %v367
        %v369 = vpop.f32.mrf.mxu0
        %370 = vmatprep.mubr.bf16.mxu0 0
        %371 = vmatmul.mubr.bf16.gmra.mxu0 %v246
        %v372 = vpop.f32.mrf.mxu0
        %v373 = vadd.f32 0.0, %v372
        %v374 = vpop.f32.mrf.mxu0
        %v375 = vpop.f32.mrf.mxu0
        %v376 = vadd.f32 0.0, %v375
        %v377 = vpop.f32.mrf.mxu0
        %378 = vmatprep.mubr.bf16.mxu0 0
        %379 = vmatmul.mubr.bf16.gmra.mxu0 %v247
        %v380 = vpop.f32.mrf.mxu0
        %v381 = vadd.f32 0.0, %v380
        %v382 = vpop.f32.mrf.mxu0
        %v383 = vpop.f32.mrf.mxu0
        %v384 = vadd.f32 0.0, %v383
        %v385 = vpop.f32.mrf.mxu0
        %386 = vmatprep.mubr.bf16.mxu0 0
        %387 = vmatmul.mubr.bf16.gmra.mxu0 %v248
        %v388 = vpop.f32.mrf.mxu0
        %v389 = vadd.f32 0.0, %v388
        %v390 = vpop.f32.mrf.mxu0
        %v391 = vpop.f32.mrf.mxu0
        %v392 = vadd.f32 0.0, %v391
        %v393 = vpop.f32.mrf.mxu0
        %394 = vmatprep.mubr.bf16.mxu0 0
        %395 = vmatmul.mubr.bf16.gmra.mxu0 %v249
        %v396 = vpop.f32.mrf.mxu0
        %v397 = vadd.f32 0.0, %v396
        %v398 = vpop.f32.mrf.mxu0
        %v399 = vpop.f32.mrf.mxu0
        %v400 = vadd.f32 0.0, %v399
        %v401 = vpop.f32.mrf.mxu0
        %402 = vdwg.mxu0
        %v403 = vpack.c.bf16 %v344, %v341
        %v404 = vpack.c.bf16 %v352, %v349
        %v405 = vpack.c.bf16 %v360, %v357
        %v406 = vpack.c.bf16 %v368, %v365
        %v407 = vpack.c.bf16 %v376, %v373
        %v408 = vpack.c.bf16 %v384, %v381
        %v409 = vpack.c.bf16 %v392, %v389
        %v410 = vpack.c.bf16 %v400, %v397
        %v419 = vunpack.c.l.b16 %v403
        %v420 = vunpack.c.h.b16 %v403
        %v421 = vunpack.c.l.b16 %v404
        %v422 = vunpack.c.h.b16 %v404
        %v423 = vunpack.c.l.b16 %v405
        %v424 = vunpack.c.h.b16 %v405
        %v425 = vunpack.c.l.b16 %v406
        %v426 = vunpack.c.h.b16 %v406
        %v427 = vunpack.c.l.b16 %v407
        %v428 = vunpack.c.h.b16 %v407
        %v429 = vunpack.c.l.b16 %v408
        %v430 = vunpack.c.h.b16 %v408
        %v431 = vunpack.c.l.b16 %v409
        %v432 = vunpack.c.h.b16 %v409
        %v433 = vunpack.c.l.b16 %v410
        %v434 = vunpack.c.h.b16 %v410
        %v435 = vpack.c.b16 %v419, %v419
        %v436 = vpack.c.b16 %v420, %v420
        %v437 = vpack.c.b16 %v421, %v421
        %v438 = vpack.c.b16 %v422, %v422
        %v439 = vpack.c.b16 %v423, %v423
        %v440 = vpack.c.b16 %v424, %v424
        %v441 = vpack.c.b16 %v425, %v425
        %v442 = vpack.c.b16 %v426, %v426
        %v443 = vpack.c.b16 %v427, %v427
        %v444 = vpack.c.b16 %v428, %v428
        %v445 = vpack.c.b16 %v429, %v429
        %v446 = vpack.c.b16 %v430, %v430
        %v447 = vpack.c.b16 %v431, %v431
        %v448 = vpack.c.b16 %v432, %v432
        %v449 = vpack.c.b16 %v433, %v433
        %v450 = vpack.c.b16 %v434, %v434
        %467 = vst [vmem:[%s163] sm:$0xf] %v435
        %468 = vst [vmem:[%s163 + $0x4] sm:$0xf] %v436
        %469 = vst [vmem:[%s163 + $0x8] sm:$0xf] %v437
        %470 = vst [vmem:[%s163 + $0xc] sm:$0xf] %v438
        %471 = vst [vmem:[%s163 + $0x10] sm:$0xf] %v439
        %472 = vst [vmem:[%s163 + $0x14] sm:$0xf] %v440
        %473 = vst [vmem:[%s163 + $0x18] sm:$0xf] %v441
        %474 = vst [vmem:[%s163 + $0x1c] sm:$0xf] %v442
        %475 = vst [vmem:[%s163 + $0x20] sm:$0xf] %v443
        %476 = vst [vmem:[%s163 + $0x24] sm:$0xf] %v444
        %477 = vst [vmem:[%s163 + $0x28] sm:$0xf] %v445
        %478 = vst [vmem:[%s163 + $0x2c] sm:$0xf] %v446
        %479 = vst [vmem:[%s163 + $0x30] sm:$0xf] %v447
        %480 = vst [vmem:[%s163 + $0x34] sm:$0xf] %v448
        %481 = vst [vmem:[%s163 + $0x38] sm:$0xf] %v449
        %482 = vst [vmem:[%s163 + $0x3c] sm:$0xf] %v450
        %s483 = sand.u32 %s87, 1
        %s484 = sand.u32 %s87, 1
        %s485 = smul.addr %s484, 64
        %s486 = scalar_lea.vmem [#allocation2], %s485
        // Predicated region
        $region29: #{sgvae_forward.5} parent=27 // pred_check
          %p487 = pneg %p97
        $region30: #{sgvae_forward.5} parent=27 // pred_check_branch
          %489 = sbr.rel (%p487) target = $region32
        $region31: #{sgvae_forward.5} parent=27 // pred_region
          %s490 = smul.u32 16, %s17
          %s491 = smul.addr %s490, 2
          %s492 = sadd.s32 %s18, %s491
          %s493 = smul.addr %s492, 4
          %s494 = scalar_lea.vmem %s2, %s493
          // Predicated region
          $region33: #{sgvae_forward.5} parent=31 // pred_check
            _
          $region34: #{sgvae_forward.5} parent=31 // pred_check_branch
            %496 = sbr.rel (0) target = $region36
          $region35: #{sgvae_forward.5} parent=31 // pred_region
            // Predicated region
            $region37: #{sgvae_forward.5} parent=35 // pred_check
              _
            $region38: #{sgvae_forward.5} parent=35 // pred_check_branch
              %498 = sbr.rel target = $region40
            $region39: #{sgvae_forward.5} parent=35 // pred_region
              // Predicated region
              $region52: #{sgvae_forward.5} parent=39 // pred_check
                _
              $region53: #{sgvae_forward.5} parent=39 // pred_check_branch
                %544 = sbr.rel (0) target = $region55
              $region54: #{sgvae_forward.5} parent=39 // pred_region
                loop: start=0, step=1, limit=1
                $region56: #{sgvae_forward.5} parent=54 // loop_pre_header
                  _
                $region57: #{sgvae_forward.5} parent=54 // loop_header
                  %s546 = sphi 0, %s550
                  %p547 = scmp.ge.s32.totalorder %s546, 1
                  %s551 = sphi %s486, %s486
                  %s552 = sphi %s494, %s494
                $region58: #{sgvae_forward.5} parent=54 // loop_header_branch
                  %549 = sbr.rel (%p547) target = $region62
                $region59: #{sgvae_forward.5} parent=54 // loop_body
                  _
                $region60: #{sgvae_forward.5} parent=54 // loop_footer
                  %s550 = sadd.s32 1, %s546
                $region61: #{sgvae_forward.5} parent=54 // loop_footer_branch
                  %545 = sbr.rel target = $region57
                $region62: #{sgvae_forward.5} parent=54 // loop_exit
                  _
                %s554 = ssub.s32 16, 1
                loop: start=0, step=1, limit=1
                $region63: #{sgvae_forward.5} parent=54 // loop_pre_header
                  _
                $region64: #{sgvae_forward.5} parent=54 // loop_header
                  %s556 = sphi 0, %s560
                  %p557 = scmp.ge.s32.totalorder %s556, 1
                  %s561 = sphi %s486, %s486
                  %s562 = sphi %s494, %s494
                $region65: #{sgvae_forward.5} parent=54 // loop_header_branch
                  %559 = sbr.rel (%p557) target = $region69
                $region66: #{sgvae_forward.5} parent=54 // loop_body
                  %v563 = vld [vmem:[%s561] sm:%s554]
                  %564 = vst [vmem:[%s562] sm:%s554] %v563
                  %v565 = vld [vmem:[%s561 + $0x4] sm:%s554]
                  %566 = vst [vmem:[%s562 + $0x8] sm:%s554] %v565
                  %v567 = vld [vmem:[%s561 + $0x8] sm:%s554]
                  %568 = vst [vmem:[%s562 + $0x10] sm:%s554] %v567
                  %v569 = vld [vmem:[%s561 + $0xc] sm:%s554]
                  %570 = vst [vmem:[%s562 + $0x18] sm:%s554] %v569
                  %v571 = vld [vmem:[%s561 + $0x10] sm:%s554]
                  %572 = vst [vmem:[%s562 + $0x20] sm:%s554] %v571
                  %v573 = vld [vmem:[%s561 + $0x14] sm:%s554]
                  %574 = vst [vmem:[%s562 + $0x28] sm:%s554] %v573
                  %v575 = vld [vmem:[%s561 + $0x18] sm:%s554]
                  %576 = vst [vmem:[%s562 + $0x30] sm:%s554] %v575
                  %v577 = vld [vmem:[%s561 + $0x1c] sm:%s554]
                  %578 = vst [vmem:[%s562 + $0x38] sm:%s554] %v577
                  %v579 = vld [vmem:[%s561 + $0x20] sm:%s554]
                  %580 = vst [vmem:[%s562 + $0x40] sm:%s554] %v579
                  %v581 = vld [vmem:[%s561 + $0x24] sm:%s554]
                  %582 = vst [vmem:[%s562 + $0x48] sm:%s554] %v581
                  %v583 = vld [vmem:[%s561 + $0x28] sm:%s554]
                  %584 = vst [vmem:[%s562 + $0x50] sm:%s554] %v583
                  %v585 = vld [vmem:[%s561 + $0x2c] sm:%s554]
                  %586 = vst [vmem:[%s562 + $0x58] sm:%s554] %v585
                  %v587 = vld [vmem:[%s561 + $0x30] sm:%s554]
                  %588 = vst [vmem:[%s562 + $0x60] sm:%s554] %v587
                  %v589 = vld [vmem:[%s561 + $0x34] sm:%s554]
                  %590 = vst [vmem:[%s562 + $0x68] sm:%s554] %v589
                  %v591 = vld [vmem:[%s561 + $0x38] sm:%s554]
                  %592 = vst [vmem:[%s562 + $0x70] sm:%s554] %v591
                  %v593 = vld [vmem:[%s561 + $0x3c] sm:%s554]
                  %594 = vst [vmem:[%s562 + $0x78] sm:%s554] %v593
                $region67: #{sgvae_forward.5} parent=54 // loop_footer
                  %s560 = sadd.s32 1, %s556
                $region68: #{sgvae_forward.5} parent=54 // loop_footer_branch
                  %555 = sbr.rel target = $region64
                $region69: #{sgvae_forward.5} parent=54 // loop_exit
                  _
              $region55: #{sgvae_forward.5} parent=39 // pred_fallthru
                _
            $region40: #{sgvae_forward.5} parent=35 // pred_fallthru
              _
            // Predicated region
            $region41: #{sgvae_forward.5} parent=35 // pred_check
              _
            $region42: #{sgvae_forward.5} parent=35 // pred_check_branch
              %500 = sbr.rel (0) target = $region44
            $region43: #{sgvae_forward.5} parent=35 // pred_region
              %s502 = ssub.s32 16, 1
              loop: start=0, step=1, limit=1
              $region45: #{sgvae_forward.5} parent=43 // loop_pre_header
                _
              $region46: #{sgvae_forward.5} parent=43 // loop_header
                %s504 = sphi 0, %s508
                %p505 = scmp.ge.s32.totalorder %s504, 1
                %s509 = sphi %s486, %s486
                %s510 = sphi %s494, %s494
              $region47: #{sgvae_forward.5} parent=43 // loop_header_branch
                %507 = sbr.rel (%p505) target = $region51
              $region48: #{sgvae_forward.5} parent=43 // loop_body
                %v511 = vld [vmem:[%s509] sm:%s502]
                %512 = vst [vmem:[%s510] sm:%s502] %v511
                %v513 = vld [vmem:[%s509 + $0x4] sm:%s502]
                %514 = vst [vmem:[%s510 + $0x8] sm:%s502] %v513
                %v515 = vld [vmem:[%s509 + $0x8] sm:%s502]
                %516 = vst [vmem:[%s510 + $0x10] sm:%s502] %v515
                %v517 = vld [vmem:[%s509 + $0xc] sm:%s502]
                %518 = vst [vmem:[%s510 + $0x18] sm:%s502] %v517
                %v519 = vld [vmem:[%s509 + $0x10] sm:%s502]
                %520 = vst [vmem:[%s510 + $0x20] sm:%s502] %v519
                %v521 = vld [vmem:[%s509 + $0x14] sm:%s502]
                %522 = vst [vmem:[%s510 + $0x28] sm:%s502] %v521
                %v523 = vld [vmem:[%s509 + $0x18] sm:%s502]
                %524 = vst [vmem:[%s510 + $0x30] sm:%s502] %v523
                %v525 = vld [vmem:[%s509 + $0x1c] sm:%s502]
                %526 = vst [vmem:[%s510 + $0x38] sm:%s502] %v525
                %v527 = vld [vmem:[%s509 + $0x20] sm:%s502]
                %528 = vst [vmem:[%s510 + $0x40] sm:%s502] %v527
                %v529 = vld [vmem:[%s509 + $0x24] sm:%s502]
                %530 = vst [vmem:[%s510 + $0x48] sm:%s502] %v529
                %v531 = vld [vmem:[%s509 + $0x28] sm:%s502]
                %532 = vst [vmem:[%s510 + $0x50] sm:%s502] %v531
                %v533 = vld [vmem:[%s509 + $0x2c] sm:%s502]
                %534 = vst [vmem:[%s510 + $0x58] sm:%s502] %v533
                %v535 = vld [vmem:[%s509 + $0x30] sm:%s502]
                %536 = vst [vmem:[%s510 + $0x60] sm:%s502] %v535
                %v537 = vld [vmem:[%s509 + $0x34] sm:%s502]
                %538 = vst [vmem:[%s510 + $0x68] sm:%s502] %v537
                %v539 = vld [vmem:[%s509 + $0x38] sm:%s502]
                %540 = vst [vmem:[%s510 + $0x70] sm:%s502] %v539
                %v541 = vld [vmem:[%s509 + $0x3c] sm:%s502]
                %542 = vst [vmem:[%s510 + $0x78] sm:%s502] %v541
              $region49: #{sgvae_forward.5} parent=43 // loop_footer
                %s508 = sadd.s32 1, %s504
              $region50: #{sgvae_forward.5} parent=43 // loop_footer_branch
                %503 = sbr.rel target = $region46
              $region51: #{sgvae_forward.5} parent=43 // loop_exit
                _
            $region44: #{sgvae_forward.5} parent=35 // pred_fallthru
              _
          $region36: #{sgvae_forward.5} parent=31 // pred_fallthru
            _
          %595 = vnop
        $region32: #{sgvae_forward.5} parent=27 // pred_fallthru
          _
      $region28: #{sgvae_forward.5} parent=5 // pred_fallthru
        _
      %p596 = scmp.le.s32.totalorder 2, %s8
      // Predicated region
      $region70: #{sgvae_forward.5} parent=5 // pred_check
        %p597 = pneg %p596
      $region71: #{sgvae_forward.5} parent=5 // pred_check_branch
        %599 = sbr.rel (%p597) target = $region73
      $region72: #{sgvae_forward.5} parent=5 // pred_region
        %s600 = ssub.s32 %s8, 2
        // Predicated region
        $region74: #{sgvae_forward.5} parent=72 // pred_check
          %p601 = pneg %p103
        $region75: #{sgvae_forward.5} parent=72 // pred_check_branch
          %603 = sbr.rel (%p601) target = $region77
        $region76: #{sgvae_forward.5} parent=72 // pred_region
          %s604 = sand.u32 %s88, 1
          %s605 = sand.u32 %s88, 1
          %s606 = smul.addr %s605, 64
          %s607 = scalar_lea.vmem [#allocation2], %s606
        $region77: #{sgvae_forward.5} parent=72 // pred_fallthru
          _
      $region73: #{sgvae_forward.5} parent=5 // pred_fallthru
        _
    $region6: #{sgvae_forward.5} parent=1 // loop_footer
      %s12 = sadd.s32 1, %s8
    $region7: #{sgvae_forward.5} parent=1 // loop_footer_branch
      %7 = sbr.rel target = $region3
    $region8: #{sgvae_forward.5} parent=1 // loop_exit
      _

// kernel: sgvae_forward.3
$region0: #{sgvae_forward.3}
  #allocation0 [shape = 'u32[]', space=smem, size = 0x4, offset = 0x4, fixed_abs, tag = 'smem constant byte address 0x4 - core index']
  #allocation1 [shape = 'u32[144,128]{1,0:T(1,128)}', space=vmem, size = 0x12000, scoped, tag = 'internal scratch']
  %s0 = inlined_call_operand.vmem [shape: bf16[256,256], index: 0, kind: input, shape index: {}]
  %s1 = inlined_call_operand.vmem [shape: bf16[256,128], index: 1, kind: input, shape index: {}, may-alias: {1,2}]
  %s2 = inlined_call_operand.vmem [shape: bf16[256,128], index: 2, kind: input, shape index: {}, may-alias: {1,2}]
  %s3 = inlined_call_operand.vmem [shape: bf16[128,128], index: 3, kind: input, shape index: {}]
  %s4 = inlined_call_operand.vmem [shape: bf16[128,128], index: 4, kind: input, shape index: {}]
  %s5 = inlined_call_operand.vmem [shape: f32[1,128], index: 5, kind: input, shape index: {}]
  %s6 = inlined_call_operand.vmem [shape: bf16[256,128], index: 6, kind: output, shape index: {}]
  %s7 = sld [smem:[#allocation0]]
  $region57: #{sgvae_forward.3} parent=0
    _
  %s9 = ssub.s32 1, %s7
  %s10 = scalar_select 0, %s9, %s7
  loop: start=0, step=1, limit=4
  $region2: #{sgvae_forward.3} parent=0 // loop_pre_header
    _
  $region3: #{sgvae_forward.3} parent=0 // loop_header
    %s12 = sphi 0, %s16
    %p13 = scmp.ge.s32.totalorder %s12, 4
    %s22 = sphi 0, %s24
    %s25 = sphi 0, %s22
    %s26 = sphi 0, %s25
    %s42 = sphi 0, %s26
    %s46 = sphi 0, %s46
    %s48 = sphi 0, %s46
    %s49 = sphi 0, %s48
    %s63 = sphi 0, %s49
    %s69 = sphi 0, %s71
    %s72 = sphi 0, %s69
    %s73 = sphi 0, %s72
    %s89 = sphi 0, %s73
    %s93 = sphi 0, %s93
    %s95 = sphi 0, %s93
    %s96 = sphi 0, %s95
    %s110 = sphi 0, %s96
    %s114 = sphi 0, %s114
    %s116 = sphi 0, %s114
    %s117 = sphi 0, %s116
    %s131 = sphi 0, %s117
    %s135 = sphi 0, %s135
    %s137 = sphi 0, %s135
    %s138 = sphi 0, %s137
    %s152 = sphi 0, %s138
    %s158 = sphi 0, %s160
    %s161 = sphi 0, %s158
    %s162 = sphi 0, %s161
    %s178 = sphi 0, %s162
  $region4: #{sgvae_forward.3} parent=0 // loop_header_branch
    %15 = sbr.rel (%p13) target = $region8
  $region5: #{sgvae_forward.3} parent=0 // loop_body
    %s17 = ssub.s32 %s12, 1
    %s18 = ssub.s32 %s12, 2
    %s19 = sadd.s32 %s12, 1
    %s20 = ssub.s32 %s12, %s19
    %p21 = scmp.eq.s32.totalorder %s20, 0
    %s23 = sadd.s32 %s22, 1
    %s24 = scalar_select %p21, %s22, %s23
    %p27 = pneg %p21
    %p28 = scmp.eq.s32.totalorder %s12, 1
    %p29 = por %p27, %p28
    %p30 = scmp.ne.s32.totalorder %s22, %s25
    %p31 = scmp.eq.s32.totalorder %s12, 0
    %p32 = por %p30, %p31
    %p33 = scmp.ne.s32.totalorder %s22, %s25
    %p34 = scmp.eq.s32.totalorder %s17, 1
    %p35 = por %p33, %p34
    %p36 = scmp.ne.s32.totalorder %s25, %s26
    %p37 = scmp.eq.s32.totalorder %s17, 0
    %p38 = por %p36, %p37
    %p39 = scmp.ne.s32.totalorder %s25, %s26
    %p40 = scmp.eq.s32.totalorder %s18, 1
    %p41 = por %p39, %p40
    %p43 = scmp.ne.s32.totalorder %s26, %s42
    %p44 = scmp.eq.s32.totalorder %s18, 0
    %p45 = por %p43, %p44
    %s47 = sadd.s32 %s46, 1
    %p50 = scmp.eq.s32.totalorder %s12, 1
    %p51 = scmp.ne.s32.totalorder %s46, %s48
    %p52 = scmp.eq.s32.totalorder %s12, 0
    %p53 = por %p51, %p52
    %p54 = scmp.ne.s32.totalorder %s46, %s48
    %p55 = scmp.eq.s32.totalorder %s17, 1
    %p56 = por %p54, %p55
    %p57 = scmp.ne.s32.totalorder %s48, %s49
    %p58 = scmp.eq.s32.totalorder %s17, 0
    %p59 = por %p57, %p58
    %p60 = scmp.ne.s32.totalorder %s48, %s49
    %p61 = scmp.eq.s32.totalorder %s18, 1
    %p62 = por %p60, %p61
    %p64 = scmp.ne.s32.totalorder %s49, %s63
    %p65 = scmp.eq.s32.totalorder %s18, 0
    %p66 = por %p64, %p65
    %s67 = ssub.s32 %s12, %s19
    %p68 = scmp.eq.s32.totalorder %s67, 0
    %s70 = sadd.s32 %s69, 1
    %s71 = scalar_select %p68, %s69, %s70
    %p74 = pneg %p68
    %p75 = scmp.eq.s32.totalorder %s12, 1
    %p76 = por %p74, %p75
    %p77 = scmp.ne.s32.totalorder %s69, %s72
    %p78 = scmp.eq.s32.totalorder %s12, 0
    %p79 = por %p77, %p78
    %p80 = scmp.ne.s32.totalorder %s69, %s72
    %p81 = scmp.eq.s32.totalorder %s17, 1
    %p82 = por %p80, %p81
    %p83 = scmp.ne.s32.totalorder %s72, %s73
    %p84 = scmp.eq.s32.totalorder %s17, 0
    %p85 = por %p83, %p84
    %p86 = scmp.ne.s32.totalorder %s72, %s73
    %p87 = scmp.eq.s32.totalorder %s18, 1
    %p88 = por %p86, %p87
    %p90 = scmp.ne.s32.totalorder %s73, %s89
    %p91 = scmp.eq.s32.totalorder %s18, 0
    %p92 = por %p90, %p91
    %s94 = sadd.s32 %s93, 1
    %p97 = scmp.eq.s32.totalorder %s12, 1
    %p98 = scmp.ne.s32.totalorder %s93, %s95
    %p99 = scmp.eq.s32.totalorder %s12, 0
    %p100 = por %p98, %p99
    %p101 = scmp.ne.s32.totalorder %s93, %s95
    %p102 = scmp.eq.s32.totalorder %s17, 1
    %p103 = por %p101, %p102
    %p104 = scmp.ne.s32.totalorder %s95, %s96
    %p105 = scmp.eq.s32.totalorder %s17, 0
    %p106 = por %p104, %p105
    %p107 = scmp.ne.s32.totalorder %s95, %s96
    %p108 = scmp.eq.s32.totalorder %s18, 1
    %p109 = por %p107, %p108
    %p111 = scmp.ne.s32.totalorder %s96, %s110
    %p112 = scmp.eq.s32.totalorder %s18, 0
    %p113 = por %p111, %p112
    %s115 = sadd.s32 %s114, 1
    %p118 = scmp.eq.s32.totalorder %s12, 1
    %p119 = scmp.ne.s32.totalorder %s114, %s116
    %p120 = scmp.eq.s32.totalorder %s12, 0
    %p121 = por %p119, %p120
    %p122 = scmp.ne.s32.totalorder %s114, %s116
    %p123 = scmp.eq.s32.totalorder %s17, 1
    %p124 = por %p122, %p123
    %p125 = scmp.ne.s32.totalorder %s116, %s117
    %p126 = scmp.eq.s32.totalorder %s17, 0
    %p127 = por %p125, %p126
    %p128 = scmp.ne.s32.totalorder %s116, %s117
    %p129 = scmp.eq.s32.totalorder %s18, 1
    %p130 = por %p128, %p129
    %p132 = scmp.ne.s32.totalorder %s117, %s131
    %p133 = scmp.eq.s32.totalorder %s18, 0
    %p134 = por %p132, %p133
    %s136 = sadd.s32 %s135, 1
    %p139 = scmp.eq.s32.totalorder %s12, 1
    %p140 = scmp.ne.s32.totalorder %s135, %s137
    %p141 = scmp.eq.s32.totalorder %s12, 0
    %p142 = por %p140, %p141
    %p143 = scmp.ne.s32.totalorder %s135, %s137
    %p144 = scmp.eq.s32.totalorder %s17, 1
    %p145 = por %p143, %p144
    %p146 = scmp.ne.s32.totalorder %s137, %s138
    %p147 = scmp.eq.s32.totalorder %s17, 0
    %p148 = por %p146, %p147
    %p149 = scmp.ne.s32.totalorder %s137, %s138
    %p150 = scmp.eq.s32.totalorder %s18, 1
    %p151 = por %p149, %p150
    %p153 = scmp.ne.s32.totalorder %s138, %s152
    %p154 = scmp.eq.s32.totalorder %s18, 0
    %p155 = por %p153, %p154
    %s156 = ssub.s32 %s12, %s19
    %p157 = scmp.eq.s32.totalorder %s156, 0
    %s159 = sadd.s32 %s158, 1
    %s160 = scalar_select %p157, %s158, %s159
    %p163 = pneg %p157
    %p164 = scmp.eq.s32.totalorder %s12, 1
    %p165 = por %p163, %p164
    %p166 = scmp.ne.s32.totalorder %s158, %s161
    %p167 = scmp.eq.s32.totalorder %s12, 0
    %p168 = por %p166, %p167
    %p169 = scmp.ne.s32.totalorder %s158, %s161
    %p170 = scmp.eq.s32.totalorder %s17, 1
    %p171 = por %p169, %p170
    %p172 = scmp.ne.s32.totalorder %s161, %s162
    %p173 = scmp.eq.s32.totalorder %s17, 0
    %p174 = por %p172, %p173
    %p175 = scmp.ne.s32.totalorder %s161, %s162
    %p176 = scmp.eq.s32.totalorder %s18, 1
    %p177 = por %p175, %p176
    %p179 = scmp.ne.s32.totalorder %s162, %s178
    %p180 = scmp.eq.s32.totalorder %s18, 0
    %p181 = por %p179, %p180
    %p182 = scmp.le.s32.totalorder 1, %s12
    %p183 = scmp.lt.s32.totalorder %s12, 3
    %p184 = pnand %p182, %p183
    %p185 = pneg %p184
    // Predicated region
    $region9: #{sgvae_forward.3} parent=5 // pred_check
      _
    $region10: #{sgvae_forward.3} parent=5 // pred_check_branch
      %187 = sbr.rel (%p184) target = $region12
    $region11: #{sgvae_forward.3} parent=5 // pred_region
      %s188 = ssub.s32 %s12, 1
      // Predicated region
      $region13: #{sgvae_forward.3} parent=11 // pred_check
        %p189 = pneg %p59
      $region14: #{sgvae_forward.3} parent=11 // pred_check_branch
        %191 = sbr.rel (%p189) target = $region16
      $region15: #{sgvae_forward.3} parent=11 // pred_region
        _
      $region16: #{sgvae_forward.3} parent=11 // pred_fallthru
        _
      // Predicated region
      $region17: #{sgvae_forward.3} parent=11 // pred_check
        %p192 = pneg %p106
      $region18: #{sgvae_forward.3} parent=11 // pred_check_branch
        %194 = sbr.rel (%p192) target = $region20
      $region19: #{sgvae_forward.3} parent=11 // pred_region
        _
      $region20: #{sgvae_forward.3} parent=11 // pred_fallthru
        _
      // Predicated region
      $region21: #{sgvae_forward.3} parent=11 // pred_check
        %p195 = pneg %p127
      $region22: #{sgvae_forward.3} parent=11 // pred_check_branch
        %197 = sbr.rel (%p195) target = $region24
      $region23: #{sgvae_forward.3} parent=11 // pred_region
        _
      $region24: #{sgvae_forward.3} parent=11 // pred_fallthru
        _
      // Predicated region
      $region25: #{sgvae_forward.3} parent=11 // pred_check
        %p198 = pneg %p148
      $region26: #{sgvae_forward.3} parent=11 // pred_check_branch
        %200 = sbr.rel (%p198) target = $region28
      $region27: #{sgvae_forward.3} parent=11 // pred_region
        _
      $region28: #{sgvae_forward.3} parent=11 // pred_fallthru
        _
    $region12: #{sgvae_forward.3} parent=5 // pred_fallthru
      _
    %p201 = scmp.lt.s32.totalorder %s12, 2
    // Predicated region
    $region29: #{sgvae_forward.3} parent=5 // pred_check
      %p202 = pneg %p201
    $region30: #{sgvae_forward.3} parent=5 // pred_check_branch
      %204 = sbr.rel (%p202) target = $region32
    $region31: #{sgvae_forward.3} parent=5 // pred_region
      // Predicated region
      $region33: #{sgvae_forward.3} parent=31 // pred_check
        %p205 = pneg %p32
      $region34: #{sgvae_forward.3} parent=31 // pred_check_branch
        %207 = sbr.rel (%p205) target = $region36
      $region35: #{sgvae_forward.3} parent=31 // pred_region
        %s208 = smul.u32 16, %s12
        %p209 = scmp.lt.s32.totalorder %s208, 31
        %s210 = scalar_select %p209, %s208, 31
        %s211 = smul.addr %s210, 2
        %s212 = smul.addr %s211, 4
        %s213 = scalar_lea.vmem %s0, %s212
        %s214 = smul.u32 16, %s12
      $region36: #{sgvae_forward.3} parent=31 // pred_fallthru
        _
      // Predicated region
      $region37: #{sgvae_forward.3} parent=31 // pred_check
        %p215 = pneg %p79
      $region38: #{sgvae_forward.3} parent=31 // pred_check_branch
        %217 = sbr.rel (%p215) target = $region40
      $region39: #{sgvae_forward.3} parent=31 // pred_region
        %s218 = smul.u32 16, %s12
        %p219 = scmp.lt.s32.totalorder %s218, 31
        %s220 = scalar_select %p219, %s218, 31
        %s221 = smul.addr %s220, 4
        %s222 = scalar_lea.vmem %s2, %s221
        %s223 = smul.u32 16, %s12
      $region40: #{sgvae_forward.3} parent=31 // pred_fallthru
        _
    $region32: #{sgvae_forward.3} parent=5 // pred_fallthru
      _
    %p224 = scmp.le.s32.totalorder 1, %s12
    %p225 = scmp.lt.s32.totalorder %s12, 3
    %p226 = pnand %p224, %p225
    %p227 = pneg %p226
    // Predicated region
    $region41: #{sgvae_forward.3} parent=5 // pred_check
      _
    $region42: #{sgvae_forward.3} parent=5 // pred_check_branch
      %229 = sbr.rel (%p226) target = $region44
    $region43: #{sgvae_forward.3} parent=5 // pred_region
      %s230 = ssub.s32 %s12, 1
      %s231 = smul.u32 16, %s17
      %p232 = scmp.lt.s32.totalorder %s231, 31
      %s233 = scalar_select %p232, %s231, 31
      %s234 = smul.addr %s233, 2
      %s235 = smul.addr %s234, 4
      %s236 = scalar_lea.vmem %s0, %s235
      %p237 = pneg %p38
      %p238 = pneg %p35
      %p239 = pneg %p59
      %p240 = pneg %p56
      %s241 = smul.u32 16, %s17
      %p242 = scmp.lt.s32.totalorder %s241, 31
      %s243 = scalar_select %p242, %s241, 31
      %s244 = smul.addr %s243, 4
      %s245 = scalar_lea.vmem %s2, %s244
      %p246 = pneg %p85
      %p247 = pneg %p82
      %p248 = pneg %p106
      %p249 = pneg %p103
      %p250 = pneg %p127
      %p251 = pneg %p124
      %p252 = pneg %p148
      %p253 = pneg %p145
      %p254 = pneg %p174
      %p255 = pneg %p171
      %s256 = smul.u32 16, %s17
      %p257 = scmp.lt.s32.totalorder %s256, 31
      %s258 = scalar_select %p257, %s256, 31
      %s259 = smul.addr %s258, 4
      %s260 = scalar_lea.vmem %s6, %s259
      %s261 = smul.u32 16, %s17
      %p262 = scmp.lt.s32.totalorder %s261, 31
      %s263 = scalar_select %p262, %s261, 31
      %s264 = smul.addr %s263, 2
      %s265 = smul.addr %s264, 4
      %s266 = scalar_lea.vmem %s0, %s265
      %s267 = smul.u32 16, %s17
      %s268 = smul.u32 16, %s17
      %p269 = scmp.lt.s32.totalorder %s268, 31
      %s270 = scalar_select %p269, %s268, 31
      %s271 = smul.addr %s270, 4
      %s272 = scalar_lea.vmem %s2, %s271
      %s273 = smul.u32 16, %s17
      %s274 = smul.u32 16, %s17
      %p275 = scmp.lt.s32.totalorder %s274, 31
      %s276 = scalar_select %p275, %s274, 31
      %s277 = smul.addr %s276, 4
      %s278 = scalar_lea.vmem %s6, %s277
      %s279 = smul.u32 16, %s17
      %v281 = vld [vmem:[%s266] sm:$0xff]
      %v282 = vld [vmem:[%s266 + $0x8] sm:$0xff]
      %v283 = vld [vmem:[%s266 + $0x10] sm:$0xff]
      %v284 = vld [vmem:[%s266 + $0x18] sm:$0xff]
      %v285 = vld [vmem:[%s266 + $0x20] sm:$0xff]
      %v286 = vld [vmem:[%s266 + $0x28] sm:$0xff]
      %v287 = vld [vmem:[%s266 + $0x30] sm:$0xff]
      %v288 = vld [vmem:[%s266 + $0x38] sm:$0xff]
      %v289 = vld [vmem:[%s266 + $0x40] sm:$0xff]
      %v290 = vld [vmem:[%s266 + $0x48] sm:$0xff]
      %v291 = vld [vmem:[%s266 + $0x50] sm:$0xff]
      %v292 = vld [vmem:[%s266 + $0x58] sm:$0xff]
      %v293 = vld [vmem:[%s266 + $0x60] sm:$0xff]
      %v294 = vld [vmem:[%s266 + $0x68] sm:$0xff]
      %v295 = vld [vmem:[%s266 + $0x70] sm:$0xff]
      %v296 = vld [vmem:[%s266 + $0x78] sm:$0xff]
      %v297 = vld [vmem:[%s1] sm:$0xf]
      %v298 = vld [vmem:[%s1 + $0x4] sm:$0xf]
      %v299 = vld [vmem:[%s1 + $0x8] sm:$0xf]
      %v300 = vld [vmem:[%s1 + $0xc] sm:$0xf]
      %v301 = vld [vmem:[%s1 + $0x10] sm:$0xf]
      %v302 = vld [vmem:[%s1 + $0x14] sm:$0xf]
      %v303 = vld [vmem:[%s1 + $0x18] sm:$0xf]
      %v304 = vld [vmem:[%s1 + $0x1c] sm:$0xf]
      %v305 = vld [vmem:[%s1 + $0x20] sm:$0xf]
      %v306 = vld [vmem:[%s1 + $0x24] sm:$0xf]
      %v307 = vld [vmem:[%s1 + $0x28] sm:$0xf]
      %v308 = vld [vmem:[%s1 + $0x2c] sm:$0xf]
      %v309 = vld [vmem:[%s1 + $0x30] sm:$0xf]
      %v310 = vld [vmem:[%s1 + $0x34] sm:$0xf]
      %v311 = vld [vmem:[%s1 + $0x38] sm:$0xf]
      %v312 = vld [vmem:[%s1 + $0x3c] sm:$0xf]
      %v313 = vld [vmem:[%s1 + $0x40] sm:$0xf]
      %v314 = vld [vmem:[%s1 + $0x44] sm:$0xf]
      %v315 = vld [vmem:[%s1 + $0x48] sm:$0xf]
      %v316 = vld [vmem:[%s1 + $0x4c] sm:$0xf]
      %v317 = vld [vmem:[%s1 + $0x50] sm:$0xf]
      %v318 = vld [vmem:[%s1 + $0x54] sm:$0xf]
      %v319 = vld [vmem:[%s1 + $0x58] sm:$0xf]
      %v320 = vld [vmem:[%s1 + $0x5c] sm:$0xf]
      %v321 = vld [vmem:[%s1 + $0x60] sm:$0xf]
      %v322 = vld [vmem:[%s1 + $0x64] sm:$0xf]
      %v323 = vld [vmem:[%s1 + $0x68] sm:$0xf]
      %v324 = vld [vmem:[%s1 + $0x6c] sm:$0xf]
      %v325 = vld [vmem:[%s1 + $0x70] sm:$0xf]
      %v326 = vld [vmem:[%s1 + $0x74] sm:$0xf]
      %v327 = vld [vmem:[%s1 + $0x78] sm:$0xf]
      %v328 = vld [vmem:[%s1 + $0x7c] sm:$0xf]
      %v345 = vunpack.c.l.b16 %v281
      %v346 = vunpack.c.h.b16 %v281
      %v347 = vunpack.c.l.b16 %v282
      %v348 = vunpack.c.h.b16 %v282
      %v349 = vunpack.c.l.b16 %v283
      %v350 = vunpack.c.h.b16 %v283
      %v351 = vunpack.c.l.b16 %v284
      %v352 = vunpack.c.h.b16 %v284
      %v353 = vunpack.c.l.b16 %v285
      %v354 = vunpack.c.h.b16 %v285
      %v355 = vunpack.c.l.b16 %v286
      %v356 = vunpack.c.h.b16 %v286
      %v357 = vunpack.c.l.b16 %v287
      %v358 = vunpack.c.h.b16 %v287
      %v359 = vunpack.c.l.b16 %v288
      %v360 = vunpack.c.h.b16 %v288
      %v361 = vunpack.c.l.b16 %v289
      %v362 = vunpack.c.h.b16 %v289
      %v363 = vunpack.c.l.b16 %v290
      %v364 = vunpack.c.h.b16 %v290
      %v365 = vunpack.c.l.b16 %v291
      %v366 = vunpack.c.h.b16 %v291
      %v367 = vunpack.c.l.b16 %v292
      %v368 = vunpack.c.h.b16 %v292
      %v369 = vunpack.c.l.b16 %v293
      %v370 = vunpack.c.h.b16 %v293
      %v371 = vunpack.c.l.b16 %v294
      %v372 = vunpack.c.h.b16 %v294
      %v373 = vunpack.c.l.b16 %v295
      %v374 = vunpack.c.h.b16 %v295
      %v375 = vunpack.c.l.b16 %v296
      %v376 = vunpack.c.h.b16 %v296
      %v377 = vpack.c.b16 %v347, %v345
      %v378 = vpack.c.b16 %v348, %v346
      %v379 = vpack.c.b16 %v351, %v349
      %v380 = vpack.c.b16 %v352, %v350
      %v381 = vpack.c.b16 %v355, %v353
      %v382 = vpack.c.b16 %v356, %v354
      %v383 = vpack.c.b16 %v359, %v357
      %v384 = vpack.c.b16 %v360, %v358
      %v385 = vpack.c.b16 %v363, %v361
      %v386 = vpack.c.b16 %v364, %v362
      %v387 = vpack.c.b16 %v367, %v365
      %v388 = vpack.c.b16 %v368, %v366
      %v389 = vpack.c.b16 %v371, %v369
      %v390 = vpack.c.b16 %v372, %v370
      %v391 = vpack.c.b16 %v375, %v373
      %v392 = vpack.c.b16 %v376, %v374
      %v441 = vunpack.c.l.b16 %v297
      %v442 = vunpack.c.l.b16 %v298
      %v443 = vunpack.c.l.b16 %v299
      %v444 = vunpack.c.l.b16 %v300
      %v445 = vunpack.c.l.b16 %v301
      %v446 = vunpack.c.l.b16 %v302
      %v447 = vunpack.c.l.b16 %v303
      %v448 = vunpack.c.l.b16 %v304
      %v449 = vunpack.c.l.b16 %v305
      %v450 = vunpack.c.l.b16 %v306
      %v451 = vunpack.c.l.b16 %v307
      %v452 = vunpack.c.l.b16 %v308
      %v453 = vunpack.c.l.b16 %v309
      %v454 = vunpack.c.l.b16 %v310
      %v455 = vunpack.c.l.b16 %v311
      %v456 = vunpack.c.l.b16 %v312
      %v457 = vunpack.c.l.b16 %v313
      %v458 = vunpack.c.l.b16 %v314
      %v459 = vunpack.c.l.b16 %v315
      %v460 = vunpack.c.l.b16 %v316
      %v461 = vunpack.c.l.b16 %v317
      %v462 = vunpack.c.l.b16 %v318
      %v463 = vunpack.c.l.b16 %v319
      %v464 = vunpack.c.l.b16 %v320
      %v465 = vunpack.c.l.b16 %v321
      %v466 = vunpack.c.l.b16 %v322
      %v467 = vunpack.c.l.b16 %v323
      %v468 = vunpack.c.l.b16 %v324
      %v469 = vunpack.c.l.b16 %v325
      %v470 = vunpack.c.l.b16 %v326
      %v471 = vunpack.c.l.b16 %v327
      %v472 = vunpack.c.l.b16 %v328
      %v473 = vpack.c.b16 %v442, %v441
      %v474 = vpack.c.b16 %v444, %v443
      %v475 = vpack.c.b16 %v446, %v445
      %v476 = vpack.c.b16 %v448, %v447
      %v477 = vpack.c.b16 %v450, %v449
      %v478 = vpack.c.b16 %v452, %v451
      %v479 = vpack.c.b16 %v454, %v453
      %v480 = vpack.c.b16 %v456, %v455
      %v481 = vpack.c.b16 %v458, %v457
      %v482 = vpack.c.b16 %v460, %v459
      %v483 = vpack.c.b16 %v462, %v461
      %v484 = vpack.c.b16 %v464, %v463
      %v485 = vpack.c.b16 %v466, %v465
      %v486 = vpack.c.b16 %v468, %v467
      %v487 = vpack.c.b16 %v470, %v469
      %v488 = vpack.c.b16 %v472, %v471
      %505 = vmatprep.subr.bf16.mxu0 0
      %506 = vmatpush1.bf16.msra.mxu0 %v480
      %507 = vmatprep.subr.bf16.mxu0 0
      %508 = vmatpush1.bf16.msra.mxu0 %v479
      %509 = vmatprep.subr.bf16.mxu0 0
      %510 = vmatpush1.bf16.msra.mxu0 %v478
      %511 = vmatprep.subr.bf16.mxu0 0
      %512 = vmatpush1.bf16.msra.mxu0 %v477
      %513 = vmatprep.subr.bf16.mxu0 0
      %514 = vmatpush1.bf16.msra.mxu0 %v476
      %515 = vmatprep.subr.bf16.mxu0 0
      %516 = vmatpush1.bf16.msra.mxu0 %v475
      %517 = vmatprep.subr.bf16.mxu0 0
      %518 = vmatpush1.bf16.msra.mxu0 %v474
      %519 = vmatprep.subr.bf16.mxu0 0
      %520 = vmatpush1.bf16.msra.mxu0 %v473
      %521 = vmatprep.subr.bf16.mxu0 0
      %522 = vmatpush2.bf16.msra.mxu0 %v488
      %523 = vmatprep.subr.bf16.mxu0 0
      %524 = vmatpush2.bf16.msra.mxu0 %v487
      %525 = vmatprep.subr.bf16.mxu0 0
      %526 = vmatpush2.bf16.msra.mxu0 %v486
      %527 = vmatprep.subr.bf16.mxu0 0
      %528 = vmatpush2.bf16.msra.mxu0 %v485
      %529 = vmatprep.subr.bf16.mxu0 0
      %530 = vmatpush2.bf16.msra.mxu0 %v484
      %531 = vmatprep.subr.bf16.mxu0 0
      %532 = vmatpush2.bf16.msra.mxu0 %v483
      %533 = vmatprep.subr.bf16.mxu0 0
      %534 = vmatpush2.bf16.msra.mxu0 %v482
      %535 = vmatprep.subr.bf16.mxu0 0
      %536 = vmatpush2.bf16.msra.mxu0 %v481
      %537 = vmatprep.mubr.bf16.mxu0 %v378
      %538 = vmatmul.mubr.bf16.gmra.mxu0 %v377
      %v539 = vpop.f32.mrf.mxu0
      %v540 = vadd.f32 0.0, %v539
      %v541 = vpop.f32.mrf.mxu0
      %v542 = vpop.f32.mrf.mxu0
      %v543 = vadd.f32 0.0, %v542
      %v544 = vpop.f32.mrf.mxu0
      %545 = vmatprep.mubr.bf16.mxu0 %v380
      %546 = vmatmul.mubr.bf16.gmra.mxu0 %v379
      %v547 = vpop.f32.mrf.mxu0
      %v548 = vadd.f32 0.0, %v547
      %v549 = vpop.f32.mrf.mxu0
      %v550 = vpop.f32.mrf.mxu0
      %v551 = vadd.f32 0.0, %v550
      %v552 = vpop.f32.mrf.mxu0
      %553 = vmatprep.mubr.bf16.mxu0 %v382
      %554 = vmatmul.mubr.bf16.gmra.mxu0 %v381
      %v555 = vpop.f32.mrf.mxu0
      %v556 = vadd.f32 0.0, %v555
      %v557 = vpop.f32.mrf.mxu0
      %v558 = vpop.f32.mrf.mxu0
      %v559 = vadd.f32 0.0, %v558
      %v560 = vpop.f32.mrf.mxu0
      %561 = vmatprep.mubr.bf16.mxu0 %v384
      %562 = vmatmul.mubr.bf16.gmra.mxu0 %v383
      %v563 = vpop.f32.mrf.mxu0
      %v564 = vadd.f32 0.0, %v563
      %v565 = vpop.f32.mrf.mxu0
      %v566 = vpop.f32.mrf.mxu0
      %v567 = vadd.f32 0.0, %v566
      %v568 = vpop.f32.mrf.mxu0
      %569 = vmatprep.mubr.bf16.mxu0 %v386
      %570 = vmatmul.mubr.bf16.gmra.mxu0 %v385
      %v571 = vpop.f32.mrf.mxu0
      %v572 = vadd.f32 0.0, %v571
      %v573 = vpop.f32.mrf.mxu0
      %v574 = vpop.f32.mrf.mxu0
      %v575 = vadd.f32 0.0, %v574
      %v576 = vpop.f32.mrf.mxu0
      %577 = vmatprep.mubr.bf16.mxu0 %v388
      %578 = vmatmul.mubr.bf16.gmra.mxu0 %v387
      %v579 = vpop.f32.mrf.mxu0
      %v580 = vadd.f32 0.0, %v579
      %v581 = vpop.f32.mrf.mxu0
      %v582 = vpop.f32.mrf.mxu0
      %v583 = vadd.f32 0.0, %v582
      %v584 = vpop.f32.mrf.mxu0
      %585 = vmatprep.mubr.bf16.mxu0 %v390
      %586 = vmatmul.mubr.bf16.gmra.mxu0 %v389
      %v587 = vpop.f32.mrf.mxu0
      %v588 = vadd.f32 0.0, %v587
      %v589 = vpop.f32.mrf.mxu0
      %v590 = vpop.f32.mrf.mxu0
      %v591 = vadd.f32 0.0, %v590
      %v592 = vpop.f32.mrf.mxu0
      %593 = vmatprep.mubr.bf16.mxu0 %v392
      %594 = vmatmul.mubr.bf16.gmra.mxu0 %v391
      %v595 = vpop.f32.mrf.mxu0
      %v596 = vadd.f32 0.0, %v595
      %v597 = vpop.f32.mrf.mxu0
      %v598 = vpop.f32.mrf.mxu0
      %v599 = vadd.f32 0.0, %v598
      %v600 = vpop.f32.mrf.mxu0
      %601 = vdwg.mxu0
      %v602 = vpack.c.bf16 %v543, %v540
      %v603 = vpack.c.bf16 %v551, %v548
      %v604 = vpack.c.bf16 %v559, %v556
      %v605 = vpack.c.bf16 %v567, %v564
      %v606 = vpack.c.bf16 %v575, %v572
      %v607 = vpack.c.bf16 %v583, %v580
      %v608 = vpack.c.bf16 %v591, %v588
      %v609 = vpack.c.bf16 %v599, %v596
      %v610 = vld [vmem:[%s3] sm:$0xf]
      %v611 = vld [vmem:[%s3 + $0x4] sm:$0xf]
      %v612 = vld [vmem:[%s3 + $0x8] sm:$0xf]
      %v613 = vld [vmem:[%s3 + $0xc] sm:$0xf]
      %v614 = vld [vmem:[%s3 + $0x10] sm:$0xf]
      %v615 = vld [vmem:[%s3 + $0x14] sm:$0xf]
      %v616 = vld [vmem:[%s3 + $0x18] sm:$0xf]
      %v617 = vld [vmem:[%s3 + $0x1c] sm:$0xf]
      %v618 = vld [vmem:[%s3 + $0x20] sm:$0xf]
      %v619 = vld [vmem:[%s3 + $0x24] sm:$0xf]
      %v620 = vld [vmem:[%s3 + $0x28] sm:$0xf]
      %v621 = vld [vmem:[%s3 + $0x2c] sm:$0xf]
      %v622 = vld [vmem:[%s3 + $0x30] sm:$0xf]
      %v623 = vld [vmem:[%s3 + $0x34] sm:$0xf]
      %v624 = vld [vmem:[%s3 + $0x38] sm:$0xf]
      %v625 = vld [vmem:[%s3 + $0x3c] sm:$0xf]
      %v626 = vld [vmem:[%s272] sm:$0xf]
      %v627 = vld [vmem:[%s272 + $0x4] sm:$0xf]
      %v628 = vld [vmem:[%s272 + $0x8] sm:$0xf]
      %v629 = vld [vmem:[%s272 + $0xc] sm:$0xf]
      %v630 = vld [vmem:[%s272 + $0x10] sm:$0xf]
      %v631 = vld [vmem:[%s272 + $0x14] sm:$0xf]
      %v632 = vld [vmem:[%s272 + $0x18] sm:$0xf]
      %v633 = vld [vmem:[%s272 + $0x1c] sm:$0xf]
      %v634 = vld [vmem:[%s272 + $0x20] sm:$0xf]
      %v635 = vld [vmem:[%s272 + $0x24] sm:$0xf]
      %v636 = vld [vmem:[%s272 + $0x28] sm:$0xf]
      %v637 = vld [vmem:[%s272 + $0x2c] sm:$0xf]
      %v638 = vld [vmem:[%s272 + $0x30] sm:$0xf]
      %v639 = vld [vmem:[%s272 + $0x34] sm:$0xf]
      %v640 = vld [vmem:[%s272 + $0x38] sm:$0xf]
      %v641 = vld [vmem:[%s272 + $0x3c] sm:$0xf]
      %v642 = vld [vmem:[%s4] sm:$0xf]
      %v643 = vld [vmem:[%s4 + $0x4] sm:$0xf]
      %v644 = vld [vmem:[%s4 + $0x8] sm:$0xf]
      %v645 = vld [vmem:[%s4 + $0xc] sm:$0xf]
      %v646 = vld [vmem:[%s4 + $0x10] sm:$0xf]
      %v647 = vld [vmem:[%s4 + $0x14] sm:$0xf]
      %v648 = vld [vmem:[%s4 + $0x18] sm:$0xf]
      %v649 = vld [vmem:[%s4 + $0x1c] sm:$0xf]
      %v650 = vld [vmem:[%s4 + $0x20] sm:$0xf]
      %v651 = vld [vmem:[%s4 + $0x24] sm:$0xf]
      %v652 = vld [vmem:[%s4 + $0x28] sm:$0xf]
      %v653 = vld [vmem:[%s4 + $0x2c] sm:$0xf]
      %v654 = vld [vmem:[%s4 + $0x30] sm:$0xf]
      %v655 = vld [vmem:[%s4 + $0x34] sm:$0xf]
      %v656 = vld [vmem:[%s4 + $0x38] sm:$0xf]
      %v657 = vld [vmem:[%s4 + $0x3c] sm:$0xf]
      %v674 = vunpack.c.l.b16 %v626
      %v675 = vunpack.c.l.b16 %v627
      %v676 = vunpack.c.l.b16 %v628
      %v677 = vunpack.c.l.b16 %v629
      %v678 = vunpack.c.l.b16 %v630
      %v679 = vunpack.c.l.b16 %v631
      %v680 = vunpack.c.l.b16 %v632
      %v681 = vunpack.c.l.b16 %v633
      %v682 = vunpack.c.l.b16 %v634
      %v683 = vunpack.c.l.b16 %v635
      %v684 = vunpack.c.l.b16 %v636
      %v685 = vunpack.c.l.b16 %v637
      %v686 = vunpack.c.l.b16 %v638
      %v687 = vunpack.c.l.b16 %v639
      %v688 = vunpack.c.l.b16 %v640
      %v689 = vunpack.c.l.b16 %v641
      %v690 = vpack.c.b16 %v675, %v674
      %v691 = vpack.c.b16 %v677, %v676
      %v692 = vpack.c.b16 %v679, %v678
      %v693 = vpack.c.b16 %v681, %v680
      %v694 = vpack.c.b16 %v683, %v682
      %v695 = vpack.c.b16 %v685, %v684
      %v696 = vpack.c.b16 %v687, %v686
      %v697 = vpack.c.b16 %v689, %v688
      %v722 = vunpack.c.l.b16 %v642
      %v723 = vunpack.c.l.b16 %v643
      %v724 = vunpack.c.l.b16 %v644
      %v725 = vunpack.c.l.b16 %v645
      %v726 = vunpack.c.l.b16 %v646
      %v727 = vunpack.c.l.b16 %v647
      %v728 = vunpack.c.l.b16 %v648
      %v729 = vunpack.c.l.b16 %v649
      %v730 = vunpack.c.l.b16 %v650
      %v731 = vunpack.c.l.b16 %v651
      %v732 = vunpack.c.l.b16 %v652
      %v733 = vunpack.c.l.b16 %v653
      %v734 = vunpack.c.l.b16 %v654
      %v735 = vunpack.c.l.b16 %v655
      %v736 = vunpack.c.l.b16 %v656
      %v737 = vunpack.c.l.b16 %v657
      %v738 = vpack.c.b16 %v723, %v722
      %v739 = vpack.c.b16 %v725, %v724
      %v740 = vpack.c.b16 %v727, %v726
      %v741 = vpack.c.b16 %v729, %v728
      %v742 = vpack.c.b16 %v731, %v730
      %v743 = vpack.c.b16 %v733, %v732
      %v744 = vpack.c.b16 %v735, %v734
      %v745 = vpack.c.b16 %v737, %v736
      %754 = vmatprep.subr.bf16.mxu0 0
      %755 = vmatpush1.bf16.msra.mxu0 %v745
      %756 = vmatprep.subr.bf16.mxu0 0
      %757 = vmatpush1.bf16.msra.mxu0 %v744
      %758 = vmatprep.subr.bf16.mxu0 0
      %759 = vmatpush1.bf16.msra.mxu0 %v743
      %760 = vmatprep.subr.bf16.mxu0 0
      %761 = vmatpush1.bf16.msra.mxu0 %v742
      %762 = vmatprep.subr.bf16.mxu0 0
      %763 = vmatpush1.bf16.msra.mxu0 %v741
      %764 = vmatprep.subr.bf16.mxu0 0
      %765 = vmatpush1.bf16.msra.mxu0 %v740
      %766 = vmatprep.subr.bf16.mxu0 0
      %767 = vmatpush1.bf16.msra.mxu0 %v739
      %768 = vmatprep.subr.bf16.mxu0 0
      %769 = vmatpush1.bf16.msra.mxu0 %v738
      %770 = vmatprep.subr.bf16.mxu0 0
      %771 = vmatpush2.bf16.msra.mxu0 0
      %772 = vmatprep.subr.bf16.mxu0 0
      %773 = vmatpush2.bf16.msra.mxu0 0
      %774 = vmatprep.subr.bf16.mxu0 0
      %775 = vmatpush2.bf16.msra.mxu0 0
      %776 = vmatprep.subr.bf16.mxu0 0
      %777 = vmatpush2.bf16.msra.mxu0 0
      %778 = vmatprep.subr.bf16.mxu0 0
      %779 = vmatpush2.bf16.msra.mxu0 0
      %780 = vmatprep.subr.bf16.mxu0 0
      %781 = vmatpush2.bf16.msra.mxu0 0
      %782 = vmatprep.subr.bf16.mxu0 0
      %783 = vmatpush2.bf16.msra.mxu0 0
      %784 = vmatprep.subr.bf16.mxu0 0
      %785 = vmatpush2.bf16.msra.mxu0 0
      %786 = vmatprep.mubr.bf16.mxu0 0
      %787 = vmatmul.mubr.bf16.gmra.mxu0 %v690
      %v788 = vpop.f32.mrf.mxu0
      %v789 = vadd.f32 0.0, %v788
      %v790 = vpop.f32.mrf.mxu0
      %v791 = vpop.f32.mrf.mxu0
      %v792 = vadd.f32 0.0, %v791
      %v793 = vpop.f32.mrf.mxu0
      %794 = vmatprep.mubr.bf16.mxu0 0
      %795 = vmatmul.mubr.bf16.gmra.mxu0 %v691
      %v796 = vpop.f32.mrf.mxu0
      %v797 = vadd.f32 0.0, %v796
      %v798 = vpop.f32.mrf.mxu0
      %v799 = vpop.f32.mrf.mxu0
      %v800 = vadd.f32 0.0, %v799
      %v801 = vpop.f32.mrf.mxu0
      %802 = vmatprep.mubr.bf16.mxu0 0
      %803 = vmatmul.mubr.bf16.gmra.mxu0 %v692
      %v804 = vpop.f32.mrf.mxu0
      %v805 = vadd.f32 0.0, %v804
      %v806 = vpop.f32.mrf.mxu0
      %v807 = vpop.f32.mrf.mxu0
      %v808 = vadd.f32 0.0, %v807
      %v809 = vpop.f32.mrf.mxu0
      %810 = vmatprep.mubr.bf16.mxu0 0
      %811 = vmatmul.mubr.bf16.gmra.mxu0 %v693
      %v812 = vpop.f32.mrf.mxu0
      %v813 = vadd.f32 0.0, %v812
      %v814 = vpop.f32.mrf.mxu0
      %v815 = vpop.f32.mrf.mxu0
      %v816 = vadd.f32 0.0, %v815
      %v817 = vpop.f32.mrf.mxu0
      %818 = vmatprep.mubr.bf16.mxu0 0
      %819 = vmatmul.mubr.bf16.gmra.mxu0 %v694
      %v820 = vpop.f32.mrf.mxu0
      %v821 = vadd.f32 0.0, %v820
      %v822 = vpop.f32.mrf.mxu0
      %v823 = vpop.f32.mrf.mxu0
      %v824 = vadd.f32 0.0, %v823
      %v825 = vpop.f32.mrf.mxu0
      %826 = vmatprep.mubr.bf16.mxu0 0
      %827 = vmatmul.mubr.bf16.gmra.mxu0 %v695
      %v828 = vpop.f32.mrf.mxu0
      %v829 = vadd.f32 0.0, %v828
      %v830 = vpop.f32.mrf.mxu0
      %v831 = vpop.f32.mrf.mxu0
      %v832 = vadd.f32 0.0, %v831
      %v833 = vpop.f32.mrf.mxu0
      %834 = vmatprep.mubr.bf16.mxu0 0
      %835 = vmatmul.mubr.bf16.gmra.mxu0 %v696
      %v836 = vpop.f32.mrf.mxu0
      %v837 = vadd.f32 0.0, %v836
      %v838 = vpop.f32.mrf.mxu0
      %v839 = vpop.f32.mrf.mxu0
      %v840 = vadd.f32 0.0, %v839
      %v841 = vpop.f32.mrf.mxu0
      %842 = vmatprep.mubr.bf16.mxu0 0
      %843 = vmatmul.mubr.bf16.gmra.mxu0 %v697
      %v844 = vpop.f32.mrf.mxu0
      %v845 = vadd.f32 0.0, %v844
      %v846 = vpop.f32.mrf.mxu0
      %v847 = vpop.f32.mrf.mxu0
      %v848 = vadd.f32 0.0, %v847
      %v849 = vpop.f32.mrf.mxu0
      %850 = vdwg.mxu0
      %v867 = vunpack.c.l.b16 %v610
      %v868 = vunpack.c.l.b16 %v611
      %v869 = vunpack.c.l.b16 %v612
      %v870 = vunpack.c.l.b16 %v613
      %v871 = vunpack.c.l.b16 %v614
      %v872 = vunpack.c.l.b16 %v615
      %v873 = vunpack.c.l.b16 %v616
      %v874 = vunpack.c.l.b16 %v617
      %v875 = vunpack.c.l.b16 %v618
      %v876 = vunpack.c.l.b16 %v619
      %v877 = vunpack.c.l.b16 %v620
      %v878 = vunpack.c.l.b16 %v621
      %v879 = vunpack.c.l.b16 %v622
      %v880 = vunpack.c.l.b16 %v623
      %v881 = vunpack.c.l.b16 %v624
      %v882 = vunpack.c.l.b16 %v625
      %v883 = vpack.c.b16 %v868, %v867
      %v884 = vpack.c.b16 %v870, %v869
      %v885 = vpack.c.b16 %v872, %v871
      %v886 = vpack.c.b16 %v874, %v873
      %v887 = vpack.c.b16 %v876, %v875
      %v888 = vpack.c.b16 %v878, %v877
      %v889 = vpack.c.b16 %v880, %v879
      %v890 = vpack.c.b16 %v882, %v881
      %899 = vmatprep.subr.bf16.mxu0 0
      %900 = vmatpush1.bf16.msra.mxu0 %v890
      %901 = vmatprep.subr.bf16.mxu0 0
      %902 = vmatpush1.bf16.msra.mxu0 %v889
      %903 = vmatprep.subr.bf16.mxu0 0
      %904 = vmatpush1.bf16.msra.mxu0 %v888
      %905 = vmatprep.subr.bf16.mxu0 0
      %906 = vmatpush1.bf16.msra.mxu0 %v887
      %907 = vmatprep.subr.bf16.mxu0 0
      %908 = vmatpush1.bf16.msra.mxu0 %v886
      %909 = vmatprep.subr.bf16.mxu0 0
      %910 = vmatpush1.bf16.msra.mxu0 %v885
      %911 = vmatprep.subr.bf16.mxu0 0
      %912 = vmatpush1.bf16.msra.mxu0 %v884
      %913 = vmatprep.subr.bf16.mxu0 0
      %914 = vmatpush1.bf16.msra.mxu0 %v883
      %915 = vmatprep.subr.bf16.mxu0 0
      %916 = vmatpush2.bf16.msra.mxu0 0
      %917 = vmatprep.subr.bf16.mxu0 0
      %918 = vmatpush2.bf16.msra.mxu0 0
      %919 = vmatprep.subr.bf16.mxu0 0
      %920 = vmatpush2.bf16.msra.mxu0 0
      %921 = vmatprep.subr.bf16.mxu0 0
      %922 = vmatpush2.bf16.msra.mxu0 0
      %923 = vmatprep.subr.bf16.mxu0 0
      %924 = vmatpush2.bf16.msra.mxu0 0
      %925 = vmatprep.subr.bf16.mxu0 0
      %926 = vmatpush2.bf16.msra.mxu0 0
      %927 = vmatprep.subr.bf16.mxu0 0
      %928 = vmatpush2.bf16.msra.mxu0 0
      %929 = vmatprep.subr.bf16.mxu0 0
      %930 = vmatpush2.bf16.msra.mxu0 0
      %931 = vmatprep.mubr.bf16.mxu0 0
      %932 = vmatmul.mubr.bf16.gmra.mxu0 %v602
      %v933 = vpop.f32.mrf.mxu0
      %v934 = vadd.f32 %v789, %v933
      %v935 = vpop.f32.mrf.mxu0
      %v936 = vpop.f32.mrf.mxu0
      %v937 = vadd.f32 %v792, %v936
      %v938 = vpop.f32.mrf.mxu0
      %939 = vmatprep.mubr.bf16.mxu0 0
      %940 = vmatmul.mubr.bf16.gmra.mxu0 %v603
      %v941 = vpop.f32.mrf.mxu0
      %v942 = vadd.f32 %v797, %v941
      %v943 = vpop.f32.mrf.mxu0
      %v944 = vpop.f32.mrf.mxu0
      %v945 = vadd.f32 %v800, %v944
      %v946 = vpop.f32.mrf.mxu0
      %947 = vmatprep.mubr.bf16.mxu0 0
      %948 = vmatmul.mubr.bf16.gmra.mxu0 %v604
      %v949 = vpop.f32.mrf.mxu0
      %v950 = vadd.f32 %v805, %v949
      %v951 = vpop.f32.mrf.mxu0
      %v952 = vpop.f32.mrf.mxu0
      %v953 = vadd.f32 %v808, %v952
      %v954 = vpop.f32.mrf.mxu0
      %955 = vmatprep.mubr.bf16.mxu0 0
      %956 = vmatmul.mubr.bf16.gmra.mxu0 %v605
      %v957 = vpop.f32.mrf.mxu0
      %v958 = vadd.f32 %v813, %v957
      %v959 = vpop.f32.mrf.mxu0
      %v960 = vpop.f32.mrf.mxu0
      %v961 = vadd.f32 %v816, %v960
      %v962 = vpop.f32.mrf.mxu0
      %963 = vmatprep.mubr.bf16.mxu0 0
      %964 = vmatmul.mubr.bf16.gmra.mxu0 %v606
      %v965 = vpop.f32.mrf.mxu0
      %v966 = vadd.f32 %v821, %v965
      %v967 = vpop.f32.mrf.mxu0
      %v968 = vpop.f32.mrf.mxu0
      %v969 = vadd.f32 %v824, %v968
      %v970 = vpop.f32.mrf.mxu0
      %971 = vmatprep.mubr.bf16.mxu0 0
      %972 = vmatmul.mubr.bf16.gmra.mxu0 %v607
      %v973 = vpop.f32.mrf.mxu0
      %v974 = vadd.f32 %v829, %v973
      %v975 = vpop.f32.mrf.mxu0
      %v976 = vpop.f32.mrf.mxu0
      %v977 = vadd.f32 %v832, %v976
      %v978 = vpop.f32.mrf.mxu0
      %979 = vmatprep.mubr.bf16.mxu0 0
      %980 = vmatmul.mubr.bf16.gmra.mxu0 %v608
      %v981 = vpop.f32.mrf.mxu0
      %v982 = vadd.f32 %v837, %v981
      %v983 = vpop.f32.mrf.mxu0
      %v984 = vpop.f32.mrf.mxu0
      %v985 = vadd.f32 %v840, %v984
      %v986 = vpop.f32.mrf.mxu0
      %987 = vmatprep.mubr.bf16.mxu0 0
      %988 = vmatmul.mubr.bf16.gmra.mxu0 %v609
      %v989 = vpop.f32.mrf.mxu0
      %v990 = vadd.f32 %v845, %v989
      %v991 = vpop.f32.mrf.mxu0
      %v992 = vpop.f32.mrf.mxu0
      %v993 = vadd.f32 %v848, %v992
      %v994 = vpop.f32.mrf.mxu0
      %995 = vdwg.mxu0
      %v996 = vld [vmem:[%s5] sm:$0x1]
      %v998 = vlaneseq
      %v999 = vshrl.u32 %v998, 7
      %v1000 = vsub.s32 0, %v999
      %v1001 = vrot.slane %v996, %v1000
      %v1003 = vadd.f32 %v934, %v1001
      %v1004 = vadd.f32 %v937, %v1001
      %v1005 = vadd.f32 %v942, %v1001
      %v1006 = vadd.f32 %v945, %v1001
      %v1007 = vadd.f32 %v950, %v1001
      %v1008 = vadd.f32 %v953, %v1001
      %v1009 = vadd.f32 %v958, %v1001
      %v1010 = vadd.f32 %v961, %v1001
      %v1011 = vadd.f32 %v966, %v1001
      %v1012 = vadd.f32 %v969, %v1001
      %v1013 = vadd.f32 %v974, %v1001
      %v1014 = vadd.f32 %v977, %v1001
      %v1015 = vadd.f32 %v982, %v1001
      %v1016 = vadd.f32 %v985, %v1001
      %v1017 = vadd.f32 %v990, %v1001
      %v1018 = vadd.f32 %v993, %v1001
      %v1019 = vmax.f32 %v1003, 0.0
      %v1020 = vmax.f32 %v1004, 0.0
      %v1021 = vmax.f32 %v1005, 0.0
      %v1022 = vmax.f32 %v1006, 0.0
      %v1023 = vmax.f32 %v1007, 0.0
      %v1024 = vmax.f32 %v1008, 0.0
      %v1025 = vmax.f32 %v1009, 0.0
      %v1026 = vmax.f32 %v1010, 0.0
      %v1027 = vmax.f32 %v1011, 0.0
      %v1028 = vmax.f32 %v1012, 0.0
      %v1029 = vmax.f32 %v1013, 0.0
      %v1030 = vmax.f32 %v1014, 0.0
      %v1031 = vmax.f32 %v1015, 0.0
      %v1032 = vmax.f32 %v1016, 0.0
      %v1033 = vmax.f32 %v1017, 0.0
      %v1034 = vmax.f32 %v1018, 0.0
      %v1035 = vpack.c.bf16 %v1020, %v1019
      %v1036 = vpack.c.bf16 %v1022, %v1021
      %v1037 = vpack.c.bf16 %v1024, %v1023
      %v1038 = vpack.c.bf16 %v1026, %v1025
      %v1039 = vpack.c.bf16 %v1028, %v1027
      %v1040 = vpack.c.bf16 %v1030, %v1029
      %v1041 = vpack.c.bf16 %v1032, %v1031
      %v1042 = vpack.c.bf16 %v1034, %v1033
      %v1051 = vunpack.c.l.b16 %v1035
      %v1052 = vunpack.c.h.b16 %v1035
      %v1053 = vunpack.c.l.b16 %v1036
      %v1054 = vunpack.c.h.b16 %v1036
      %v1055 = vunpack.c.l.b16 %v1037
      %v1056 = vunpack.c.h.b16 %v1037
      %v1057 = vunpack.c.l.b16 %v1038
      %v1058 = vunpack.c.h.b16 %v1038
      %v1059 = vunpack.c.l.b16 %v1039
      %v1060 = vunpack.c.h.b16 %v1039
      %v1061 = vunpack.c.l.b16 %v1040
      %v1062 = vunpack.c.h.b16 %v1040
      %v1063 = vunpack.c.l.b16 %v1041
      %v1064 = vunpack.c.h.b16 %v1041
      %v1065 = vunpack.c.l.b16 %v1042
      %v1066 = vunpack.c.h.b16 %v1042
      %v1067 = vpack.c.b16 %v1051, %v1051
      %v1068 = vpack.c.b16 %v1052, %v1052
      %v1069 = vpack.c.b16 %v1053, %v1053
      %v1070 = vpack.c.b16 %v1054, %v1054
      %v1071 = vpack.c.b16 %v1055, %v1055
      %v1072 = vpack.c.b16 %v1056, %v1056
      %v1073 = vpack.c.b16 %v1057, %v1057
      %v1074 = vpack.c.b16 %v1058, %v1058
      %v1075 = vpack.c.b16 %v1059, %v1059
      %v1076 = vpack.c.b16 %v1060, %v1060
      %v1077 = vpack.c.b16 %v1061, %v1061
      %v1078 = vpack.c.b16 %v1062, %v1062
      %v1079 = vpack.c.b16 %v1063, %v1063
      %v1080 = vpack.c.b16 %v1064, %v1064
      %v1081 = vpack.c.b16 %v1065, %v1065
      %v1082 = vpack.c.b16 %v1066, %v1066
      %1099 = vst [vmem:[%s278] sm:$0xf] %v1067
      %1100 = vst [vmem:[%s278 + $0x4] sm:$0xf] %v1068
      %1101 = vst [vmem:[%s278 + $0x8] sm:$0xf] %v1069
      %1102 = vst [vmem:[%s278 + $0xc] sm:$0xf] %v1070
      %1103 = vst [vmem:[%s278 + $0x10] sm:$0xf] %v1071
      %1104 = vst [vmem:[%s278 + $0x14] sm:$0xf] %v1072
      %1105 = vst [vmem:[%s278 + $0x18] sm:$0xf] %v1073
      %1106 = vst [vmem:[%s278 + $0x1c] sm:$0xf] %v1074
      %1107 = vst [vmem:[%s278 + $0x20] sm:$0xf] %v1075
      %1108 = vst [vmem:[%s278 + $0x24] sm:$0xf] %v1076
      %1109 = vst [vmem:[%s278 + $0x28] sm:$0xf] %v1077
      %1110 = vst [vmem:[%s278 + $0x2c] sm:$0xf] %v1078
      %1111 = vst [vmem:[%s278 + $0x30] sm:$0xf] %v1079
      %1112 = vst [vmem:[%s278 + $0x34] sm:$0xf] %v1080
      %1113 = vst [vmem:[%s278 + $0x38] sm:$0xf] %v1081
      %1114 = vst [vmem:[%s278 + $0x3c] sm:$0xf] %v1082
      %s1115 = smul.u32 16, %s17
      %p1116 = scmp.lt.s32.totalorder %s1115, 31
      %s1117 = scalar_select %p1116, %s1115, 31
      %s1118 = smul.addr %s1117, 4
      %s1119 = scalar_lea.vmem %s6, %s1118
      // Predicated region
      $region45: #{sgvae_forward.3} parent=43 // pred_check
        %p1120 = pneg %p171
      $region46: #{sgvae_forward.3} parent=43 // pred_check_branch
        %1122 = sbr.rel (%p1120) target = $region48
      $region47: #{sgvae_forward.3} parent=43 // pred_region
        %s1123 = smul.u32 16, %s17
      $region48: #{sgvae_forward.3} parent=43 // pred_fallthru
        _
    $region44: #{sgvae_forward.3} parent=5 // pred_fallthru
      _
    %p1124 = scmp.le.s32.totalorder 2, %s12
    // Predicated region
    $region49: #{sgvae_forward.3} parent=5 // pred_check
      %p1125 = pneg %p1124
    $region50: #{sgvae_forward.3} parent=5 // pred_check_branch
      %1127 = sbr.rel (%p1125) target = $region52
    $region51: #{sgvae_forward.3} parent=5 // pred_region
      %s1128 = ssub.s32 %s12, 2
      // Predicated region
      $region53: #{sgvae_forward.3} parent=51 // pred_check
        %p1129 = pneg %p177
      $region54: #{sgvae_forward.3} parent=51 // pred_check_branch
        %1131 = sbr.rel (%p1129) target = $region56
      $region55: #{sgvae_forward.3} parent=51 // pred_region
        %s1132 = smul.u32 16, %s18
        %p1133 = scmp.lt.s32.totalorder %s1132, 31
        %s1134 = scalar_select %p1133, %s1132, 31
        %s1135 = smul.addr %s1134, 4
        %s1136 = scalar_lea.vmem %s6, %s1135
      $region56: #{sgvae_forward.3} parent=51 // pred_fallthru
        _
    $region52: #{sgvae_forward.3} parent=5 // pred_fallthru
      _
  $region6: #{sgvae_forward.3} parent=0 // loop_footer
    %s16 = sadd.s32 1, %s12
  $region7: #{sgvae_forward.3} parent=0 // loop_footer_branch
    %11 = sbr.rel target = $region3
  $region8: #{sgvae_forward.3} parent=0 // loop_exit
    _

// kernel: sgvae_forward.4
$region0: #{sgvae_forward.4}
  #allocation0 [shape = 'u32[]', space=smem, size = 0x4, offset = 0x4, fixed_abs, tag = 'smem constant byte address 0x4 - core index']
  #allocation1 [shape = 'u32[144,128]{1,0:T(1,128)}', space=vmem, size = 0x12000, scoped, tag = 'internal scratch']
  %s0 = inlined_call_operand.vmem [shape: bf16[256,256], index: 0, kind: input, shape index: {}]
  %s1 = inlined_call_operand.vmem [shape: bf16[256,128], index: 1, kind: input, shape index: {}, may-alias: {1,2}]
  %s2 = inlined_call_operand.vmem [shape: bf16[256,128], index: 2, kind: input, shape index: {}, may-alias: {1,2}]
  %s3 = inlined_call_operand.vmem [shape: bf16[128,256], index: 3, kind: input, shape index: {}]
  %s4 = inlined_call_operand.vmem [shape: bf16[128,256], index: 4, kind: input, shape index: {}]
  %s5 = inlined_call_operand.vmem [shape: f32[1,256], index: 5, kind: input, shape index: {}]
  %s6 = inlined_call_operand.vmem [shape: f32[256,128], index: 6, kind: input, shape index: {}]
  %s7 = inlined_call_operand.vmem [shape: f32[256,128], index: 7, kind: output, shape index: {0}]
  %s8 = inlined_call_operand.vmem [shape: f32[256,128], index: 8, kind: output, shape index: {1}]
  %s9 = inlined_call_operand.vmem [shape: f32[256,128], index: 9, kind: output, shape index: {2}]
  %s10 = inlined_call_operand.vmem [shape: bf16[256,128], index: 10, kind: output, shape index: {3}]
  %11 = xla_tuple %s7, %s8, %s9, %s10
  %s12 = sld [smem:[#allocation0]]
  $region85: #{sgvae_forward.4} parent=0
    _
  %s14 = ssub.s32 1, %s12
  %s15 = scalar_select 0, %s14, %s12
  loop: start=0, step=1, limit=4
  $region2: #{sgvae_forward.4} parent=0 // loop_pre_header
    _
  $region3: #{sgvae_forward.4} parent=0 // loop_header
    %s17 = sphi 0, %s21
    %p18 = scmp.ge.s32.totalorder %s17, 4
    %s27 = sphi 0, %s29
    %s30 = sphi 0, %s27
    %s31 = sphi 0, %s30
    %s47 = sphi 0, %s31
    %s51 = sphi 0, %s51
    %s53 = sphi 0, %s51
    %s54 = sphi 0, %s53
    %s68 = sphi 0, %s54
    %s74 = sphi 0, %s76
    %s77 = sphi 0, %s74
    %s78 = sphi 0, %s77
    %s94 = sphi 0, %s78
    %s98 = sphi 0, %s98
    %s100 = sphi 0, %s98
    %s101 = sphi 0, %s100
    %s115 = sphi 0, %s101
    %s119 = sphi 0, %s119
    %s121 = sphi 0, %s119
    %s122 = sphi 0, %s121
    %s136 = sphi 0, %s122
    %s140 = sphi 0, %s140
    %s142 = sphi 0, %s140
    %s143 = sphi 0, %s142
    %s157 = sphi 0, %s143
    %s163 = sphi 0, %s165
    %s166 = sphi 0, %s163
    %s167 = sphi 0, %s166
    %s183 = sphi 0, %s167
    %s189 = sphi 0, %s191
    %s192 = sphi 0, %s189
    %s193 = sphi 0, %s192
    %s209 = sphi 0, %s193
    %s215 = sphi 0, %s217
    %s218 = sphi 0, %s215
    %s219 = sphi 0, %s218
    %s235 = sphi 0, %s219
    %s241 = sphi 0, %s243
    %s244 = sphi 0, %s241
    %s245 = sphi 0, %s244
    %s261 = sphi 0, %s245
    %s267 = sphi 0, %s269
    %s270 = sphi 0, %s267
    %s271 = sphi 0, %s270
    %s287 = sphi 0, %s271
  $region4: #{sgvae_forward.4} parent=0 // loop_header_branch
    %20 = sbr.rel (%p18) target = $region8
  $region5: #{sgvae_forward.4} parent=0 // loop_body
    %s22 = ssub.s32 %s17, 1
    %s23 = ssub.s32 %s17, 2
    %s24 = sadd.s32 %s17, 1
    %s25 = ssub.s32 %s17, %s24
    %p26 = scmp.eq.s32.totalorder %s25, 0
    %s28 = sadd.s32 %s27, 1
    %s29 = scalar_select %p26, %s27, %s28
    %p32 = pneg %p26
    %p33 = scmp.eq.s32.totalorder %s17, 1
    %p34 = por %p32, %p33
    %p35 = scmp.ne.s32.totalorder %s27, %s30
    %p36 = scmp.eq.s32.totalorder %s17, 0
    %p37 = por %p35, %p36
    %p38 = scmp.ne.s32.totalorder %s27, %s30
    %p39 = scmp.eq.s32.totalorder %s22, 1
    %p40 = por %p38, %p39
    %p41 = scmp.ne.s32.totalorder %s30, %s31
    %p42 = scmp.eq.s32.totalorder %s22, 0
    %p43 = por %p41, %p42
    %p44 = scmp.ne.s32.totalorder %s30, %s31
    %p45 = scmp.eq.s32.totalorder %s23, 1
    %p46 = por %p44, %p45
    %p48 = scmp.ne.s32.totalorder %s31, %s47
    %p49 = scmp.eq.s32.totalorder %s23, 0
    %p50 = por %p48, %p49
    %s52 = sadd.s32 %s51, 1
    %p55 = scmp.eq.s32.totalorder %s17, 1
    %p56 = scmp.ne.s32.totalorder %s51, %s53
    %p57 = scmp.eq.s32.totalorder %s17, 0
    %p58 = por %p56, %p57
    %p59 = scmp.ne.s32.totalorder %s51, %s53
    %p60 = scmp.eq.s32.totalorder %s22, 1
    %p61 = por %p59, %p60
    %p62 = scmp.ne.s32.totalorder %s53, %s54
    %p63 = scmp.eq.s32.totalorder %s22, 0
    %p64 = por %p62, %p63
    %p65 = scmp.ne.s32.totalorder %s53, %s54
    %p66 = scmp.eq.s32.totalorder %s23, 1
    %p67 = por %p65, %p66
    %p69 = scmp.ne.s32.totalorder %s54, %s68
    %p70 = scmp.eq.s32.totalorder %s23, 0
    %p71 = por %p69, %p70
    %s72 = ssub.s32 %s17, %s24
    %p73 = scmp.eq.s32.totalorder %s72, 0
    %s75 = sadd.s32 %s74, 1
    %s76 = scalar_select %p73, %s74, %s75
    %p79 = pneg %p73
    %p80 = scmp.eq.s32.totalorder %s17, 1
    %p81 = por %p79, %p80
    %p82 = scmp.ne.s32.totalorder %s74, %s77
    %p83 = scmp.eq.s32.totalorder %s17, 0
    %p84 = por %p82, %p83
    %p85 = scmp.ne.s32.totalorder %s74, %s77
    %p86 = scmp.eq.s32.totalorder %s22, 1
    %p87 = por %p85, %p86
    %p88 = scmp.ne.s32.totalorder %s77, %s78
    %p89 = scmp.eq.s32.totalorder %s22, 0
    %p90 = por %p88, %p89
    %p91 = scmp.ne.s32.totalorder %s77, %s78
    %p92 = scmp.eq.s32.totalorder %s23, 1
    %p93 = por %p91, %p92
    %p95 = scmp.ne.s32.totalorder %s78, %s94
    %p96 = scmp.eq.s32.totalorder %s23, 0
    %p97 = por %p95, %p96
    %s99 = sadd.s32 %s98, 1
    %p102 = scmp.eq.s32.totalorder %s17, 1
    %p103 = scmp.ne.s32.totalorder %s98, %s100
    %p104 = scmp.eq.s32.totalorder %s17, 0
    %p105 = por %p103, %p104
    %p106 = scmp.ne.s32.totalorder %s98, %s100
    %p107 = scmp.eq.s32.totalorder %s22, 1
    %p108 = por %p106, %p107
    %p109 = scmp.ne.s32.totalorder %s100, %s101
    %p110 = scmp.eq.s32.totalorder %s22, 0
    %p111 = por %p109, %p110
    %p112 = scmp.ne.s32.totalorder %s100, %s101
    %p113 = scmp.eq.s32.totalorder %s23, 1
    %p114 = por %p112, %p113
    %p116 = scmp.ne.s32.totalorder %s101, %s115
    %p117 = scmp.eq.s32.totalorder %s23, 0
    %p118 = por %p116, %p117
    %s120 = sadd.s32 %s119, 1
    %p123 = scmp.eq.s32.totalorder %s17, 1
    %p124 = scmp.ne.s32.totalorder %s119, %s121
    %p125 = scmp.eq.s32.totalorder %s17, 0
    %p126 = por %p124, %p125
    %p127 = scmp.ne.s32.totalorder %s119, %s121
    %p128 = scmp.eq.s32.totalorder %s22, 1
    %p129 = por %p127, %p128
    %p130 = scmp.ne.s32.totalorder %s121, %s122
    %p131 = scmp.eq.s32.totalorder %s22, 0
    %p132 = por %p130, %p131
    %p133 = scmp.ne.s32.totalorder %s121, %s122
    %p134 = scmp.eq.s32.totalorder %s23, 1
    %p135 = por %p133, %p134
    %p137 = scmp.ne.s32.totalorder %s122, %s136
    %p138 = scmp.eq.s32.totalorder %s23, 0
    %p139 = por %p137, %p138
    %s141 = sadd.s32 %s140, 1
    %p144 = scmp.eq.s32.totalorder %s17, 1
    %p145 = scmp.ne.s32.totalorder %s140, %s142
    %p146 = scmp.eq.s32.totalorder %s17, 0
    %p147 = por %p145, %p146
    %p148 = scmp.ne.s32.totalorder %s140, %s142
    %p149 = scmp.eq.s32.totalorder %s22, 1
    %p150 = por %p148, %p149
    %p151 = scmp.ne.s32.totalorder %s142, %s143
    %p152 = scmp.eq.s32.totalorder %s22, 0
    %p153 = por %p151, %p152
    %p154 = scmp.ne.s32.totalorder %s142, %s143
    %p155 = scmp.eq.s32.totalorder %s23, 1
    %p156 = por %p154, %p155
    %p158 = scmp.ne.s32.totalorder %s143, %s157
    %p159 = scmp.eq.s32.totalorder %s23, 0
    %p160 = por %p158, %p159
    %s161 = ssub.s32 %s17, %s24
    %p162 = scmp.eq.s32.totalorder %s161, 0
    %s164 = sadd.s32 %s163, 1
    %s165 = scalar_select %p162, %s163, %s164
    %p168 = pneg %p162
    %p169 = scmp.eq.s32.totalorder %s17, 1
    %p170 = por %p168, %p169
    %p171 = scmp.ne.s32.totalorder %s163, %s166
    %p172 = scmp.eq.s32.totalorder %s17, 0
    %p173 = por %p171, %p172
    %p174 = scmp.ne.s32.totalorder %s163, %s166
    %p175 = scmp.eq.s32.totalorder %s22, 1
    %p176 = por %p174, %p175
    %p177 = scmp.ne.s32.totalorder %s166, %s167
    %p178 = scmp.eq.s32.totalorder %s22, 0
    %p179 = por %p177, %p178
    %p180 = scmp.ne.s32.totalorder %s166, %s167
    %p181 = scmp.eq.s32.totalorder %s23, 1
    %p182 = por %p180, %p181
    %p184 = scmp.ne.s32.totalorder %s167, %s183
    %p185 = scmp.eq.s32.totalorder %s23, 0
    %p186 = por %p184, %p185
    %s187 = ssub.s32 %s17, %s24
    %p188 = scmp.eq.s32.totalorder %s187, 0
    %s190 = sadd.s32 %s189, 1
    %s191 = scalar_select %p188, %s189, %s190
    %p194 = pneg %p188
    %p195 = scmp.eq.s32.totalorder %s17, 1
    %p196 = por %p194, %p195
    %p197 = scmp.ne.s32.totalorder %s189, %s192
    %p198 = scmp.eq.s32.totalorder %s17, 0
    %p199 = por %p197, %p198
    %p200 = scmp.ne.s32.totalorder %s189, %s192
    %p201 = scmp.eq.s32.totalorder %s22, 1
    %p202 = por %p200, %p201
    %p203 = scmp.ne.s32.totalorder %s192, %s193
    %p204 = scmp.eq.s32.totalorder %s22, 0
    %p205 = por %p203, %p204
    %p206 = scmp.ne.s32.totalorder %s192, %s193
    %p207 = scmp.eq.s32.totalorder %s23, 1
    %p208 = por %p206, %p207
    %p210 = scmp.ne.s32.totalorder %s193, %s209
    %p211 = scmp.eq.s32.totalorder %s23, 0
    %p212 = por %p210, %p211
    %s213 = ssub.s32 %s17, %s24
    %p214 = scmp.eq.s32.totalorder %s213, 0
    %s216 = sadd.s32 %s215, 1
    %s217 = scalar_select %p214, %s215, %s216
    %p220 = pneg %p214
    %p221 = scmp.eq.s32.totalorder %s17, 1
    %p222 = por %p220, %p221
    %p223 = scmp.ne.s32.totalorder %s215, %s218
    %p224 = scmp.eq.s32.totalorder %s17, 0
    %p225 = por %p223, %p224
    %p226 = scmp.ne.s32.totalorder %s215, %s218
    %p227 = scmp.eq.s32.totalorder %s22, 1
    %p228 = por %p226, %p227
    %p229 = scmp.ne.s32.totalorder %s218, %s219
    %p230 = scmp.eq.s32.totalorder %s22, 0
    %p231 = por %p229, %p230
    %p232 = scmp.ne.s32.totalorder %s218, %s219
    %p233 = scmp.eq.s32.totalorder %s23, 1
    %p234 = por %p232, %p233
    %p236 = scmp.ne.s32.totalorder %s219, %s235
    %p237 = scmp.eq.s32.totalorder %s23, 0
    %p238 = por %p236, %p237
    %s239 = ssub.s32 %s17, %s24
    %p240 = scmp.eq.s32.totalorder %s239, 0
    %s242 = sadd.s32 %s241, 1
    %s243 = scalar_select %p240, %s241, %s242
    %p246 = pneg %p240
    %p247 = scmp.eq.s32.totalorder %s17, 1
    %p248 = por %p246, %p247
    %p249 = scmp.ne.s32.totalorder %s241, %s244
    %p250 = scmp.eq.s32.totalorder %s17, 0
    %p251 = por %p249, %p250
    %p252 = scmp.ne.s32.totalorder %s241, %s244
    %p253 = scmp.eq.s32.totalorder %s22, 1
    %p254 = por %p252, %p253
    %p255 = scmp.ne.s32.totalorder %s244, %s245
    %p256 = scmp.eq.s32.totalorder %s22, 0
    %p257 = por %p255, %p256
    %p258 = scmp.ne.s32.totalorder %s244, %s245
    %p259 = scmp.eq.s32.totalorder %s23, 1
    %p260 = por %p258, %p259
    %p262 = scmp.ne.s32.totalorder %s245, %s261
    %p263 = scmp.eq.s32.totalorder %s23, 0
    %p264 = por %p262, %p263
    %s265 = ssub.s32 %s17, %s24
    %p266 = scmp.eq.s32.totalorder %s265, 0
    %s268 = sadd.s32 %s267, 1
    %s269 = scalar_select %p266, %s267, %s268
    %p272 = pneg %p266
    %p273 = scmp.eq.s32.totalorder %s17, 1
    %p274 = por %p272, %p273
    %p275 = scmp.ne.s32.totalorder %s267, %s270
    %p276 = scmp.eq.s32.totalorder %s17, 0
    %p277 = por %p275, %p276
    %p278 = scmp.ne.s32.totalorder %s267, %s270
    %p279 = scmp.eq.s32.totalorder %s22, 1
    %p280 = por %p278, %p279
    %p281 = scmp.ne.s32.totalorder %s270, %s271
    %p282 = scmp.eq.s32.totalorder %s22, 0
    %p283 = por %p281, %p282
    %p284 = scmp.ne.s32.totalorder %s270, %s271
    %p285 = scmp.eq.s32.totalorder %s23, 1
    %p286 = por %p284, %p285
    %p288 = scmp.ne.s32.totalorder %s271, %s287
    %p289 = scmp.eq.s32.totalorder %s23, 0
    %p290 = por %p288, %p289
    %p291 = scmp.le.s32.totalorder 1, %s17
    %p292 = scmp.lt.s32.totalorder %s17, 3
    %p293 = pnand %p291, %p292
    %p294 = pneg %p293
    // Predicated region
    $region9: #{sgvae_forward.4} parent=5 // pred_check
      _
    $region10: #{sgvae_forward.4} parent=5 // pred_check_branch
      %296 = sbr.rel (%p293) target = $region12
    $region11: #{sgvae_forward.4} parent=5 // pred_region
      %s297 = ssub.s32 %s17, 1
      // Predicated region
      $region13: #{sgvae_forward.4} parent=11 // pred_check
        %p298 = pneg %p64
      $region14: #{sgvae_forward.4} parent=11 // pred_check_branch
        %300 = sbr.rel (%p298) target = $region16
      $region15: #{sgvae_forward.4} parent=11 // pred_region
        _
      $region16: #{sgvae_forward.4} parent=11 // pred_fallthru
        _
      // Predicated region
      $region17: #{sgvae_forward.4} parent=11 // pred_check
        %p301 = pneg %p111
      $region18: #{sgvae_forward.4} parent=11 // pred_check_branch
        %303 = sbr.rel (%p301) target = $region20
      $region19: #{sgvae_forward.4} parent=11 // pred_region
        _
      $region20: #{sgvae_forward.4} parent=11 // pred_fallthru
        _
      // Predicated region
      $region21: #{sgvae_forward.4} parent=11 // pred_check
        %p304 = pneg %p132
      $region22: #{sgvae_forward.4} parent=11 // pred_check_branch
        %306 = sbr.rel (%p304) target = $region24
      $region23: #{sgvae_forward.4} parent=11 // pred_region
        _
      $region24: #{sgvae_forward.4} parent=11 // pred_fallthru
        _
      // Predicated region
      $region25: #{sgvae_forward.4} parent=11 // pred_check
        %p307 = pneg %p153
      $region26: #{sgvae_forward.4} parent=11 // pred_check_branch
        %309 = sbr.rel (%p307) target = $region28
      $region27: #{sgvae_forward.4} parent=11 // pred_region
        _
      $region28: #{sgvae_forward.4} parent=11 // pred_fallthru
        _
    $region12: #{sgvae_forward.4} parent=5 // pred_fallthru
      _
    %p310 = scmp.lt.s32.totalorder %s17, 2
    // Predicated region
    $region29: #{sgvae_forward.4} parent=5 // pred_check
      %p311 = pneg %p310
    $region30: #{sgvae_forward.4} parent=5 // pred_check_branch
      %313 = sbr.rel (%p311) target = $region32
    $region31: #{sgvae_forward.4} parent=5 // pred_region
      // Predicated region
      $region33: #{sgvae_forward.4} parent=31 // pred_check
        %p314 = pneg %p37
      $region34: #{sgvae_forward.4} parent=31 // pred_check_branch
        %316 = sbr.rel (%p314) target = $region36
      $region35: #{sgvae_forward.4} parent=31 // pred_region
        %s317 = smul.u32 16, %s17
        %p318 = scmp.lt.s32.totalorder %s317, 31
        %s319 = scalar_select %p318, %s317, 31
        %s320 = smul.addr %s319, 2
        %s321 = smul.addr %s320, 4
        %s322 = scalar_lea.vmem %s0, %s321
        %s323 = smul.u32 16, %s17
      $region36: #{sgvae_forward.4} parent=31 // pred_fallthru
        _
      // Predicated region
      $region37: #{sgvae_forward.4} parent=31 // pred_check
        %p324 = pneg %p84
      $region38: #{sgvae_forward.4} parent=31 // pred_check_branch
        %326 = sbr.rel (%p324) target = $region40
      $region39: #{sgvae_forward.4} parent=31 // pred_region
        %s327 = smul.u32 16, %s17
        %p328 = scmp.lt.s32.totalorder %s327, 31
        %s329 = scalar_select %p328, %s327, 31
        %s330 = smul.addr %s329, 4
        %s331 = scalar_lea.vmem %s2, %s330
        %s332 = smul.u32 16, %s17
      $region40: #{sgvae_forward.4} parent=31 // pred_fallthru
        _
      // Predicated region
      $region41: #{sgvae_forward.4} parent=31 // pred_check
        %p333 = pneg %p173
      $region42: #{sgvae_forward.4} parent=31 // pred_check_branch
        %335 = sbr.rel (%p333) target = $region44
      $region43: #{sgvae_forward.4} parent=31 // pred_region
        %s336 = smul.u32 16, %s17
        %p337 = scmp.lt.s32.totalorder %s336, 31
        %s338 = scalar_select %p337, %s336, 31
        %s339 = smul.addr %s338, 8
        %s340 = scalar_lea.vmem %s6, %s339
        %s341 = smul.u32 16, %s17
      $region44: #{sgvae_forward.4} parent=31 // pred_fallthru
        _
    $region32: #{sgvae_forward.4} parent=5 // pred_fallthru
      _
    %p342 = scmp.le.s32.totalorder 1, %s17
    %p343 = scmp.lt.s32.totalorder %s17, 3
    %p344 = pnand %p342, %p343
    %p345 = pneg %p344
    // Predicated region
    $region45: #{sgvae_forward.4} parent=5 // pred_check
      _
    $region46: #{sgvae_forward.4} parent=5 // pred_check_branch
      %347 = sbr.rel (%p344) target = $region48
    $region47: #{sgvae_forward.4} parent=5 // pred_region
      %s348 = ssub.s32 %s17, 1
      %s349 = smul.u32 16, %s22
      %p350 = scmp.lt.s32.totalorder %s349, 31
      %s351 = scalar_select %p350, %s349, 31
      %s352 = smul.addr %s351, 2
      %s353 = smul.addr %s352, 4
      %s354 = scalar_lea.vmem %s0, %s353
      %p355 = pneg %p43
      %p356 = pneg %p40
      %p357 = pneg %p64
      %p358 = pneg %p61
      %s359 = smul.u32 16, %s22
      %p360 = scmp.lt.s32.totalorder %s359, 31
      %s361 = scalar_select %p360, %s359, 31
      %s362 = smul.addr %s361, 4
      %s363 = scalar_lea.vmem %s2, %s362
      %p364 = pneg %p90
      %p365 = pneg %p87
      %p366 = pneg %p111
      %p367 = pneg %p108
      %p368 = pneg %p132
      %p369 = pneg %p129
      %p370 = pneg %p153
      %p371 = pneg %p150
      %s372 = smul.u32 16, %s22
      %p373 = scmp.lt.s32.totalorder %s372, 31
      %s374 = scalar_select %p373, %s372, 31
      %s375 = smul.addr %s374, 8
      %s376 = scalar_lea.vmem %s6, %s375
      %p377 = pneg %p179
      %p378 = pneg %p176
      %p379 = pneg %p205
      %p380 = pneg %p202
      %s381 = smul.u32 16, %s22
      %p382 = scmp.lt.s32.totalorder %s381, 31
      %s383 = scalar_select %p382, %s381, 31
      %s384 = smul.addr %s383, 8
      %s385 = scalar_lea.vmem %s7, %s384
      %p386 = pneg %p231
      %p387 = pneg %p228
      %s388 = smul.u32 16, %s22
      %p389 = scmp.lt.s32.totalorder %s388, 31
      %s390 = scalar_select %p389, %s388, 31
      %s391 = smul.addr %s390, 8
      %s392 = scalar_lea.vmem %s8, %s391
      %p393 = pneg %p257
      %p394 = pneg %p254
      %s395 = smul.u32 16, %s22
      %p396 = scmp.lt.s32.totalorder %s395, 31
      %s397 = scalar_select %p396, %s395, 31
      %s398 = smul.addr %s397, 8
      %s399 = scalar_lea.vmem %s9, %s398
      %p400 = pneg %p283
      %p401 = pneg %p280
      %s402 = smul.u32 16, %s22
      %p403 = scmp.lt.s32.totalorder %s402, 31
      %s404 = scalar_select %p403, %s402, 31
      %s405 = smul.addr %s404, 4
      %s406 = scalar_lea.vmem %s10, %s405
      %s407 = smul.u32 16, %s22
      %p408 = scmp.lt.s32.totalorder %s407, 31
      %s409 = scalar_select %p408, %s407, 31
      %s410 = smul.addr %s409, 2
      %s411 = smul.addr %s410, 4
      %s412 = scalar_lea.vmem %s0, %s411
      %s413 = smul.u32 16, %s22
      %s414 = smul.u32 16, %s22
      %p415 = scmp.lt.s32.totalorder %s414, 31
      %s416 = scalar_select %p415, %s414, 31
      %s417 = smul.addr %s416, 4
      %s418 = scalar_lea.vmem %s2, %s417
      %s419 = smul.u32 16, %s22
      %s420 = smul.u32 16, %s22
      %p421 = scmp.lt.s32.totalorder %s420, 31
      %s422 = scalar_select %p421, %s420, 31
      %s423 = smul.addr %s422, 8
      %s424 = scalar_lea.vmem %s6, %s423
      %s425 = smul.u32 16, %s22
      %s426 = smul.u32 16, %s22
      %p427 = scmp.lt.s32.totalorder %s426, 31
      %s428 = scalar_select %p427, %s426, 31
      %s429 = smul.addr %s428, 8
      %s430 = scalar_lea.vmem %s7, %s429
      %s431 = smul.u32 16, %s22
      %s432 = smul.u32 16, %s22
      %p433 = scmp.lt.s32.totalorder %s432, 31
      %s434 = scalar_select %p433, %s432, 31
      %s435 = smul.addr %s434, 8
      %s436 = scalar_lea.vmem %s8, %s435
      %s437 = smul.u32 16, %s22
      %s438 = smul.u32 16, %s22
      %p439 = scmp.lt.s32.totalorder %s438, 31
      %s440 = scalar_select %p439, %s438, 31
      %s441 = smul.addr %s440, 8
      %s442 = scalar_lea.vmem %s9, %s441
      %s443 = smul.u32 16, %s22
      %s444 = smul.u32 16, %s22
      %p445 = scmp.lt.s32.totalorder %s444, 31
      %s446 = scalar_select %p445, %s444, 31
      %s447 = smul.addr %s446, 4
      %s448 = scalar_lea.vmem %s10, %s447
      %s449 = smul.u32 16, %s22
      %v451 = vld [vmem:[%s412] sm:$0xff]
      %v452 = vld [vmem:[%s412 + $0x8] sm:$0xff]
      %v453 = vld [vmem:[%s412 + $0x10] sm:$0xff]
      %v454 = vld [vmem:[%s412 + $0x18] sm:$0xff]
      %v455 = vld [vmem:[%s412 + $0x20] sm:$0xff]
      %v456 = vld [vmem:[%s412 + $0x28] sm:$0xff]
      %v457 = vld [vmem:[%s412 + $0x30] sm:$0xff]
      %v458 = vld [vmem:[%s412 + $0x38] sm:$0xff]
      %v459 = vld [vmem:[%s412 + $0x40] sm:$0xff]
      %v460 = vld [vmem:[%s412 + $0x48] sm:$0xff]
      %v461 = vld [vmem:[%s412 + $0x50] sm:$0xff]
      %v462 = vld [vmem:[%s412 + $0x58] sm:$0xff]
      %v463 = vld [vmem:[%s412 + $0x60] sm:$0xff]
      %v464 = vld [vmem:[%s412 + $0x68] sm:$0xff]
      %v465 = vld [vmem:[%s412 + $0x70] sm:$0xff]
      %v466 = vld [vmem:[%s412 + $0x78] sm:$0xff]
      %v467 = vld [vmem:[%s1] sm:$0xf]
      %v468 = vld [vmem:[%s1 + $0x4] sm:$0xf]
      %v469 = vld [vmem:[%s1 + $0x8] sm:$0xf]
      %v470 = vld [vmem:[%s1 + $0xc] sm:$0xf]
      %v471 = vld [vmem:[%s1 + $0x10] sm:$0xf]
      %v472 = vld [vmem:[%s1 + $0x14] sm:$0xf]
      %v473 = vld [vmem:[%s1 + $0x18] sm:$0xf]
      %v474 = vld [vmem:[%s1 + $0x1c] sm:$0xf]
      %v475 = vld [vmem:[%s1 + $0x20] sm:$0xf]
      %v476 = vld [vmem:[%s1 + $0x24] sm:$0xf]
      %v477 = vld [vmem:[%s1 + $0x28] sm:$0xf]
      %v478 = vld [vmem:[%s1 + $0x2c] sm:$0xf]
      %v479 = vld [vmem:[%s1 + $0x30] sm:$0xf]
      %v480 = vld [vmem:[%s1 + $0x34] sm:$0xf]
      %v481 = vld [vmem:[%s1 + $0x38] sm:$0xf]
      %v482 = vld [vmem:[%s1 + $0x3c] sm:$0xf]
      %v483 = vld [vmem:[%s1 + $0x40] sm:$0xf]
      %v484 = vld [vmem:[%s1 + $0x44] sm:$0xf]
      %v485 = vld [vmem:[%s1 + $0x48] sm:$0xf]
      %v486 = vld [vmem:[%s1 + $0x4c] sm:$0xf]
      %v487 = vld [vmem:[%s1 + $0x50] sm:$0xf]
      %v488 = vld [vmem:[%s1 + $0x54] sm:$0xf]
      %v489 = vld [vmem:[%s1 + $0x58] sm:$0xf]
      %v490 = vld [vmem:[%s1 + $0x5c] sm:$0xf]
      %v491 = vld [vmem:[%s1 + $0x60] sm:$0xf]
      %v492 = vld [vmem:[%s1 + $0x64] sm:$0xf]
      %v493 = vld [vmem:[%s1 + $0x68] sm:$0xf]
      %v494 = vld [vmem:[%s1 + $0x6c] sm:$0xf]
      %v495 = vld [vmem:[%s1 + $0x70] sm:$0xf]
      %v496 = vld [vmem:[%s1 + $0x74] sm:$0xf]
      %v497 = vld [vmem:[%s1 + $0x78] sm:$0xf]
      %v498 = vld [vmem:[%s1 + $0x7c] sm:$0xf]
      %v515 = vunpack.c.l.b16 %v451
      %v516 = vunpack.c.h.b16 %v451
      %v517 = vunpack.c.l.b16 %v452
      %v518 = vunpack.c.h.b16 %v452
      %v519 = vunpack.c.l.b16 %v453
      %v520 = vunpack.c.h.b16 %v453
      %v521 = vunpack.c.l.b16 %v454
      %v522 = vunpack.c.h.b16 %v454
      %v523 = vunpack.c.l.b16 %v455
      %v524 = vunpack.c.h.b16 %v455
      %v525 = vunpack.c.l.b16 %v456
      %v526 = vunpack.c.h.b16 %v456
      %v527 = vunpack.c.l.b16 %v457
      %v528 = vunpack.c.h.b16 %v457
      %v529 = vunpack.c.l.b16 %v458
      %v530 = vunpack.c.h.b16 %v458
      %v531 = vunpack.c.l.b16 %v459
      %v532 = vunpack.c.h.b16 %v459
      %v533 = vunpack.c.l.b16 %v460
      %v534 = vunpack.c.h.b16 %v460
      %v535 = vunpack.c.l.b16 %v461
      %v536 = vunpack.c.h.b16 %v461
      %v537 = vunpack.c.l.b16 %v462
      %v538 = vunpack.c.h.b16 %v462
      %v539 = vunpack.c.l.b16 %v463
      %v540 = vunpack.c.h.b16 %v463
      %v541 = vunpack.c.l.b16 %v464
      %v542 = vunpack.c.h.b16 %v464
      %v543 = vunpack.c.l.b16 %v465
      %v544 = vunpack.c.h.b16 %v465
      %v545 = vunpack.c.l.b16 %v466
      %v546 = vunpack.c.h.b16 %v466
      %v547 = vpack.c.b16 %v517, %v515
      %v548 = vpack.c.b16 %v518, %v516
      %v549 = vpack.c.b16 %v521, %v519
      %v550 = vpack.c.b16 %v522, %v520
      %v551 = vpack.c.b16 %v525, %v523
      %v552 = vpack.c.b16 %v526, %v524
      %v553 = vpack.c.b16 %v529, %v527
      %v554 = vpack.c.b16 %v530, %v528
      %v555 = vpack.c.b16 %v533, %v531
      %v556 = vpack.c.b16 %v534, %v532
      %v557 = vpack.c.b16 %v537, %v535
      %v558 = vpack.c.b16 %v538, %v536
      %v559 = vpack.c.b16 %v541, %v539
      %v560 = vpack.c.b16 %v542, %v540
      %v561 = vpack.c.b16 %v545, %v543
      %v562 = vpack.c.b16 %v546, %v544
      %v611 = vunpack.c.l.b16 %v467
      %v612 = vunpack.c.l.b16 %v468
      %v613 = vunpack.c.l.b16 %v469
      %v614 = vunpack.c.l.b16 %v470
      %v615 = vunpack.c.l.b16 %v471
      %v616 = vunpack.c.l.b16 %v472
      %v617 = vunpack.c.l.b16 %v473
      %v618 = vunpack.c.l.b16 %v474
      %v619 = vunpack.c.l.b16 %v475
      %v620 = vunpack.c.l.b16 %v476
      %v621 = vunpack.c.l.b16 %v477
      %v622 = vunpack.c.l.b16 %v478
      %v623 = vunpack.c.l.b16 %v479
      %v624 = vunpack.c.l.b16 %v480
      %v625 = vunpack.c.l.b16 %v481
      %v626 = vunpack.c.l.b16 %v482
      %v627 = vunpack.c.l.b16 %v483
      %v628 = vunpack.c.l.b16 %v484
      %v629 = vunpack.c.l.b16 %v485
      %v630 = vunpack.c.l.b16 %v486
      %v631 = vunpack.c.l.b16 %v487
      %v632 = vunpack.c.l.b16 %v488
      %v633 = vunpack.c.l.b16 %v489
      %v634 = vunpack.c.l.b16 %v490
      %v635 = vunpack.c.l.b16 %v491
      %v636 = vunpack.c.l.b16 %v492
      %v637 = vunpack.c.l.b16 %v493
      %v638 = vunpack.c.l.b16 %v494
      %v639 = vunpack.c.l.b16 %v495
      %v640 = vunpack.c.l.b16 %v496
      %v641 = vunpack.c.l.b16 %v497
      %v642 = vunpack.c.l.b16 %v498
      %v643 = vpack.c.b16 %v612, %v611
      %v644 = vpack.c.b16 %v614, %v613
      %v645 = vpack.c.b16 %v616, %v615
      %v646 = vpack.c.b16 %v618, %v617
      %v647 = vpack.c.b16 %v620, %v619
      %v648 = vpack.c.b16 %v622, %v621
      %v649 = vpack.c.b16 %v624, %v623
      %v650 = vpack.c.b16 %v626, %v625
      %v651 = vpack.c.b16 %v628, %v627
      %v652 = vpack.c.b16 %v630, %v629
      %v653 = vpack.c.b16 %v632, %v631
      %v654 = vpack.c.b16 %v634, %v633
      %v655 = vpack.c.b16 %v636, %v635
      %v656 = vpack.c.b16 %v638, %v637
      %v657 = vpack.c.b16 %v640, %v639
      %v658 = vpack.c.b16 %v642, %v641
      %675 = vmatprep.subr.bf16.mxu0 0
      %676 = vmatpush1.bf16.msra.mxu0 %v650
      %677 = vmatprep.subr.bf16.mxu0 0
      %678 = vmatpush1.bf16.msra.mxu0 %v649
      %679 = vmatprep.subr.bf16.mxu0 0
      %680 = vmatpush1.bf16.msra.mxu0 %v648
      %681 = vmatprep.subr.bf16.mxu0 0
      %682 = vmatpush1.bf16.msra.mxu0 %v647
      %683 = vmatprep.subr.bf16.mxu0 0
      %684 = vmatpush1.bf16.msra.mxu0 %v646
      %685 = vmatprep.subr.bf16.mxu0 0
      %686 = vmatpush1.bf16.msra.mxu0 %v645
      %687 = vmatprep.subr.bf16.mxu0 0
      %688 = vmatpush1.bf16.msra.mxu0 %v644
      %689 = vmatprep.subr.bf16.mxu0 0
      %690 = vmatpush1.bf16.msra.mxu0 %v643
      %691 = vmatprep.subr.bf16.mxu0 0
      %692 = vmatpush2.bf16.msra.mxu0 %v658
      %693 = vmatprep.subr.bf16.mxu0 0
      %694 = vmatpush2.bf16.msra.mxu0 %v657
      %695 = vmatprep.subr.bf16.mxu0 0
      %696 = vmatpush2.bf16.msra.mxu0 %v656
      %697 = vmatprep.subr.bf16.mxu0 0
      %698 = vmatpush2.bf16.msra.mxu0 %v655
      %699 = vmatprep.subr.bf16.mxu0 0
      %700 = vmatpush2.bf16.msra.mxu0 %v654
      %701 = vmatprep.subr.bf16.mxu0 0
      %702 = vmatpush2.bf16.msra.mxu0 %v653
      %703 = vmatprep.subr.bf16.mxu0 0
      %704 = vmatpush2.bf16.msra.mxu0 %v652
      %705 = vmatprep.subr.bf16.mxu0 0
      %706 = vmatpush2.bf16.msra.mxu0 %v651
      %707 = vmatprep.mubr.bf16.mxu0 %v548
      %708 = vmatmul.mubr.bf16.gmra.mxu0 %v547
      %v709 = vpop.f32.mrf.mxu0
      %v710 = vadd.f32 0.0, %v709
      %v711 = vpop.f32.mrf.mxu0
      %v712 = vpop.f32.mrf.mxu0
      %v713 = vadd.f32 0.0, %v712
      %v714 = vpop.f32.mrf.mxu0
      %715 = vmatprep.mubr.bf16.mxu0 %v550
      %716 = vmatmul.mubr.bf16.gmra.mxu0 %v549
      %v717 = vpop.f32.mrf.mxu0
      %v718 = vadd.f32 0.0, %v717
      %v719 = vpop.f32.mrf.mxu0
      %v720 = vpop.f32.mrf.mxu0
      %v721 = vadd.f32 0.0, %v720
      %v722 = vpop.f32.mrf.mxu0
      %723 = vmatprep.mubr.bf16.mxu0 %v552
      %724 = vmatmul.mubr.bf16.gmra.mxu0 %v551
      %v725 = vpop.f32.mrf.mxu0
      %v726 = vadd.f32 0.0, %v725
      %v727 = vpop.f32.mrf.mxu0
      %v728 = vpop.f32.mrf.mxu0
      %v729 = vadd.f32 0.0, %v728
      %v730 = vpop.f32.mrf.mxu0
      %731 = vmatprep.mubr.bf16.mxu0 %v554
      %732 = vmatmul.mubr.bf16.gmra.mxu0 %v553
      %v733 = vpop.f32.mrf.mxu0
      %v734 = vadd.f32 0.0, %v733
      %v735 = vpop.f32.mrf.mxu0
      %v736 = vpop.f32.mrf.mxu0
      %v737 = vadd.f32 0.0, %v736
      %v738 = vpop.f32.mrf.mxu0
      %739 = vmatprep.mubr.bf16.mxu0 %v556
      %740 = vmatmul.mubr.bf16.gmra.mxu0 %v555
      %v741 = vpop.f32.mrf.mxu0
      %v742 = vadd.f32 0.0, %v741
      %v743 = vpop.f32.mrf.mxu0
      %v744 = vpop.f32.mrf.mxu0
      %v745 = vadd.f32 0.0, %v744
      %v746 = vpop.f32.mrf.mxu0
      %747 = vmatprep.mubr.bf16.mxu0 %v558
      %748 = vmatmul.mubr.bf16.gmra.mxu0 %v557
      %v749 = vpop.f32.mrf.mxu0
      %v750 = vadd.f32 0.0, %v749
      %v751 = vpop.f32.mrf.mxu0
      %v752 = vpop.f32.mrf.mxu0
      %v753 = vadd.f32 0.0, %v752
      %v754 = vpop.f32.mrf.mxu0
      %755 = vmatprep.mubr.bf16.mxu0 %v560
      %756 = vmatmul.mubr.bf16.gmra.mxu0 %v559
      %v757 = vpop.f32.mrf.mxu0
      %v758 = vadd.f32 0.0, %v757
      %v759 = vpop.f32.mrf.mxu0
      %v760 = vpop.f32.mrf.mxu0
      %v761 = vadd.f32 0.0, %v760
      %v762 = vpop.f32.mrf.mxu0
      %763 = vmatprep.mubr.bf16.mxu0 %v562
      %764 = vmatmul.mubr.bf16.gmra.mxu0 %v561
      %v765 = vpop.f32.mrf.mxu0
      %v766 = vadd.f32 0.0, %v765
      %v767 = vpop.f32.mrf.mxu0
      %v768 = vpop.f32.mrf.mxu0
      %v769 = vadd.f32 0.0, %v768
      %v770 = vpop.f32.mrf.mxu0
      %771 = vdwg.mxu0
      %v772 = vpack.c.bf16 %v713, %v710
      %v773 = vpack.c.bf16 %v721, %v718
      %v774 = vpack.c.bf16 %v729, %v726
      %v775 = vpack.c.bf16 %v737, %v734
      %v776 = vpack.c.bf16 %v745, %v742
      %v777 = vpack.c.bf16 %v753, %v750
      %v778 = vpack.c.bf16 %v761, %v758
      %v779 = vpack.c.bf16 %v769, %v766
      %v780 = vld [vmem:[%s3] sm:$0xff]
      %v781 = vld [vmem:[%s3 + $0x8] sm:$0xff]
      %v782 = vld [vmem:[%s3 + $0x10] sm:$0xff]
      %v783 = vld [vmem:[%s3 + $0x18] sm:$0xff]
      %v784 = vld [vmem:[%s3 + $0x20] sm:$0xff]
      %v785 = vld [vmem:[%s3 + $0x28] sm:$0xff]
      %v786 = vld [vmem:[%s3 + $0x30] sm:$0xff]
      %v787 = vld [vmem:[%s3 + $0x38] sm:$0xff]
      %v788 = vld [vmem:[%s3 + $0x40] sm:$0xff]
      %v789 = vld [vmem:[%s3 + $0x48] sm:$0xff]
      %v790 = vld [vmem:[%s3 + $0x50] sm:$0xff]
      %v791 = vld [vmem:[%s3 + $0x58] sm:$0xff]
      %v792 = vld [vmem:[%s3 + $0x60] sm:$0xff]
      %v793 = vld [vmem:[%s3 + $0x68] sm:$0xff]
      %v794 = vld [vmem:[%s3 + $0x70] sm:$0xff]
      %v795 = vld [vmem:[%s3 + $0x78] sm:$0xff]
      %v796 = vld [vmem:[%s418] sm:$0xf]
      %v797 = vld [vmem:[%s418 + $0x4] sm:$0xf]
      %v798 = vld [vmem:[%s418 + $0x8] sm:$0xf]
      %v799 = vld [vmem:[%s418 + $0xc] sm:$0xf]
      %v800 = vld [vmem:[%s418 + $0x10] sm:$0xf]
      %v801 = vld [vmem:[%s418 + $0x14] sm:$0xf]
      %v802 = vld [vmem:[%s418 + $0x18] sm:$0xf]
      %v803 = vld [vmem:[%s418 + $0x1c] sm:$0xf]
      %v804 = vld [vmem:[%s418 + $0x20] sm:$0xf]
      %v805 = vld [vmem:[%s418 + $0x24] sm:$0xf]
      %v806 = vld [vmem:[%s418 + $0x28] sm:$0xf]
      %v807 = vld [vmem:[%s418 + $0x2c] sm:$0xf]
      %v808 = vld [vmem:[%s418 + $0x30] sm:$0xf]
      %v809 = vld [vmem:[%s418 + $0x34] sm:$0xf]
      %v810 = vld [vmem:[%s418 + $0x38] sm:$0xf]
      %v811 = vld [vmem:[%s418 + $0x3c] sm:$0xf]
      %v812 = vld [vmem:[%s4] sm:$0xff]
      %v813 = vld [vmem:[%s4 + $0x8] sm:$0xff]
      %v814 = vld [vmem:[%s4 + $0x10] sm:$0xff]
      %v815 = vld [vmem:[%s4 + $0x18] sm:$0xff]
      %v816 = vld [vmem:[%s4 + $0x20] sm:$0xff]
      %v817 = vld [vmem:[%s4 + $0x28] sm:$0xff]
      %v818 = vld [vmem:[%s4 + $0x30] sm:$0xff]
      %v819 = vld [vmem:[%s4 + $0x38] sm:$0xff]
      %v820 = vld [vmem:[%s4 + $0x40] sm:$0xff]
      %v821 = vld [vmem:[%s4 + $0x48] sm:$0xff]
      %v822 = vld [vmem:[%s4 + $0x50] sm:$0xff]
      %v823 = vld [vmem:[%s4 + $0x58] sm:$0xff]
      %v824 = vld [vmem:[%s4 + $0x60] sm:$0xff]
      %v825 = vld [vmem:[%s4 + $0x68] sm:$0xff]
      %v826 = vld [vmem:[%s4 + $0x70] sm:$0xff]
      %v827 = vld [vmem:[%s4 + $0x78] sm:$0xff]
      %v844 = vunpack.c.l.b16 %v796
      %v845 = vunpack.c.l.b16 %v797
      %v846 = vunpack.c.l.b16 %v798
      %v847 = vunpack.c.l.b16 %v799
      %v848 = vunpack.c.l.b16 %v800
      %v849 = vunpack.c.l.b16 %v801
      %v850 = vunpack.c.l.b16 %v802
      %v851 = vunpack.c.l.b16 %v803
      %v852 = vunpack.c.l.b16 %v804
      %v853 = vunpack.c.l.b16 %v805
      %v854 = vunpack.c.l.b16 %v806
      %v855 = vunpack.c.l.b16 %v807
      %v856 = vunpack.c.l.b16 %v808
      %v857 = vunpack.c.l.b16 %v809
      %v858 = vunpack.c.l.b16 %v810
      %v859 = vunpack.c.l.b16 %v811
      %v860 = vpack.c.b16 %v845, %v844
      %v861 = vpack.c.b16 %v847, %v846
      %v862 = vpack.c.b16 %v849, %v848
      %v863 = vpack.c.b16 %v851, %v850
      %v864 = vpack.c.b16 %v853, %v852
      %v865 = vpack.c.b16 %v855, %v854
      %v866 = vpack.c.b16 %v857, %v856
      %v867 = vpack.c.b16 %v859, %v858
      %v892 = vunpack.c.l.b16 %v812
      %v893 = vunpack.c.h.b16 %v812
      %v894 = vunpack.c.l.b16 %v813
      %v895 = vunpack.c.h.b16 %v813
      %v896 = vunpack.c.l.b16 %v814
      %v897 = vunpack.c.h.b16 %v814
      %v898 = vunpack.c.l.b16 %v815
      %v899 = vunpack.c.h.b16 %v815
      %v900 = vunpack.c.l.b16 %v816
      %v901 = vunpack.c.h.b16 %v816
      %v902 = vunpack.c.l.b16 %v817
      %v903 = vunpack.c.h.b16 %v817
      %v904 = vunpack.c.l.b16 %v818
      %v905 = vunpack.c.h.b16 %v818
      %v906 = vunpack.c.l.b16 %v819
      %v907 = vunpack.c.h.b16 %v819
      %v908 = vunpack.c.l.b16 %v820
      %v909 = vunpack.c.h.b16 %v820
      %v910 = vunpack.c.l.b16 %v821
      %v911 = vunpack.c.h.b16 %v821
      %v912 = vunpack.c.l.b16 %v822
      %v913 = vunpack.c.h.b16 %v822
      %v914 = vunpack.c.l.b16 %v823
      %v915 = vunpack.c.h.b16 %v823
      %v916 = vunpack.c.l.b16 %v824
      %v917 = vunpack.c.h.b16 %v824
      %v918 = vunpack.c.l.b16 %v825
      %v919 = vunpack.c.h.b16 %v825
      %v920 = vunpack.c.l.b16 %v826
      %v921 = vunpack.c.h.b16 %v826
      %v922 = vunpack.c.l.b16 %v827
      %v923 = vunpack.c.h.b16 %v827
      %v924 = vpack.c.b16 %v894, %v892
      %v925 = vpack.c.b16 %v895, %v893
      %v926 = vpack.c.b16 %v898, %v896
      %v927 = vpack.c.b16 %v899, %v897
      %v928 = vpack.c.b16 %v902, %v900
      %v929 = vpack.c.b16 %v903, %v901
      %v930 = vpack.c.b16 %v906, %v904
      %v931 = vpack.c.b16 %v907, %v905
      %v932 = vpack.c.b16 %v910, %v908
      %v933 = vpack.c.b16 %v911, %v909
      %v934 = vpack.c.b16 %v914, %v912
      %v935 = vpack.c.b16 %v915, %v913
      %v936 = vpack.c.b16 %v918, %v916
      %v937 = vpack.c.b16 %v919, %v917
      %v938 = vpack.c.b16 %v922, %v920
      %v939 = vpack.c.b16 %v923, %v921
      %956 = vmatprep.subr.bf16.mxu0 %v939
      %957 = vmatpush1.bf16.msra.mxu0 %v938
      %958 = vmatprep.subr.bf16.mxu0 %v937
      %959 = vmatpush1.bf16.msra.mxu0 %v936
      %960 = vmatprep.subr.bf16.mxu0 %v935
      %961 = vmatpush1.bf16.msra.mxu0 %v934
      %962 = vmatprep.subr.bf16.mxu0 %v933
      %963 = vmatpush1.bf16.msra.mxu0 %v932
      %964 = vmatprep.subr.bf16.mxu0 %v931
      %965 = vmatpush1.bf16.msra.mxu0 %v930
      %966 = vmatprep.subr.bf16.mxu0 %v929
      %967 = vmatpush1.bf16.msra.mxu0 %v928
      %968 = vmatprep.subr.bf16.mxu0 %v927
      %969 = vmatpush1.bf16.msra.mxu0 %v926
      %970 = vmatprep.subr.bf16.mxu0 %v925
      %971 = vmatpush1.bf16.msra.mxu0 %v924
      %972 = vmatprep.subr.bf16.mxu0 0
      %973 = vmatpush2.bf16.msra.mxu0 0
      %974 = vmatprep.subr.bf16.mxu0 0
      %975 = vmatpush2.bf16.msra.mxu0 0
      %976 = vmatprep.subr.bf16.mxu0 0
      %977 = vmatpush2.bf16.msra.mxu0 0
      %978 = vmatprep.subr.bf16.mxu0 0
      %979 = vmatpush2.bf16.msra.mxu0 0
      %980 = vmatprep.subr.bf16.mxu0 0
      %981 = vmatpush2.bf16.msra.mxu0 0
      %982 = vmatprep.subr.bf16.mxu0 0
      %983 = vmatpush2.bf16.msra.mxu0 0
      %984 = vmatprep.subr.bf16.mxu0 0
      %985 = vmatpush2.bf16.msra.mxu0 0
      %986 = vmatprep.subr.bf16.mxu0 0
      %987 = vmatpush2.bf16.msra.mxu0 0
      %988 = vmatprep.mubr.bf16.mxu0 0
      %989 = vmatmul.mubr.bf16.gmra.mxu0 %v860
      %v990 = vpop.f32.mrf.mxu0
      %v991 = vadd.f32 0.0, %v990
      %v992 = vpop.f32.mrf.mxu0
      %v993 = vadd.f32 0.0, %v992
      %v994 = vpop.f32.mrf.mxu0
      %v995 = vadd.f32 0.0, %v994
      %v996 = vpop.f32.mrf.mxu0
      %v997 = vadd.f32 0.0, %v996
      %998 = vmatprep.mubr.bf16.mxu0 0
      %999 = vmatmul.mubr.bf16.gmra.mxu0 %v861
      %v1000 = vpop.f32.mrf.mxu0
      %v1001 = vadd.f32 0.0, %v1000
      %v1002 = vpop.f32.mrf.mxu0
      %v1003 = vadd.f32 0.0, %v1002
      %v1004 = vpop.f32.mrf.mxu0
      %v1005 = vadd.f32 0.0, %v1004
      %v1006 = vpop.f32.mrf.mxu0
      %v1007 = vadd.f32 0.0, %v1006
      %1008 = vmatprep.mubr.bf16.mxu0 0
      %1009 = vmatmul.mubr.bf16.gmra.mxu0 %v862
      %v1010 = vpop.f32.mrf.mxu0
      %v1011 = vadd.f32 0.0, %v1010
      %v1012 = vpop.f32.mrf.mxu0
      %v1013 = vadd.f32 0.0, %v1012
      %v1014 = vpop.f32.mrf.mxu0
      %v1015 = vadd.f32 0.0, %v1014
      %v1016 = vpop.f32.mrf.mxu0
      %v1017 = vadd.f32 0.0, %v1016
      %1018 = vmatprep.mubr.bf16.mxu0 0
      %1019 = vmatmul.mubr.bf16.gmra.mxu0 %v863
      %v1020 = vpop.f32.mrf.mxu0
      %v1021 = vadd.f32 0.0, %v1020
      %v1022 = vpop.f32.mrf.mxu0
      %v1023 = vadd.f32 0.0, %v1022
      %v1024 = vpop.f32.mrf.mxu0
      %v1025 = vadd.f32 0.0, %v1024
      %v1026 = vpop.f32.mrf.mxu0
      %v1027 = vadd.f32 0.0, %v1026
      %1028 = vmatprep.mubr.bf16.mxu0 0
      %1029 = vmatmul.mubr.bf16.gmra.mxu0 %v864
      %v1030 = vpop.f32.mrf.mxu0
      %v1031 = vadd.f32 0.0, %v1030
      %v1032 = vpop.f32.mrf.mxu0
      %v1033 = vadd.f32 0.0, %v1032
      %v1034 = vpop.f32.mrf.mxu0
      %v1035 = vadd.f32 0.0, %v1034
      %v1036 = vpop.f32.mrf.mxu0
      %v1037 = vadd.f32 0.0, %v1036
      %1038 = vmatprep.mubr.bf16.mxu0 0
      %1039 = vmatmul.mubr.bf16.gmra.mxu0 %v865
      %v1040 = vpop.f32.mrf.mxu0
      %v1041 = vadd.f32 0.0, %v1040
      %v1042 = vpop.f32.mrf.mxu0
      %v1043 = vadd.f32 0.0, %v1042
      %v1044 = vpop.f32.mrf.mxu0
      %v1045 = vadd.f32 0.0, %v1044
      %v1046 = vpop.f32.mrf.mxu0
      %v1047 = vadd.f32 0.0, %v1046
      %1048 = vmatprep.mubr.bf16.mxu0 0
      %1049 = vmatmul.mubr.bf16.gmra.mxu0 %v866
      %v1050 = vpop.f32.mrf.mxu0
      %v1051 = vadd.f32 0.0, %v1050
      %v1052 = vpop.f32.mrf.mxu0
      %v1053 = vadd.f32 0.0, %v1052
      %v1054 = vpop.f32.mrf.mxu0
      %v1055 = vadd.f32 0.0, %v1054
      %v1056 = vpop.f32.mrf.mxu0
      %v1057 = vadd.f32 0.0, %v1056
      %1058 = vmatprep.mubr.bf16.mxu0 0
      %1059 = vmatmul.mubr.bf16.gmra.mxu0 %v867
      %v1060 = vpop.f32.mrf.mxu0
      %v1061 = vadd.f32 0.0, %v1060
      %v1062 = vpop.f32.mrf.mxu0
      %v1063 = vadd.f32 0.0, %v1062
      %v1064 = vpop.f32.mrf.mxu0
      %v1065 = vadd.f32 0.0, %v1064
      %v1066 = vpop.f32.mrf.mxu0
      %v1067 = vadd.f32 0.0, %v1066
      %1068 = vdwg.mxu0
      %v1085 = vunpack.c.l.b16 %v780
      %v1086 = vunpack.c.h.b16 %v780
      %v1087 = vunpack.c.l.b16 %v781
      %v1088 = vunpack.c.h.b16 %v781
      %v1089 = vunpack.c.l.b16 %v782
      %v1090 = vunpack.c.h.b16 %v782
      %v1091 = vunpack.c.l.b16 %v783
      %v1092 = vunpack.c.h.b16 %v783
      %v1093 = vunpack.c.l.b16 %v784
      %v1094 = vunpack.c.h.b16 %v784
      %v1095 = vunpack.c.l.b16 %v785
      %v1096 = vunpack.c.h.b16 %v785
      %v1097 = vunpack.c.l.b16 %v786
      %v1098 = vunpack.c.h.b16 %v786
      %v1099 = vunpack.c.l.b16 %v787
      %v1100 = vunpack.c.h.b16 %v787
      %v1101 = vunpack.c.l.b16 %v788
      %v1102 = vunpack.c.h.b16 %v788
      %v1103 = vunpack.c.l.b16 %v789
      %v1104 = vunpack.c.h.b16 %v789
      %v1105 = vunpack.c.l.b16 %v790
      %v1106 = vunpack.c.h.b16 %v790
      %v1107 = vunpack.c.l.b16 %v791
      %v1108 = vunpack.c.h.b16 %v791
      %v1109 = vunpack.c.l.b16 %v792
      %v1110 = vunpack.c.h.b16 %v792
      %v1111 = vunpack.c.l.b16 %v793
      %v1112 = vunpack.c.h.b16 %v793
      %v1113 = vunpack.c.l.b16 %v794
      %v1114 = vunpack.c.h.b16 %v794
      %v1115 = vunpack.c.l.b16 %v795
      %v1116 = vunpack.c.h.b16 %v795
      %v1117 = vpack.c.b16 %v1087, %v1085
      %v1118 = vpack.c.b16 %v1088, %v1086
      %v1119 = vpack.c.b16 %v1091, %v1089
      %v1120 = vpack.c.b16 %v1092, %v1090
      %v1121 = vpack.c.b16 %v1095, %v1093
      %v1122 = vpack.c.b16 %v1096, %v1094
      %v1123 = vpack.c.b16 %v1099, %v1097
      %v1124 = vpack.c.b16 %v1100, %v1098
      %v1125 = vpack.c.b16 %v1103, %v1101
      %v1126 = vpack.c.b16 %v1104, %v1102
      %v1127 = vpack.c.b16 %v1107, %v1105
      %v1128 = vpack.c.b16 %v1108, %v1106
      %v1129 = vpack.c.b16 %v1111, %v1109
      %v1130 = vpack.c.b16 %v1112, %v1110
      %v1131 = vpack.c.b16 %v1115, %v1113
      %v1132 = vpack.c.b16 %v1116, %v1114
      %1149 = vmatprep.subr.bf16.mxu0 %v1132
      %1150 = vmatpush1.bf16.msra.mxu0 %v1131
      %1151 = vmatprep.subr.bf16.mxu0 %v1130
      %1152 = vmatpush1.bf16.msra.mxu0 %v1129
      %1153 = vmatprep.subr.bf16.mxu0 %v1128
      %1154 = vmatpush1.bf16.msra.mxu0 %v1127
      %1155 = vmatprep.subr.bf16.mxu0 %v1126
      %1156 = vmatpush1.bf16.msra.mxu0 %v1125
      %1157 = vmatprep.subr.bf16.mxu0 %v1124
      %1158 = vmatpush1.bf16.msra.mxu0 %v1123
      %1159 = vmatprep.subr.bf16.mxu0 %v1122
      %1160 = vmatpush1.bf16.msra.mxu0 %v1121
      %1161 = vmatprep.subr.bf16.mxu0 %v1120
      %1162 = vmatpush1.bf16.msra.mxu0 %v1119
      %1163 = vmatprep.subr.bf16.mxu0 %v1118
      %1164 = vmatpush1.bf16.msra.mxu0 %v1117
      %1165 = vmatprep.subr.bf16.mxu0 0
      %1166 = vmatpush2.bf16.msra.mxu0 0
      %1167 = vmatprep.subr.bf16.mxu0 0
      %1168 = vmatpush2.bf16.msra.mxu0 0
      %1169 = vmatprep.subr.bf16.mxu0 0
      %1170 = vmatpush2.bf16.msra.mxu0 0
      %1171 = vmatprep.subr.bf16.mxu0 0
      %1172 = vmatpush2.bf16.msra.mxu0 0
      %1173 = vmatprep.subr.bf16.mxu0 0
      %1174 = vmatpush2.bf16.msra.mxu0 0
      %1175 = vmatprep.subr.bf16.mxu0 0
      %1176 = vmatpush2.bf16.msra.mxu0 0
      %1177 = vmatprep.subr.bf16.mxu0 0
      %1178 = vmatpush2.bf16.msra.mxu0 0
      %1179 = vmatprep.subr.bf16.mxu0 0
      %1180 = vmatpush2.bf16.msra.mxu0 0
      %1181 = vmatprep.mubr.bf16.mxu0 0
      %1182 = vmatmul.mubr.bf16.gmra.mxu0 %v772
      %v1183 = vpop.f32.mrf.mxu0
      %v1184 = vadd.f32 %v991, %v1183
      %v1185 = vpop.f32.mrf.mxu0
      %v1186 = vadd.f32 %v993, %v1185
      %v1187 = vpop.f32.mrf.mxu0
      %v1188 = vadd.f32 %v995, %v1187
      %v1189 = vpop.f32.mrf.mxu0
      %v1190 = vadd.f32 %v997, %v1189
      %1191 = vmatprep.mubr.bf16.mxu0 0
      %1192 = vmatmul.mubr.bf16.gmra.mxu0 %v773
      %v1193 = vpop.f32.mrf.mxu0
      %v1194 = vadd.f32 %v1001, %v1193
      %v1195 = vpop.f32.mrf.mxu0
      %v1196 = vadd.f32 %v1003, %v1195
      %v1197 = vpop.f32.mrf.mxu0
      %v1198 = vadd.f32 %v1005, %v1197
      %v1199 = vpop.f32.mrf.mxu0
      %v1200 = vadd.f32 %v1007, %v1199
      %1201 = vmatprep.mubr.bf16.mxu0 0
      %1202 = vmatmul.mubr.bf16.gmra.mxu0 %v774
      %v1203 = vpop.f32.mrf.mxu0
      %v1204 = vadd.f32 %v1011, %v1203
      %v1205 = vpop.f32.mrf.mxu0
      %v1206 = vadd.f32 %v1013, %v1205
      %v1207 = vpop.f32.mrf.mxu0
      %v1208 = vadd.f32 %v1015, %v1207
      %v1209 = vpop.f32.mrf.mxu0
      %v1210 = vadd.f32 %v1017, %v1209
      %1211 = vmatprep.mubr.bf16.mxu0 0
      %1212 = vmatmul.mubr.bf16.gmra.mxu0 %v775
      %v1213 = vpop.f32.mrf.mxu0
      %v1214 = vadd.f32 %v1021, %v1213
      %v1215 = vpop.f32.mrf.mxu0
      %v1216 = vadd.f32 %v1023, %v1215
      %v1217 = vpop.f32.mrf.mxu0
      %v1218 = vadd.f32 %v1025, %v1217
      %v1219 = vpop.f32.mrf.mxu0
      %v1220 = vadd.f32 %v1027, %v1219
      %1221 = vmatprep.mubr.bf16.mxu0 0
      %1222 = vmatmul.mubr.bf16.gmra.mxu0 %v776
      %v1223 = vpop.f32.mrf.mxu0
      %v1224 = vadd.f32 %v1031, %v1223
      %v1225 = vpop.f32.mrf.mxu0
      %v1226 = vadd.f32 %v1033, %v1225
      %v1227 = vpop.f32.mrf.mxu0
      %v1228 = vadd.f32 %v1035, %v1227
      %v1229 = vpop.f32.mrf.mxu0
      %v1230 = vadd.f32 %v1037, %v1229
      %1231 = vmatprep.mubr.bf16.mxu0 0
      %1232 = vmatmul.mubr.bf16.gmra.mxu0 %v777
      %v1233 = vpop.f32.mrf.mxu0
      %v1234 = vadd.f32 %v1041, %v1233
      %v1235 = vpop.f32.mrf.mxu0
      %v1236 = vadd.f32 %v1043, %v1235
      %v1237 = vpop.f32.mrf.mxu0
      %v1238 = vadd.f32 %v1045, %v1237
      %v1239 = vpop.f32.mrf.mxu0
      %v1240 = vadd.f32 %v1047, %v1239
      %1241 = vmatprep.mubr.bf16.mxu0 0
      %1242 = vmatmul.mubr.bf16.gmra.mxu0 %v778
      %v1243 = vpop.f32.mrf.mxu0
      %v1244 = vadd.f32 %v1051, %v1243
      %v1245 = vpop.f32.mrf.mxu0
      %v1246 = vadd.f32 %v1053, %v1245
      %v1247 = vpop.f32.mrf.mxu0
      %v1248 = vadd.f32 %v1055, %v1247
      %v1249 = vpop.f32.mrf.mxu0
      %v1250 = vadd.f32 %v1057, %v1249
      %1251 = vmatprep.mubr.bf16.mxu0 0
      %1252 = vmatmul.mubr.bf16.gmra.mxu0 %v779
      %v1253 = vpop.f32.mrf.mxu0
      %v1254 = vadd.f32 %v1061, %v1253
      %v1255 = vpop.f32.mrf.mxu0
      %v1256 = vadd.f32 %v1063, %v1255
      %v1257 = vpop.f32.mrf.mxu0
      %v1258 = vadd.f32 %v1065, %v1257
      %v1259 = vpop.f32.mrf.mxu0
      %v1260 = vadd.f32 %v1067, %v1259
      %1261 = vdwg.mxu0
      %v1262 = vld [vmem:[%s5] sm:$0x3]
      %v1264 = vlaneseq
      %v1265 = vshrl.u32 %v1264, 7
      %v1266 = vsub.s32 0, %v1265
      %v1267 = vrot.slane %v1262, %v1266
      %v1268 = vlaneseq
      %v1269 = vshrl.u32 %v1268, 7
      %v1270 = vsub.s32 1, %v1269
      %v1271 = vrot.slane %v1262, %v1270
      %v1274 = vadd.f32 %v1184, %v1267
      %v1275 = vadd.f32 %v1186, %v1271
      %v1276 = vadd.f32 %v1188, %v1267
      %v1277 = vadd.f32 %v1190, %v1271
      %v1278 = vadd.f32 %v1194, %v1267
      %v1279 = vadd.f32 %v1196, %v1271
      %v1280 = vadd.f32 %v1198, %v1267
      %v1281 = vadd.f32 %v1200, %v1271
      %v1282 = vadd.f32 %v1204, %v1267
      %v1283 = vadd.f32 %v1206, %v1271
      %v1284 = vadd.f32 %v1208, %v1267
      %v1285 = vadd.f32 %v1210, %v1271
      %v1286 = vadd.f32 %v1214, %v1267
      %v1287 = vadd.f32 %v1216, %v1271
      %v1288 = vadd.f32 %v1218, %v1267
      %v1289 = vadd.f32 %v1220, %v1271
      %v1290 = vadd.f32 %v1224, %v1267
      %v1291 = vadd.f32 %v1226, %v1271
      %v1292 = vadd.f32 %v1228, %v1267
      %v1293 = vadd.f32 %v1230, %v1271
      %v1294 = vadd.f32 %v1234, %v1267
      %v1295 = vadd.f32 %v1236, %v1271
      %v1296 = vadd.f32 %v1238, %v1267
      %v1297 = vadd.f32 %v1240, %v1271
      %v1298 = vadd.f32 %v1244, %v1267
      %v1299 = vadd.f32 %v1246, %v1271
      %v1300 = vadd.f32 %v1248, %v1267
      %v1301 = vadd.f32 %v1250, %v1271
      %v1302 = vadd.f32 %v1254, %v1267
      %v1303 = vadd.f32 %v1256, %v1271
      %v1304 = vadd.f32 %v1258, %v1267
      %v1305 = vadd.f32 %v1260, %v1271
      %v1306 = vld [vmem:[%s424] sm:$0xff]
      %v1307 = vld [vmem:[%s424 + $0x8] sm:$0xff]
      %v1308 = vld [vmem:[%s424 + $0x10] sm:$0xff]
      %v1309 = vld [vmem:[%s424 + $0x18] sm:$0xff]
      %v1310 = vld [vmem:[%s424 + $0x20] sm:$0xff]
      %v1311 = vld [vmem:[%s424 + $0x28] sm:$0xff]
      %v1312 = vld [vmem:[%s424 + $0x30] sm:$0xff]
      %v1313 = vld [vmem:[%s424 + $0x38] sm:$0xff]
      %v1314 = vld [vmem:[%s424 + $0x40] sm:$0xff]
      %v1315 = vld [vmem:[%s424 + $0x48] sm:$0xff]
      %v1316 = vld [vmem:[%s424 + $0x50] sm:$0xff]
      %v1317 = vld [vmem:[%s424 + $0x58] sm:$0xff]
      %v1318 = vld [vmem:[%s424 + $0x60] sm:$0xff]
      %v1319 = vld [vmem:[%s424 + $0x68] sm:$0xff]
      %v1320 = vld [vmem:[%s424 + $0x70] sm:$0xff]
      %v1321 = vld [vmem:[%s424 + $0x78] sm:$0xff]
      %v1322 = vmul.f32 %v1275, 0.5
      %v1323 = vmul.f32 %v1277, 0.5
      %v1324 = vmul.f32 %v1279, 0.5
      %v1325 = vmul.f32 %v1281, 0.5
      %v1326 = vmul.f32 %v1283, 0.5
      %v1327 = vmul.f32 %v1285, 0.5
      %v1328 = vmul.f32 %v1287, 0.5
      %v1329 = vmul.f32 %v1289, 0.5
      %v1330 = vmul.f32 %v1291, 0.5
      %v1331 = vmul.f32 %v1293, 0.5
      %v1332 = vmul.f32 %v1295, 0.5
      %v1333 = vmul.f32 %v1297, 0.5
      %v1334 = vmul.f32 %v1299, 0.5
      %v1335 = vmul.f32 %v1301, 0.5
      %v1336 = vmul.f32 %v1303, 0.5
      %v1337 = vmul.f32 %v1305, 0.5
      %v1338 = vmul.f32 %v1322, 1.442695
      %v1339 = vpow.pop %v1338
      %v1340 = vmul.f32 %v1323, 1.442695
      %v1341 = vpow.pop %v1340
      %v1342 = vmul.f32 %v1324, 1.442695
      %v1343 = vpow.pop %v1342
      %v1344 = vmul.f32 %v1325, 1.442695
      %v1345 = vpow.pop %v1344
      %v1346 = vmul.f32 %v1326, 1.442695
      %v1347 = vpow.pop %v1346
      %v1348 = vmul.f32 %v1327, 1.442695
      %v1349 = vpow.pop %v1348
      %v1350 = vmul.f32 %v1328, 1.442695
      %v1351 = vpow.pop %v1350
      %v1352 = vmul.f32 %v1329, 1.442695
      %v1353 = vpow.pop %v1352
      %v1354 = vmul.f32 %v1330, 1.442695
      %v1355 = vpow.pop %v1354
      %v1356 = vmul.f32 %v1331, 1.442695
      %v1357 = vpow.pop %v1356
      %v1358 = vmul.f32 %v1332, 1.442695
      %v1359 = vpow.pop %v1358
      %v1360 = vmul.f32 %v1333, 1.442695
      %v1361 = vpow.pop %v1360
      %v1362 = vmul.f32 %v1334, 1.442695
      %v1363 = vpow.pop %v1362
      %v1364 = vmul.f32 %v1335, 1.442695
      %v1365 = vpow.pop %v1364
      %v1366 = vmul.f32 %v1336, 1.442695
      %v1367 = vpow.pop %v1366
      %v1368 = vmul.f32 %v1337, 1.442695
      %v1369 = vpow.pop %v1368
      %v1370 = vmul.f32 %v1306, %v1339
      %v1371 = vmul.f32 %v1307, %v1341
      %v1372 = vmul.f32 %v1308, %v1343
      %v1373 = vmul.f32 %v1309, %v1345
      %v1374 = vmul.f32 %v1310, %v1347
      %v1375 = vmul.f32 %v1311, %v1349
      %v1376 = vmul.f32 %v1312, %v1351
      %v1377 = vmul.f32 %v1313, %v1353
      %v1378 = vmul.f32 %v1314, %v1355
      %v1379 = vmul.f32 %v1315, %v1357
      %v1380 = vmul.f32 %v1316, %v1359
      %v1381 = vmul.f32 %v1317, %v1361
      %v1382 = vmul.f32 %v1318, %v1363
      %v1383 = vmul.f32 %v1319, %v1365
      %v1384 = vmul.f32 %v1320, %v1367
      %v1385 = vmul.f32 %v1321, %v1369
      %v1386 = vadd.f32 %v1274, %v1370
      %v1387 = vadd.f32 %v1276, %v1371
      %v1388 = vadd.f32 %v1278, %v1372
      %v1389 = vadd.f32 %v1280, %v1373
      %v1390 = vadd.f32 %v1282, %v1374
      %v1391 = vadd.f32 %v1284, %v1375
      %v1392 = vadd.f32 %v1286, %v1376
      %v1393 = vadd.f32 %v1288, %v1377
      %v1394 = vadd.f32 %v1290, %v1378
      %v1395 = vadd.f32 %v1292, %v1379
      %v1396 = vadd.f32 %v1294, %v1380
      %v1397 = vadd.f32 %v1296, %v1381
      %v1398 = vadd.f32 %v1298, %v1382
      %v1399 = vadd.f32 %v1300, %v1383
      %v1400 = vadd.f32 %v1302, %v1384
      %v1401 = vadd.f32 %v1304, %v1385
      %1402 = vst [vmem:[%s430] sm:$0xff] %v1274
      %1403 = vst [vmem:[%s430 + $0x8] sm:$0xff] %v1276
      %1404 = vst [vmem:[%s430 + $0x10] sm:$0xff] %v1278
      %1405 = vst [vmem:[%s430 + $0x18] sm:$0xff] %v1280
      %1406 = vst [vmem:[%s430 + $0x20] sm:$0xff] %v1282
      %1407 = vst [vmem:[%s430 + $0x28] sm:$0xff] %v1284
      %1408 = vst [vmem:[%s430 + $0x30] sm:$0xff] %v1286
      %1409 = vst [vmem:[%s430 + $0x38] sm:$0xff] %v1288
      %1410 = vst [vmem:[%s430 + $0x40] sm:$0xff] %v1290
      %1411 = vst [vmem:[%s430 + $0x48] sm:$0xff] %v1292
      %1412 = vst [vmem:[%s430 + $0x50] sm:$0xff] %v1294
      %1413 = vst [vmem:[%s430 + $0x58] sm:$0xff] %v1296
      %1414 = vst [vmem:[%s430 + $0x60] sm:$0xff] %v1298
      %1415 = vst [vmem:[%s430 + $0x68] sm:$0xff] %v1300
      %1416 = vst [vmem:[%s430 + $0x70] sm:$0xff] %v1302
      %1417 = vst [vmem:[%s430 + $0x78] sm:$0xff] %v1304
      %1418 = vst [vmem:[%s436] sm:$0xff] %v1275
      %1419 = vst [vmem:[%s436 + $0x8] sm:$0xff] %v1277
      %1420 = vst [vmem:[%s436 + $0x10] sm:$0xff] %v1279
      %1421 = vst [vmem:[%s436 + $0x18] sm:$0xff] %v1281
      %1422 = vst [vmem:[%s436 + $0x20] sm:$0xff] %v1283
      %1423 = vst [vmem:[%s436 + $0x28] sm:$0xff] %v1285
      %1424 = vst [vmem:[%s436 + $0x30] sm:$0xff] %v1287
      %1425 = vst [vmem:[%s436 + $0x38] sm:$0xff] %v1289
      %1426 = vst [vmem:[%s436 + $0x40] sm:$0xff] %v1291
      %1427 = vst [vmem:[%s436 + $0x48] sm:$0xff] %v1293
      %1428 = vst [vmem:[%s436 + $0x50] sm:$0xff] %v1295
      %1429 = vst [vmem:[%s436 + $0x58] sm:$0xff] %v1297
      %1430 = vst [vmem:[%s436 + $0x60] sm:$0xff] %v1299
      %1431 = vst [vmem:[%s436 + $0x68] sm:$0xff] %v1301
      %1432 = vst [vmem:[%s436 + $0x70] sm:$0xff] %v1303
      %1433 = vst [vmem:[%s436 + $0x78] sm:$0xff] %v1305
      %1434 = vst [vmem:[%s442] sm:$0xff] %v1386
      %1435 = vst [vmem:[%s442 + $0x8] sm:$0xff] %v1387
      %1436 = vst [vmem:[%s442 + $0x10] sm:$0xff] %v1388
      %1437 = vst [vmem:[%s442 + $0x18] sm:$0xff] %v1389
      %1438 = vst [vmem:[%s442 + $0x20] sm:$0xff] %v1390
      %1439 = vst [vmem:[%s442 + $0x28] sm:$0xff] %v1391
      %1440 = vst [vmem:[%s442 + $0x30] sm:$0xff] %v1392
      %1441 = vst [vmem:[%s442 + $0x38] sm:$0xff] %v1393
      %1442 = vst [vmem:[%s442 + $0x40] sm:$0xff] %v1394
      %1443 = vst [vmem:[%s442 + $0x48] sm:$0xff] %v1395
      %1444 = vst [vmem:[%s442 + $0x50] sm:$0xff] %v1396
      %1445 = vst [vmem:[%s442 + $0x58] sm:$0xff] %v1397
      %1446 = vst [vmem:[%s442 + $0x60] sm:$0xff] %v1398
      %1447 = vst [vmem:[%s442 + $0x68] sm:$0xff] %v1399
      %1448 = vst [vmem:[%s442 + $0x70] sm:$0xff] %v1400
      %1449 = vst [vmem:[%s442 + $0x78] sm:$0xff] %v1401
      %v1450 = vmul.f32 %v1386, %v1386
      %v1451 = vmul.f32 %v1387, %v1387
      %v1452 = vmul.f32 %v1388, %v1388
      %v1453 = vmul.f32 %v1389, %v1389
      %v1454 = vmul.f32 %v1390, %v1390
      %v1455 = vmul.f32 %v1391, %v1391
      %v1456 = vmul.f32 %v1392, %v1392
      %v1457 = vmul.f32 %v1393, %v1393
      %v1458 = vmul.f32 %v1394, %v1394
      %v1459 = vmul.f32 %v1395, %v1395
      %v1460 = vmul.f32 %v1396, %v1396
      %v1461 = vmul.f32 %v1397, %v1397
      %v1462 = vmul.f32 %v1398, %v1398
      %v1463 = vmul.f32 %v1399, %v1399
      %v1464 = vmul.f32 %v1400, %v1400
      %v1465 = vmul.f32 %v1401, %v1401
      %1466 = vadd.xlane.f32.xlu0 %v1450
      %v1467 = vpop.xlane.xlu0 %1466
      %1468 = vadd.xlane.f32.xlu0 %v1451
      %v1469 = vpop.xlane.xlu0 %1468
      %1470 = vadd.xlane.f32.xlu0 %v1452
      %v1471 = vpop.xlane.xlu0 %1470
      %1472 = vadd.xlane.f32.xlu0 %v1453
      %v1473 = vpop.xlane.xlu0 %1472
      %1474 = vadd.xlane.f32.xlu0 %v1454
      %v1475 = vpop.xlane.xlu0 %1474
      %1476 = vadd.xlane.f32.xlu0 %v1455
      %v1477 = vpop.xlane.xlu0 %1476
      %1478 = vadd.xlane.f32.xlu0 %v1456
      %v1479 = vpop.xlane.xlu0 %1478
      %1480 = vadd.xlane.f32.xlu0 %v1457
      %v1481 = vpop.xlane.xlu0 %1480
      %1482 = vadd.xlane.f32.xlu0 %v1458
      %v1483 = vpop.xlane.xlu0 %1482
      %1484 = vadd.xlane.f32.xlu0 %v1459
      %v1485 = vpop.xlane.xlu0 %1484
      %1486 = vadd.xlane.f32.xlu0 %v1460
      %v1487 = vpop.xlane.xlu0 %1486
      %1488 = vadd.xlane.f32.xlu0 %v1461
      %v1489 = vpop.xlane.xlu0 %1488
      %1490 = vadd.xlane.f32.xlu0 %v1462
      %v1491 = vpop.xlane.xlu0 %1490
      %1492 = vadd.xlane.f32.xlu0 %v1463
      %v1493 = vpop.xlane.xlu0 %1492
      %1494 = vadd.xlane.f32.xlu0 %v1464
      %v1495 = vpop.xlane.xlu0 %1494
      %1496 = vadd.xlane.f32.xlu0 %v1465
      %v1497 = vpop.xlane.xlu0 %1496
      %v1498 = vrsqrt.pop %v1467
      %v1499 = vmul.f32 %v1467, %v1498
      %vm1500 = vcmp.eq.f32.partialorder %v1467, inf
      %v1501 = vsel %vm1500, %v1467, %v1499
      %vm1502 = vcmp.eq.f32.partialorder %v1467, 0.0
      %v1503 = vand.u32 %v1467, 2147483648
      %v1504 = vsel %vm1502, %v1503, %v1501
      %v1505 = vrsqrt.pop %v1469
      %v1506 = vmul.f32 %v1469, %v1505
      %vm1507 = vcmp.eq.f32.partialorder %v1469, inf
      %v1508 = vsel %vm1507, %v1469, %v1506
      %vm1509 = vcmp.eq.f32.partialorder %v1469, 0.0
      %v1510 = vand.u32 %v1469, 2147483648
      %v1511 = vsel %vm1509, %v1510, %v1508
      %v1512 = vrsqrt.pop %v1471
      %v1513 = vmul.f32 %v1471, %v1512
      %vm1514 = vcmp.eq.f32.partialorder %v1471, inf
      %v1515 = vsel %vm1514, %v1471, %v1513
      %vm1516 = vcmp.eq.f32.partialorder %v1471, 0.0
      %v1517 = vand.u32 %v1471, 2147483648
      %v1518 = vsel %vm1516, %v1517, %v1515
      %v1519 = vrsqrt.pop %v1473
      %v1520 = vmul.f32 %v1473, %v1519
      %vm1521 = vcmp.eq.f32.partialorder %v1473, inf
      %v1522 = vsel %vm1521, %v1473, %v1520
      %vm1523 = vcmp.eq.f32.partialorder %v1473, 0.0
      %v1524 = vand.u32 %v1473, 2147483648
      %v1525 = vsel %vm1523, %v1524, %v1522
      %v1526 = vrsqrt.pop %v1475
      %v1527 = vmul.f32 %v1475, %v1526
      %vm1528 = vcmp.eq.f32.partialorder %v1475, inf
      %v1529 = vsel %vm1528, %v1475, %v1527
      %vm1530 = vcmp.eq.f32.partialorder %v1475, 0.0
      %v1531 = vand.u32 %v1475, 2147483648
      %v1532 = vsel %vm1530, %v1531, %v1529
      %v1533 = vrsqrt.pop %v1477
      %v1534 = vmul.f32 %v1477, %v1533
      %vm1535 = vcmp.eq.f32.partialorder %v1477, inf
      %v1536 = vsel %vm1535, %v1477, %v1534
      %vm1537 = vcmp.eq.f32.partialorder %v1477, 0.0
      %v1538 = vand.u32 %v1477, 2147483648
      %v1539 = vsel %vm1537, %v1538, %v1536
      %v1540 = vrsqrt.pop %v1479
      %v1541 = vmul.f32 %v1479, %v1540
      %vm1542 = vcmp.eq.f32.partialorder %v1479, inf
      %v1543 = vsel %vm1542, %v1479, %v1541
      %vm1544 = vcmp.eq.f32.partialorder %v1479, 0.0
      %v1545 = vand.u32 %v1479, 2147483648
      %v1546 = vsel %vm1544, %v1545, %v1543
      %v1547 = vrsqrt.pop %v1481
      %v1548 = vmul.f32 %v1481, %v1547
      %vm1549 = vcmp.eq.f32.partialorder %v1481, inf
      %v1550 = vsel %vm1549, %v1481, %v1548
      %vm1551 = vcmp.eq.f32.partialorder %v1481, 0.0
      %v1552 = vand.u32 %v1481, 2147483648
      %v1553 = vsel %vm1551, %v1552, %v1550
      %v1554 = vrsqrt.pop %v1483
      %v1555 = vmul.f32 %v1483, %v1554
      %vm1556 = vcmp.eq.f32.partialorder %v1483, inf
      %v1557 = vsel %vm1556, %v1483, %v1555
      %vm1558 = vcmp.eq.f32.partialorder %v1483, 0.0
      %v1559 = vand.u32 %v1483, 2147483648
      %v1560 = vsel %vm1558, %v1559, %v1557
      %v1561 = vrsqrt.pop %v1485
      %v1562 = vmul.f32 %v1485, %v1561
      %vm1563 = vcmp.eq.f32.partialorder %v1485, inf
      %v1564 = vsel %vm1563, %v1485, %v1562
      %vm1565 = vcmp.eq.f32.partialorder %v1485, 0.0
      %v1566 = vand.u32 %v1485, 2147483648
      %v1567 = vsel %vm1565, %v1566, %v1564
      %v1568 = vrsqrt.pop %v1487
      %v1569 = vmul.f32 %v1487, %v1568
      %vm1570 = vcmp.eq.f32.partialorder %v1487, inf
      %v1571 = vsel %vm1570, %v1487, %v1569
      %vm1572 = vcmp.eq.f32.partialorder %v1487, 0.0
      %v1573 = vand.u32 %v1487, 2147483648
      %v1574 = vsel %vm1572, %v1573, %v1571
      %v1575 = vrsqrt.pop %v1489
      %v1576 = vmul.f32 %v1489, %v1575
      %vm1577 = vcmp.eq.f32.partialorder %v1489, inf
      %v1578 = vsel %vm1577, %v1489, %v1576
      %vm1579 = vcmp.eq.f32.partialorder %v1489, 0.0
      %v1580 = vand.u32 %v1489, 2147483648
      %v1581 = vsel %vm1579, %v1580, %v1578
      %v1582 = vrsqrt.pop %v1491
      %v1583 = vmul.f32 %v1491, %v1582
      %vm1584 = vcmp.eq.f32.partialorder %v1491, inf
      %v1585 = vsel %vm1584, %v1491, %v1583
      %vm1586 = vcmp.eq.f32.partialorder %v1491, 0.0
      %v1587 = vand.u32 %v1491, 2147483648
      %v1588 = vsel %vm1586, %v1587, %v1585
      %v1589 = vrsqrt.pop %v1493
      %v1590 = vmul.f32 %v1493, %v1589
      %vm1591 = vcmp.eq.f32.partialorder %v1493, inf
      %v1592 = vsel %vm1591, %v1493, %v1590
      %vm1593 = vcmp.eq.f32.partialorder %v1493, 0.0
      %v1594 = vand.u32 %v1493, 2147483648
      %v1595 = vsel %vm1593, %v1594, %v1592
      %v1596 = vrsqrt.pop %v1495
      %v1597 = vmul.f32 %v1495, %v1596
      %vm1598 = vcmp.eq.f32.partialorder %v1495, inf
      %v1599 = vsel %vm1598, %v1495, %v1597
      %vm1600 = vcmp.eq.f32.partialorder %v1495, 0.0
      %v1601 = vand.u32 %v1495, 2147483648
      %v1602 = vsel %vm1600, %v1601, %v1599
      %v1603 = vrsqrt.pop %v1497
      %v1604 = vmul.f32 %v1497, %v1603
      %vm1605 = vcmp.eq.f32.partialorder %v1497, inf
      %v1606 = vsel %vm1605, %v1497, %v1604
      %vm1607 = vcmp.eq.f32.partialorder %v1497, 0.0
      %v1608 = vand.u32 %v1497, 2147483648
      %v1609 = vsel %vm1607, %v1608, %v1606
      %v1610 = vadd.f32 %v1504, 1e-08
      %v1611 = vadd.f32 %v1511, 1e-08
      %v1612 = vadd.f32 %v1518, 1e-08
      %v1613 = vadd.f32 %v1525, 1e-08
      %v1614 = vadd.f32 %v1532, 1e-08
      %v1615 = vadd.f32 %v1539, 1e-08
      %v1616 = vadd.f32 %v1546, 1e-08
      %v1617 = vadd.f32 %v1553, 1e-08
      %v1618 = vadd.f32 %v1560, 1e-08
      %v1619 = vadd.f32 %v1567, 1e-08
      %v1620 = vadd.f32 %v1574, 1e-08
      %v1621 = vadd.f32 %v1581, 1e-08
      %v1622 = vadd.f32 %v1588, 1e-08
      %v1623 = vadd.f32 %v1595, 1e-08
      %v1624 = vadd.f32 %v1602, 1e-08
      %v1625 = vadd.f32 %v1609, 1e-08
      %v1626 = vrcp.pop %v1610
      %v1627 = vrcp.pop %v1611
      %v1628 = vrcp.pop %v1612
      %v1629 = vrcp.pop %v1613
      %v1630 = vrcp.pop %v1614
      %v1631 = vrcp.pop %v1615
      %v1632 = vrcp.pop %v1616
      %v1633 = vrcp.pop %v1617
      %v1634 = vrcp.pop %v1618
      %v1635 = vrcp.pop %v1619
      %v1636 = vrcp.pop %v1620
      %v1637 = vrcp.pop %v1621
      %v1638 = vrcp.pop %v1622
      %v1639 = vrcp.pop %v1623
      %v1640 = vrcp.pop %v1624
      %v1641 = vrcp.pop %v1625
      %v1642 = vmul.f32 %v1386, %v1626
      %v1643 = vmul.f32 %v1387, %v1627
      %v1644 = vmul.f32 %v1388, %v1628
      %v1645 = vmul.f32 %v1389, %v1629
      %v1646 = vmul.f32 %v1390, %v1630
      %v1647 = vmul.f32 %v1391, %v1631
      %v1648 = vmul.f32 %v1392, %v1632
      %v1649 = vmul.f32 %v1393, %v1633
      %v1650 = vmul.f32 %v1394, %v1634
      %v1651 = vmul.f32 %v1395, %v1635
      %v1652 = vmul.f32 %v1396, %v1636
      %v1653 = vmul.f32 %v1397, %v1637
      %v1654 = vmul.f32 %v1398, %v1638
      %v1655 = vmul.f32 %v1399, %v1639
      %v1656 = vmul.f32 %v1400, %v1640
      %v1657 = vmul.f32 %v1401, %v1641
      %v1658 = vpack.c.bf16 %v1643, %v1642
      %v1659 = vpack.c.bf16 %v1645, %v1644
      %v1660 = vpack.c.bf16 %v1647, %v1646
      %v1661 = vpack.c.bf16 %v1649, %v1648
      %v1662 = vpack.c.bf16 %v1651, %v1650
      %v1663 = vpack.c.bf16 %v1653, %v1652
      %v1664 = vpack.c.bf16 %v1655, %v1654
      %v1665 = vpack.c.bf16 %v1657, %v1656
      %v1674 = vunpack.c.l.b16 %v1658
      %v1675 = vunpack.c.h.b16 %v1658
      %v1676 = vunpack.c.l.b16 %v1659
      %v1677 = vunpack.c.h.b16 %v1659
      %v1678 = vunpack.c.l.b16 %v1660
      %v1679 = vunpack.c.h.b16 %v1660
      %v1680 = vunpack.c.l.b16 %v1661
      %v1681 = vunpack.c.h.b16 %v1661
      %v1682 = vunpack.c.l.b16 %v1662
      %v1683 = vunpack.c.h.b16 %v1662
      %v1684 = vunpack.c.l.b16 %v1663
      %v1685 = vunpack.c.h.b16 %v1663
      %v1686 = vunpack.c.l.b16 %v1664
      %v1687 = vunpack.c.h.b16 %v1664
      %v1688 = vunpack.c.l.b16 %v1665
      %v1689 = vunpack.c.h.b16 %v1665
      %v1690 = vpack.c.b16 %v1674, %v1674
      %v1691 = vpack.c.b16 %v1675, %v1675
      %v1692 = vpack.c.b16 %v1676, %v1676
      %v1693 = vpack.c.b16 %v1677, %v1677
      %v1694 = vpack.c.b16 %v1678, %v1678
      %v1695 = vpack.c.b16 %v1679, %v1679
      %v1696 = vpack.c.b16 %v1680, %v1680
      %v1697 = vpack.c.b16 %v1681, %v1681
      %v1698 = vpack.c.b16 %v1682, %v1682
      %v1699 = vpack.c.b16 %v1683, %v1683
      %v1700 = vpack.c.b16 %v1684, %v1684
      %v1701 = vpack.c.b16 %v1685, %v1685
      %v1702 = vpack.c.b16 %v1686, %v1686
      %v1703 = vpack.c.b16 %v1687, %v1687
      %v1704 = vpack.c.b16 %v1688, %v1688
      %v1705 = vpack.c.b16 %v1689, %v1689
      %1722 = vst [vmem:[%s448] sm:$0xf] %v1690
      %1723 = vst [vmem:[%s448 + $0x4] sm:$0xf] %v1691
      %1724 = vst [vmem:[%s448 + $0x8] sm:$0xf] %v1692
      %1725 = vst [vmem:[%s448 + $0xc] sm:$0xf] %v1693
      %1726 = vst [vmem:[%s448 + $0x10] sm:$0xf] %v1694
      %1727 = vst [vmem:[%s448 + $0x14] sm:$0xf] %v1695
      %1728 = vst [vmem:[%s448 + $0x18] sm:$0xf] %v1696
      %1729 = vst [vmem:[%s448 + $0x1c] sm:$0xf] %v1697
      %1730 = vst [vmem:[%s448 + $0x20] sm:$0xf] %v1698
      %1731 = vst [vmem:[%s448 + $0x24] sm:$0xf] %v1699
      %1732 = vst [vmem:[%s448 + $0x28] sm:$0xf] %v1700
      %1733 = vst [vmem:[%s448 + $0x2c] sm:$0xf] %v1701
      %1734 = vst [vmem:[%s448 + $0x30] sm:$0xf] %v1702
      %1735 = vst [vmem:[%s448 + $0x34] sm:$0xf] %v1703
      %1736 = vst [vmem:[%s448 + $0x38] sm:$0xf] %v1704
      %1737 = vst [vmem:[%s448 + $0x3c] sm:$0xf] %v1705
      %s1738 = smul.u32 16, %s22
      %p1739 = scmp.lt.s32.totalorder %s1738, 31
      %s1740 = scalar_select %p1739, %s1738, 31
      %s1741 = smul.addr %s1740, 8
      %s1742 = scalar_lea.vmem %s7, %s1741
      %s1743 = smul.u32 16, %s22
      %p1744 = scmp.lt.s32.totalorder %s1743, 31
      %s1745 = scalar_select %p1744, %s1743, 31
      %s1746 = smul.addr %s1745, 8
      %s1747 = scalar_lea.vmem %s8, %s1746
      %s1748 = smul.u32 16, %s22
      %p1749 = scmp.lt.s32.totalorder %s1748, 31
      %s1750 = scalar_select %p1749, %s1748, 31
      %s1751 = smul.addr %s1750, 8
      %s1752 = scalar_lea.vmem %s9, %s1751
      %s1753 = smul.u32 16, %s22
      %p1754 = scmp.lt.s32.totalorder %s1753, 31
      %s1755 = scalar_select %p1754, %s1753, 31
      %s1756 = smul.addr %s1755, 4
      %s1757 = scalar_lea.vmem %s10, %s1756
      // Predicated region
      $region49: #{sgvae_forward.4} parent=47 // pred_check
        %p1758 = pneg %p202
      $region50: #{sgvae_forward.4} parent=47 // pred_check_branch
        %1760 = sbr.rel (%p1758) target = $region52
      $region51: #{sgvae_forward.4} parent=47 // pred_region
        %s1761 = smul.u32 16, %s22
      $region52: #{sgvae_forward.4} parent=47 // pred_fallthru
        _
      // Predicated region
      $region53: #{sgvae_forward.4} parent=47 // pred_check
        %p1762 = pneg %p228
      $region54: #{sgvae_forward.4} parent=47 // pred_check_branch
        %1764 = sbr.rel (%p1762) target = $region56
      $region55: #{sgvae_forward.4} parent=47 // pred_region
        %s1765 = smul.u32 16, %s22
      $region56: #{sgvae_forward.4} parent=47 // pred_fallthru
        _
      // Predicated region
      $region57: #{sgvae_forward.4} parent=47 // pred_check
        %p1766 = pneg %p254
      $region58: #{sgvae_forward.4} parent=47 // pred_check_branch
        %1768 = sbr.rel (%p1766) target = $region60
      $region59: #{sgvae_forward.4} parent=47 // pred_region
        %s1769 = smul.u32 16, %s22
      $region60: #{sgvae_forward.4} parent=47 // pred_fallthru
        _
      // Predicated region
      $region61: #{sgvae_forward.4} parent=47 // pred_check
        %p1770 = pneg %p280
      $region62: #{sgvae_forward.4} parent=47 // pred_check_branch
        %1772 = sbr.rel (%p1770) target = $region64
      $region63: #{sgvae_forward.4} parent=47 // pred_region
        %s1773 = smul.u32 16, %s22
      $region64: #{sgvae_forward.4} parent=47 // pred_fallthru
        _
    $region48: #{sgvae_forward.4} parent=5 // pred_fallthru
      _
    %p1774 = scmp.le.s32.totalorder 2, %s17
    // Predicated region
    $region65: #{sgvae_forward.4} parent=5 // pred_check
      %p1775 = pneg %p1774
    $region66: #{sgvae_forward.4} parent=5 // pred_check_branch
      %1777 = sbr.rel (%p1775) target = $region68
    $region67: #{sgvae_forward.4} parent=5 // pred_region
      %s1778 = ssub.s32 %s17, 2
      // Predicated region
      $region69: #{sgvae_forward.4} parent=67 // pred_check
        %p1779 = pneg %p208
      $region70: #{sgvae_forward.4} parent=67 // pred_check_branch
        %1781 = sbr.rel (%p1779) target = $region72
      $region71: #{sgvae_forward.4} parent=67 // pred_region
        %s1782 = smul.u32 16, %s23
        %p1783 = scmp.lt.s32.totalorder %s1782, 31
        %s1784 = scalar_select %p1783, %s1782, 31
        %s1785 = smul.addr %s1784, 8
        %s1786 = scalar_lea.vmem %s7, %s1785
      $region72: #{sgvae_forward.4} parent=67 // pred_fallthru
        _
      // Predicated region
      $region73: #{sgvae_forward.4} parent=67 // pred_check
        %p1787 = pneg %p234
      $region74: #{sgvae_forward.4} parent=67 // pred_check_branch
        %1789 = sbr.rel (%p1787) target = $region76
      $region75: #{sgvae_forward.4} parent=67 // pred_region
        %s1790 = smul.u32 16, %s23
        %p1791 = scmp.lt.s32.totalorder %s1790, 31
        %s1792 = scalar_select %p1791, %s1790, 31
        %s1793 = smul.addr %s1792, 8
        %s1794 = scalar_lea.vmem %s8, %s1793
      $region76: #{sgvae_forward.4} parent=67 // pred_fallthru
        _
      // Predicated region
      $region77: #{sgvae_forward.4} parent=67 // pred_check
        %p1795 = pneg %p260
      $region78: #{sgvae_forward.4} parent=67 // pred_check_branch
        %1797 = sbr.rel (%p1795) target = $region80
      $region79: #{sgvae_forward.4} parent=67 // pred_region
        %s1798 = smul.u32 16, %s23
        %p1799 = scmp.lt.s32.totalorder %s1798, 31
        %s1800 = scalar_select %p1799, %s1798, 31
        %s1801 = smul.addr %s1800, 8
        %s1802 = scalar_lea.vmem %s9, %s1801
      $region80: #{sgvae_forward.4} parent=67 // pred_fallthru
        _
      // Predicated region
      $region81: #{sgvae_forward.4} parent=67 // pred_check
        %p1803 = pneg %p286
      $region82: #{sgvae_forward.4} parent=67 // pred_check_branch
        %1805 = sbr.rel (%p1803) target = $region84
      $region83: #{sgvae_forward.4} parent=67 // pred_region
        %s1806 = smul.u32 16, %s23
        %p1807 = scmp.lt.s32.totalorder %s1806, 31
        %s1808 = scalar_select %p1807, %s1806, 31
        %s1809 = smul.addr %s1808, 4
        %s1810 = scalar_lea.vmem %s10, %s1809
      $region84: #{sgvae_forward.4} parent=67 // pred_fallthru
        _
    $region68: #{sgvae_forward.4} parent=5 // pred_fallthru
      _
  $region6: #{sgvae_forward.4} parent=0 // loop_footer
    %s21 = sadd.s32 1, %s17
  $region7: #{sgvae_forward.4} parent=0 // loop_footer_branch
    %16 = sbr.rel target = $region3
  $region8: #{sgvae_forward.4} parent=0 // loop_exit
    _

</llo_original>
